<compile_context>
chip_gen: v7x
topology: tpu7x:2x2x1
jax: 0.10.0
libtpu: 0.0.40
codegen_flags: <defaults>
</compile_context>

<pallas_src>
import functools
import math

import jax
import jax.numpy as jnp
from jax import lax
from jax.experimental import pallas as pl
from jax.experimental.pallas import tpu as pltpu


def edge_mlp_kernel(x_ref,
                    w1_ref, b1_ref,
                    w2_ref, b2_ref,
                    w3_ref, b3_ref,
                    w4_ref, b4_ref,
                    w5t_ref, b5t_ref,
                    out_ref, *, leak):
    """One tile of edges through the 5-layer MLP.

    x_ref:    (T, 2*node_in + edge_in) bf16  -- fused [src | dest | edge_attr]
    w1..w4:   bf16 weights stored (in, out); b1..b4: f32 (1, out)
    w5t_ref:  (2, 8) f32 = W5^T ; b5t_ref: (2, 1) f32 = b5^T
    out_ref:  (2, T) f32 -- transposed, lane-dense output block
    """
    def lrelu(v):
        # Equivalent to LeakyReLU for 0 <= leak <= 1 (mul+max, no cmp+select).
        return jnp.maximum(v, leak * v)

    # Layer 1: Lin(2*node_in + edge_in, 64) -- single fused K=42 matmul.
    h = jnp.dot(x_ref[...], w1_ref[...],
                preferred_element_type=jnp.float32) + b1_ref[...]
    h = lrelu(h)
    # Layer 2: Lin(64, 32)
    h = lrelu(jnp.dot(h.astype(jnp.bfloat16), w2_ref[...],
                      preferred_element_type=jnp.float32) + b2_ref[...])
    # Layer 3: Lin(32, 16)
    h = lrelu(jnp.dot(h.astype(jnp.bfloat16), w3_ref[...],
                      preferred_element_type=jnp.float32) + b3_ref[...])
    # Layer 4: Lin(16, 8)
    h = lrelu(jnp.dot(h.astype(jnp.bfloat16), w4_ref[...],
                      preferred_element_type=jnp.float32) + b4_ref[...])
    # Layer 5: Lin(8, 2), computed transposed: out_t = W5^T @ h^T (+ b5^T).
    # NT dot_general (contract feature axis of both operands) -> (2, T), so the
    # store fills full 128-lane vregs instead of 2-wide masked vst.msk stores.
    out_t = lax.dot_general(
        w5t_ref[...], h,
        dimension_numbers=(((1,), (1,)), ((), ())),
        preferred_element_type=jnp.float32) + b5t_ref[...]
    out_ref[...] = out_t.astype(out_ref.dtype)


def edge_model_forward(src, dest, edge_attr, kernel_params, *, leak,
                       tile_rows=1024):
    """Pallas implementation of EdgeModel.forward(src, dest, edge_attr, u, batch).

    (u and batch are unused by the PyTorch module's forward.)
    Returns an [E, 2] float32 array.
    """
    E = src.shape[0]
    (w1, b1, w2, b2, w3, b3, w4, b4, w5t, b5t) = kernel_params

    # Fuse the three inputs into one bf16 stream. In production this fused
    # layout would ideally be produced upstream rather than re-concatenated
    # per call; doing it here keeps the script self-contained.
    x = jnp.concatenate([src, dest, edge_attr], axis=1).astype(jnp.bfloat16)
    d_in = x.shape[1]

    # Pad the edge dimension up to a multiple of tile_rows (padded rows are
    # sliced off below), so any E works with large tiles.
    n_tiles = pl.cdiv(E, tile_rows)
    E_pad = n_tiles * tile_rows
    if E_pad != E:
        x = jnp.pad(x, ((0, E_pad - E), (0, 0)))

    def const_spec(arr):
        return pl.BlockSpec(arr.shape, lambda i: (0, 0))

    kernel = functools.partial(edge_mlp_kernel, leak=leak)

    out_t = pl.pallas_call(
        kernel,
        out_shape=jax.ShapeDtypeStruct((2, E_pad), jnp.float32),
        grid_spec=pltpu.PrefetchScalarGridSpec(
            num_scalar_prefetch=0,
            grid=(n_tiles,),
            in_specs=[
                pl.BlockSpec((tile_rows, d_in), lambda i: (i, 0)),  # fused input
                const_spec(w1), const_spec(b1),
                const_spec(w2), const_spec(b2),
                const_spec(w3), const_spec(b3),
                const_spec(w4), const_spec(b4),
                const_spec(w5t), const_spec(b5t),
            ],
            out_specs=pl.BlockSpec((2, tile_rows), lambda i: (0, i)),
        ),
        compiler_params=pltpu.CompilerParams(
            dimension_semantics=("parallel",)),   # rows shard across v7x TCs
    )(x, w1, b1, w2, b2, w3, b3, w4, b4, w5t, b5t)

    # Lane-dense (2, E_pad) kernel output -> caller-facing [E, 2].
    return out_t[:, :E].T


def init_params(key, node_in, edge_in):
    """Deterministic synthetic f32 parameters (Linear weights stored (in, out))."""
    d_in = 2 * node_in + edge_in
    dims = [(d_in, 64), (64, 32), (32, 16), (16, 8), (8, 2)]
    keys = jax.random.split(key, 2 * len(dims))
    params = []
    for li, (din, dout) in enumerate(dims):
        scale = 1.0 / math.sqrt(din)
        w = jax.random.uniform(keys[2 * li], (din, dout), jnp.float32, -scale, scale)
        b = jax.random.uniform(keys[2 * li + 1], (1, dout), jnp.float32, -scale, scale)
        params += [w, b]
    return tuple(params)


def prepare_kernel_params(params_f32):
    """bf16 weights (f32 biases); last layer pre-transposed for lane-dense output."""
    w1, b1, w2, b2, w3, b3, w4, b4, w5, b5 = params_f32
    bf = jnp.bfloat16
    return (w1.astype(bf), b1,
            w2.astype(bf), b2,
            w3.astype(bf), b3,
            w4.astype(bf), b4,
            jnp.transpose(w5),    # (2, 8) f32
            jnp.transpose(b5))    # (2, 1) f32


def reference_forward_f32(src, dest, edge_attr, params_f32, *, leak):
    """Pure-f32 JAX reference mirroring the PyTorch edge_mlp exactly."""
    w1, b1, w2, b2, w3, b3, w4, b4, w5, b5 = params_f32
    x = jnp.concatenate([src, dest, edge_attr], axis=1)

    def lrelu(h):
        return jnp.where(h > 0, h, leak * h)

    h = lrelu(x @ w1 + b1)
    h = lrelu(h @ w2 + b2)
    h = lrelu(h @ w3 + b3)
    h = lrelu(h @ w4 + b4)
    return h @ w5 + b5


def reference_forward_mixed(src, dest, edge_attr, kernel_params, *, leak):
    """Pure-JAX reference with the same bf16/f32 mixed precision as the kernel."""
    w1, b1, w2, b2, w3, b3, w4, b4, w5t, b5t = kernel_params
    x = jnp.concatenate([src, dest, edge_attr], axis=1).astype(jnp.bfloat16)

    def lrelu(h):
        return jnp.maximum(h, leak * h)

    h = lrelu(jnp.dot(x, w1, preferred_element_type=jnp.float32) + b1)
    h = lrelu(jnp.dot(h.astype(jnp.bfloat16), w2,
                      preferred_element_type=jnp.float32) + b2)
    h = lrelu(jnp.dot(h.astype(jnp.bfloat16), w3,
                      preferred_element_type=jnp.float32) + b3)
    h = lrelu(jnp.dot(h.astype(jnp.bfloat16), w4,
                      preferred_element_type=jnp.float32) + b4)
    out_t = lax.dot_general(w5t, h, (((1,), (1,)), ((), ())),
                            preferred_element_type=jnp.float32) + b5t
    return out_t.T


if __name__ == "__main__":
    node_in = 16
    edge_in = 10
    leak = 0.1
    E = 2000            # not a tile multiple -> exercises the padded tail
    tile_rows = 1024    # -> 2 grid steps (keeps both v7x TensorCores busy)

    key = jax.random.PRNGKey(0)
    k_src, k_dst, k_edge, k_u, k_params = jax.random.split(key, 5)

    src = jax.random.normal(k_src, (E, node_in), jnp.float32)
    dest = jax.random.normal(k_dst, (E, node_in), jnp.float32)
    edge_attr = jax.random.normal(k_edge, (E, edge_in), jnp.float32)
    u = jax.random.normal(k_u, (2, 4), jnp.float32)   # unused by forward
    batch = jnp.zeros((E,), jnp.int32)                # unused by forward

    params_f32 = init_params(k_params, node_in, edge_in)
    kparams = prepare_kernel_params(params_f32)

    out = edge_model_forward(src, dest, edge_attr, kparams,
                             leak=leak, tile_rows=tile_rows)
    out = jax.block_until_ready(out)
    assert out.shape == (E, 2)

    # Exact-mirror mixed-precision reference (same bf16 casts / f32 accumulate).
    ref_mixed = reference_forward_mixed(src, dest, edge_attr, kparams, leak=leak)
    assert jnp.allclose(out, ref_mixed, atol=1e-3, rtol=1e-3), \
        "mismatch vs. mixed-precision JAX reference"

    # Sanity check vs. the full-f32 math of the original module (bf16 tolerance).
    ref_f32 = reference_forward_f32(src, dest, edge_attr, params_f32, leak=leak)
    assert jnp.allclose(out, ref_f32, atol=5e-2, rtol=5e-2), \
        "mismatch vs. f32 JAX reference"

    print("KERNEL_OK")
</pallas_src>

<mosaic_0001>
module attributes {stable_mosaic.version = 11 : i64} {
  func.func @edge_mlp_kernel(%arg0: i32, %arg1: memref<1024x42xbf16, #tpu.memory_space<vmem>>, %arg2: memref<42x64xbf16, #tpu.memory_space<vmem>>, %arg3: memref<1x64xf32, #tpu.memory_space<vmem>>, %arg4: memref<64x32xbf16, #tpu.memory_space<vmem>>, %arg5: memref<1x32xf32, #tpu.memory_space<vmem>>, %arg6: memref<32x16xbf16, #tpu.memory_space<vmem>>, %arg7: memref<1x16xf32, #tpu.memory_space<vmem>>, %arg8: memref<16x8xbf16, #tpu.memory_space<vmem>>, %arg9: memref<1x8xf32, #tpu.memory_space<vmem>>, %arg10: memref<2x8xf32, #tpu.memory_space<vmem>>, %arg11: memref<2x1xf32, #tpu.memory_space<vmem>>, %arg12: memref<2x1024xf32, #tpu.memory_space<vmem>>) attributes {dimension_semantics = [#tpu.dimension_semantics<parallel>], iteration_bounds = array<i64: 2>, scalar_prefetch = 0 : i64, scratch_operands = 0 : i64, tpu.core_type = #tpu.core_type<tc>, window_params = [{transform_indices = @transform_0, window_bounds = array<i64: 1024, 42>}, {pipeline_mode = #tpu.pipeline_mode<synchronous>, transform_indices = @transform_1, window_bounds = array<i64: 42, 64>}, {pipeline_mode = #tpu.pipeline_mode<synchronous>, transform_indices = @transform_2, window_bounds = array<i64: 1, 64>}, {pipeline_mode = #tpu.pipeline_mode<synchronous>, transform_indices = @transform_3, window_bounds = array<i64: 64, 32>}, {pipeline_mode = #tpu.pipeline_mode<synchronous>, transform_indices = @transform_4, window_bounds = array<i64: 1, 32>}, {pipeline_mode = #tpu.pipeline_mode<synchronous>, transform_indices = @transform_5, window_bounds = array<i64: 32, 16>}, {pipeline_mode = #tpu.pipeline_mode<synchronous>, transform_indices = @transform_6, window_bounds = array<i64: 1, 16>}, {pipeline_mode = #tpu.pipeline_mode<synchronous>, transform_indices = @transform_7, window_bounds = array<i64: 16, 8>}, {pipeline_mode = #tpu.pipeline_mode<synchronous>, transform_indices = @transform_8, window_bounds = array<i64: 1, 8>}, {pipeline_mode = #tpu.pipeline_mode<synchronous>, transform_indices = @transform_9, window_bounds = array<i64: 2, 8>}, {pipeline_mode = #tpu.pipeline_mode<synchronous>, transform_indices = @transform_10, window_bounds = array<i64: 2, 1>}, {transform_indices = @transform_11, window_bounds = array<i64: 2, 1024>}]} {
    %c0 = arith.constant 0 : index
    %c0_0 = arith.constant 0 : index
    %0 = vector.load %arg1[%c0, %c0_0] : memref<1024x42xbf16, #tpu.memory_space<vmem>>, vector<1024x42xbf16>
    %c0_1 = arith.constant 0 : index
    %c0_2 = arith.constant 0 : index
    %1 = vector.load %arg2[%c0_1, %c0_2] : memref<42x64xbf16, #tpu.memory_space<vmem>>, vector<42x64xbf16>
    %cst = arith.constant dense<0.000000e+00> : vector<1024x64xf32>
    %2 = tpu.matmul %0, %1, %cst {dimension_numbers = #tpu.dot_dimension_numbers<[1], [0], [0], [1], [0, 0, 1, 1], [], []>} : vector<1024x42xbf16>, vector<42x64xbf16>, vector<1024x64xf32> -> vector<1024x64xf32>
    %c0_3 = arith.constant 0 : index
    %c0_4 = arith.constant 0 : index
    %3 = vector.load %arg3[%c0_3, %c0_4] : memref<1x64xf32, #tpu.memory_space<vmem>>, vector<1x64xf32>
    %4 = vector.broadcast %3 : vector<1x64xf32> to vector<1024x64xf32>
    %5 = arith.addf %2, %4 : vector<1024x64xf32>
    %cst_5 = arith.constant 1.000000e-01 : f32
    %6 = vector.broadcast %cst_5 : f32 to vector<1024x64xf32>
    %7 = arith.mulf %6, %5 : vector<1024x64xf32>
    %8 = arith.maximumf %5, %7 : vector<1024x64xf32>
    %9 = arith.truncf %8 : vector<1024x64xf32> to vector<1024x64xbf16>
    %c0_6 = arith.constant 0 : index
    %c0_7 = arith.constant 0 : index
    %10 = vector.load %arg4[%c0_6, %c0_7] : memref<64x32xbf16, #tpu.memory_space<vmem>>, vector<64x32xbf16>
    %cst_8 = arith.constant dense<0.000000e+00> : vector<1024x32xf32>
    %11 = tpu.matmul %9, %10, %cst_8 {dimension_numbers = #tpu.dot_dimension_numbers<[1], [0], [0], [1], [0, 0, 1, 1], [], []>} : vector<1024x64xbf16>, vector<64x32xbf16>, vector<1024x32xf32> -> vector<1024x32xf32>
    %c0_9 = arith.constant 0 : index
    %c0_10 = arith.constant 0 : index
    %12 = vector.load %arg5[%c0_9, %c0_10] : memref<1x32xf32, #tpu.memory_space<vmem>>, vector<1x32xf32>
    %13 = vector.broadcast %12 : vector<1x32xf32> to vector<1024x32xf32>
    %14 = arith.addf %11, %13 : vector<1024x32xf32>
    %cst_11 = arith.constant 1.000000e-01 : f32
    %15 = vector.broadcast %cst_11 : f32 to vector<1024x32xf32>
    %16 = arith.mulf %15, %14 : vector<1024x32xf32>
    %17 = arith.maximumf %14, %16 : vector<1024x32xf32>
    %18 = arith.truncf %17 : vector<1024x32xf32> to vector<1024x32xbf16>
    %c0_12 = arith.constant 0 : index
    %c0_13 = arith.constant 0 : index
    %19 = vector.load %arg6[%c0_12, %c0_13] : memref<32x16xbf16, #tpu.memory_space<vmem>>, vector<32x16xbf16>
    %cst_14 = arith.constant dense<0.000000e+00> : vector<1024x16xf32>
    %20 = tpu.matmul %18, %19, %cst_14 {dimension_numbers = #tpu.dot_dimension_numbers<[1], [0], [0], [1], [0, 0, 1, 1], [], []>} : vector<1024x32xbf16>, vector<32x16xbf16>, vector<1024x16xf32> -> vector<1024x16xf32>
    %c0_15 = arith.constant 0 : index
    %c0_16 = arith.constant 0 : index
    %21 = vector.load %arg7[%c0_15, %c0_16] : memref<1x16xf32, #tpu.memory_space<vmem>>, vector<1x16xf32>
    %22 = vector.broadcast %21 : vector<1x16xf32> to vector<1024x16xf32>
    %23 = arith.addf %20, %22 : vector<1024x16xf32>
    %cst_17 = arith.constant 1.000000e-01 : f32
    %24 = vector.broadcast %cst_17 : f32 to vector<1024x16xf32>
    %25 = arith.mulf %24, %23 : vector<1024x16xf32>
    %26 = arith.maximumf %23, %25 : vector<1024x16xf32>
    %27 = arith.truncf %26 : vector<1024x16xf32> to vector<1024x16xbf16>
    %c0_18 = arith.constant 0 : index
    %c0_19 = arith.constant 0 : index
    %28 = vector.load %arg8[%c0_18, %c0_19] : memref<16x8xbf16, #tpu.memory_space<vmem>>, vector<16x8xbf16>
    %cst_20 = arith.constant dense<0.000000e+00> : vector<1024x8xf32>
    %29 = tpu.matmul %27, %28, %cst_20 {dimension_numbers = #tpu.dot_dimension_numbers<[1], [0], [0], [1], [0, 0, 1, 1], [], []>} : vector<1024x16xbf16>, vector<16x8xbf16>, vector<1024x8xf32> -> vector<1024x8xf32>
    %c0_21 = arith.constant 0 : index
    %c0_22 = arith.constant 0 : index
    %30 = vector.load %arg9[%c0_21, %c0_22] : memref<1x8xf32, #tpu.memory_space<vmem>>, vector<1x8xf32>
    %31 = vector.broadcast %30 : vector<1x8xf32> to vector<1024x8xf32>
    %32 = arith.addf %29, %31 : vector<1024x8xf32>
    %cst_23 = arith.constant 1.000000e-01 : f32
    %33 = vector.broadcast %cst_23 : f32 to vector<1024x8xf32>
    %34 = arith.mulf %33, %32 : vector<1024x8xf32>
    %35 = arith.maximumf %32, %34 : vector<1024x8xf32>
    %c0_24 = arith.constant 0 : index
    %c0_25 = arith.constant 0 : index
    %36 = vector.load %arg10[%c0_24, %c0_25] : memref<2x8xf32, #tpu.memory_space<vmem>>, vector<2x8xf32>
    %cst_26 = arith.constant dense<0.000000e+00> : vector<2x1024xf32>
    %37 = tpu.matmul %36, %35, %cst_26 {dimension_numbers = #tpu.dot_dimension_numbers<[1], [1], [0], [0], [0, 0, 1, 0], [], []>} : vector<2x8xf32>, vector<1024x8xf32>, vector<2x1024xf32> -> vector<2x1024xf32>
    %c0_27 = arith.constant 0 : index
    %c0_28 = arith.constant 0 : index
    %38 = vector.load %arg11[%c0_27, %c0_28] : memref<2x1xf32, #tpu.memory_space<vmem>>, vector<2x1xf32>
    %39 = vector.broadcast %38 : vector<2x1xf32> to vector<2x1024xf32>
    %40 = arith.addf %37, %39 : vector<2x1024xf32>
    %c0_29 = arith.constant 0 : index
    %c0_30 = arith.constant 0 : index
    %41 = vector.load %arg12[%c0_29, %c0_30] : memref<2x1024xf32, #tpu.memory_space<vmem>>, vector<2x1024xf32>
    tpu.vector_store %arg12[%c0_29, %c0_30], %40 {strides = array<i32>} : memref<2x1024xf32, #tpu.memory_space<vmem>>, vector<2x1024xf32>,
    return
  }
  func.func @transform_0(%arg0: i32) -> (i32, i32) {
    %c0_i32 = arith.constant 0 : i32
    %c0_i32_0 = arith.constant 0 : i32
    return %arg0, %c0_i32 : i32, i32
  }
  func.func @transform_1(%arg0: i32) -> (i32, i32) {
    %c0_i32 = arith.constant 0 : i32
    %c0_i32_0 = arith.constant 0 : i32
    %c0_i32_1 = arith.constant 0 : i32
    return %c0_i32, %c0_i32_0 : i32, i32
  }
  func.func @transform_2(%arg0: i32) -> (i32, i32) {
    %c0_i32 = arith.constant 0 : i32
    %c0_i32_0 = arith.constant 0 : i32
    %c0_i32_1 = arith.constant 0 : i32
    return %c0_i32, %c0_i32_0 : i32, i32
  }
  func.func @transform_3(%arg0: i32) -> (i32, i32) {
    %c0_i32 = arith.constant 0 : i32
    %c0_i32_0 = arith.constant 0 : i32
    %c0_i32_1 = arith.constant 0 : i32
    return %c0_i32, %c0_i32_0 : i32, i32
  }
  func.func @transform_4(%arg0: i32) -> (i32, i32) {
    %c0_i32 = arith.constant 0 : i32
    %c0_i32_0 = arith.constant 0 : i32
    %c0_i32_1 = arith.constant 0 : i32
    return %c0_i32, %c0_i32_0 : i32, i32
  }
  func.func @transform_5(%arg0: i32) -> (i32, i32) {
    %c0_i32 = arith.constant 0 : i32
    %c0_i32_0 = arith.constant 0 : i32
    %c0_i32_1 = arith.constant 0 : i32
    return %c0_i32, %c0_i32_0 : i32, i32
  }
  func.func @transform_6(%arg0: i32) -> (i32, i32) {
    %c0_i32 = arith.constant 0 : i32
    %c0_i32_0 = arith.constant 0 : i32
    %c0_i32_1 = arith.constant 0 : i32
    return %c0_i32, %c0_i32_0 : i32, i32
  }
  func.func @transform_7(%arg0: i32) -> (i32, i32) {
    %c0_i32 = arith.constant 0 : i32
    %c0_i32_0 = arith.constant 0 : i32
    %c0_i32_1 = arith.constant 0 : i32
    return %c0_i32, %c0_i32_0 : i32, i32
  }
  func.func @transform_8(%arg0: i32) -> (i32, i32) {
    %c0_i32 = arith.constant 0 : i32
    %c0_i32_0 = arith.constant 0 : i32
    %c0_i32_1 = arith.constant 0 : i32
    return %c0_i32, %c0_i32_0 : i32, i32
  }
  func.func @transform_9(%arg0: i32) -> (i32, i32) {
    %c0_i32 = arith.constant 0 : i32
    %c0_i32_0 = arith.constant 0 : i32
    %c0_i32_1 = arith.constant 0 : i32
    return %c0_i32, %c0_i32_0 : i32, i32
  }
  func.func @transform_10(%arg0: i32) -> (i32, i32) {
    %c0_i32 = arith.constant 0 : i32
    %c0_i32_0 = arith.constant 0 : i32
    %c0_i32_1 = arith.constant 0 : i32
    return %c0_i32, %c0_i32_0 : i32, i32
  }
  func.func @transform_11(%arg0: i32) -> (i32, i32) {
    %c0_i32 = arith.constant 0 : i32
    %c0_i32_0 = arith.constant 0 : i32
    return %c0_i32, %arg0 : i32, i32
  }
}

</mosaic_0001>

<llo_original>
// kernel: tpu_custom_call.1
$region0: #{tpu_custom_call.1}
  #allocation0 [shape = 'u32[]', space=smem, size = 0x4, offset = 0x4, fixed_abs, tag = 'smem constant byte address 0x4 - core index']
  #allocation1 [shape = 'u32[144,128]{1,0:T(1,128)}', space=vmem, size = 0x12000, scoped, tag = 'internal scratch']
  %s0 = inlined_call_operand.vmem [shape: bf16[2048,42], index: 0, kind: input, shape index: {}]
  %s1 = inlined_call_operand.vmem [shape: bf16[42,64], index: 1, kind: input, shape index: {}]
  %s2 = inlined_call_operand.vmem [shape: f32[1,64], index: 2, kind: input, shape index: {}]
  %s3 = inlined_call_operand.vmem [shape: bf16[64,32], index: 3, kind: input, shape index: {}]
  %s4 = inlined_call_operand.vmem [shape: f32[1,32], index: 4, kind: input, shape index: {}]
  %s5 = inlined_call_operand.vmem [shape: bf16[32,16], index: 5, kind: input, shape index: {}]
  %s6 = inlined_call_operand.vmem [shape: f32[1,16], index: 6, kind: input, shape index: {}]
  %s7 = inlined_call_operand.vmem [shape: bf16[16,8], index: 7, kind: input, shape index: {}]
  %s8 = inlined_call_operand.vmem [shape: f32[1,8], index: 8, kind: input, shape index: {}]
  %s9 = inlined_call_operand.vmem [shape: f32[2,8], index: 9, kind: input, shape index: {}]
  %s10 = inlined_call_operand.vmem [shape: f32[2,1], index: 10, kind: input, shape index: {}]
  %s11 = inlined_call_operand.hbm [shape: f32[2,2048], index: 11, kind: output, shape index: {}]
  %s12 = sld [smem:[#allocation0]]
  $region77: #{tpu_custom_call.1} parent=0
    _
  %s14 = ssub.s32 1, %s12
  %s15 = scalar_select 0, %s14, %s12
  $region1: #{tpu_custom_call.1} parent=0
    #allocation2 [shape = 'u8[16384]{0}', space=vmem, size = 0x4000, scoped, tag = 'output window, operand 0']
    #allocation3 [shape = 's32[2]{0}', space=sflag, size = 0x8, scoped, tag = 'scoped memory for tpu_custom_call.1']
    %16 = vsyncpa [#allocation3], 0
    %s17 = scalar_lea.sflag [#allocation3], 1
    %18 = vsyncpa %s17, 0
    loop: start=0, step=1, limit=4
    $region2: #{tpu_custom_call.1} parent=1 // loop_pre_header
      _
    $region3: #{tpu_custom_call.1} parent=1 // loop_header
      %s20 = sphi 0, %s24
      %p21 = scmp.ge.s32.totalorder %s20, 4
      %s30 = sphi 0, %s32
      %s33 = sphi 0, %s30
      %s34 = sphi 0, %s33
      %s50 = sphi 0, %s34
      %s54 = sphi 0, %s54
      %s56 = sphi 0, %s54
      %s57 = sphi 0, %s56
      %s71 = sphi 0, %s57
      %s75 = sphi 0, %s75
      %s77 = sphi 0, %s75
      %s78 = sphi 0, %s77
      %s92 = sphi 0, %s78
      %s96 = sphi 0, %s96
      %s98 = sphi 0, %s96
      %s99 = sphi 0, %s98
      %s113 = sphi 0, %s99
      %s117 = sphi 0, %s117
      %s119 = sphi 0, %s117
      %s120 = sphi 0, %s119
      %s134 = sphi 0, %s120
      %s138 = sphi 0, %s138
      %s140 = sphi 0, %s138
      %s141 = sphi 0, %s140
      %s155 = sphi 0, %s141
      %s159 = sphi 0, %s159
      %s161 = sphi 0, %s159
      %s162 = sphi 0, %s161
      %s176 = sphi 0, %s162
      %s180 = sphi 0, %s180
      %s182 = sphi 0, %s180
      %s183 = sphi 0, %s182
      %s197 = sphi 0, %s183
      %s201 = sphi 0, %s201
      %s203 = sphi 0, %s201
      %s204 = sphi 0, %s203
      %s218 = sphi 0, %s204
      %s222 = sphi 0, %s222
      %s224 = sphi 0, %s222
      %s225 = sphi 0, %s224
      %s239 = sphi 0, %s225
      %s243 = sphi 0, %s243
      %s245 = sphi 0, %s243
      %s246 = sphi 0, %s245
      %s260 = sphi 0, %s246
      %s266 = sphi 0, %s268
      %s269 = sphi 0, %s266
      %s270 = sphi 0, %s269
      %s286 = sphi 0, %s270
    $region4: #{tpu_custom_call.1} parent=1 // loop_header_branch
      %23 = sbr.rel (%p21) target = $region8
    $region5: #{tpu_custom_call.1} parent=1 // loop_body
      %s25 = ssub.s32 %s20, 1
      %s26 = ssub.s32 %s20, 2
      %s27 = sadd.s32 %s20, 1
      %s28 = ssub.s32 %s20, %s27
      %p29 = scmp.eq.s32.totalorder %s28, 0
      %s31 = sadd.s32 %s30, 1
      %s32 = scalar_select %p29, %s30, %s31
      %p35 = pneg %p29
      %p36 = scmp.eq.s32.totalorder %s20, 1
      %p37 = por %p35, %p36
      %p38 = scmp.ne.s32.totalorder %s30, %s33
      %p39 = scmp.eq.s32.totalorder %s20, 0
      %p40 = por %p38, %p39
      %p41 = scmp.ne.s32.totalorder %s30, %s33
      %p42 = scmp.eq.s32.totalorder %s25, 1
      %p43 = por %p41, %p42
      %p44 = scmp.ne.s32.totalorder %s33, %s34
      %p45 = scmp.eq.s32.totalorder %s25, 0
      %p46 = por %p44, %p45
      %p47 = scmp.ne.s32.totalorder %s33, %s34
      %p48 = scmp.eq.s32.totalorder %s26, 1
      %p49 = por %p47, %p48
      %p51 = scmp.ne.s32.totalorder %s34, %s50
      %p52 = scmp.eq.s32.totalorder %s26, 0
      %p53 = por %p51, %p52
      %s55 = sadd.s32 %s54, 1
      %p58 = scmp.eq.s32.totalorder %s20, 1
      %p59 = scmp.ne.s32.totalorder %s54, %s56
      %p60 = scmp.eq.s32.totalorder %s20, 0
      %p61 = por %p59, %p60
      %p62 = scmp.ne.s32.totalorder %s54, %s56
      %p63 = scmp.eq.s32.totalorder %s25, 1
      %p64 = por %p62, %p63
      %p65 = scmp.ne.s32.totalorder %s56, %s57
      %p66 = scmp.eq.s32.totalorder %s25, 0
      %p67 = por %p65, %p66
      %p68 = scmp.ne.s32.totalorder %s56, %s57
      %p69 = scmp.eq.s32.totalorder %s26, 1
      %p70 = por %p68, %p69
      %p72 = scmp.ne.s32.totalorder %s57, %s71
      %p73 = scmp.eq.s32.totalorder %s26, 0
      %p74 = por %p72, %p73
      %s76 = sadd.s32 %s75, 1
      %p79 = scmp.eq.s32.totalorder %s20, 1
      %p80 = scmp.ne.s32.totalorder %s75, %s77
      %p81 = scmp.eq.s32.totalorder %s20, 0
      %p82 = por %p80, %p81
      %p83 = scmp.ne.s32.totalorder %s75, %s77
      %p84 = scmp.eq.s32.totalorder %s25, 1
      %p85 = por %p83, %p84
      %p86 = scmp.ne.s32.totalorder %s77, %s78
      %p87 = scmp.eq.s32.totalorder %s25, 0
      %p88 = por %p86, %p87
      %p89 = scmp.ne.s32.totalorder %s77, %s78
      %p90 = scmp.eq.s32.totalorder %s26, 1
      %p91 = por %p89, %p90
      %p93 = scmp.ne.s32.totalorder %s78, %s92
      %p94 = scmp.eq.s32.totalorder %s26, 0
      %p95 = por %p93, %p94
      %s97 = sadd.s32 %s96, 1
      %p100 = scmp.eq.s32.totalorder %s20, 1
      %p101 = scmp.ne.s32.totalorder %s96, %s98
      %p102 = scmp.eq.s32.totalorder %s20, 0
      %p103 = por %p101, %p102
      %p104 = scmp.ne.s32.totalorder %s96, %s98
      %p105 = scmp.eq.s32.totalorder %s25, 1
      %p106 = por %p104, %p105
      %p107 = scmp.ne.s32.totalorder %s98, %s99
      %p108 = scmp.eq.s32.totalorder %s25, 0
      %p109 = por %p107, %p108
      %p110 = scmp.ne.s32.totalorder %s98, %s99
      %p111 = scmp.eq.s32.totalorder %s26, 1
      %p112 = por %p110, %p111
      %p114 = scmp.ne.s32.totalorder %s99, %s113
      %p115 = scmp.eq.s32.totalorder %s26, 0
      %p116 = por %p114, %p115
      %s118 = sadd.s32 %s117, 1
      %p121 = scmp.eq.s32.totalorder %s20, 1
      %p122 = scmp.ne.s32.totalorder %s117, %s119
      %p123 = scmp.eq.s32.totalorder %s20, 0
      %p124 = por %p122, %p123
      %p125 = scmp.ne.s32.totalorder %s117, %s119
      %p126 = scmp.eq.s32.totalorder %s25, 1
      %p127 = por %p125, %p126
      %p128 = scmp.ne.s32.totalorder %s119, %s120
      %p129 = scmp.eq.s32.totalorder %s25, 0
      %p130 = por %p128, %p129
      %p131 = scmp.ne.s32.totalorder %s119, %s120
      %p132 = scmp.eq.s32.totalorder %s26, 1
      %p133 = por %p131, %p132
      %p135 = scmp.ne.s32.totalorder %s120, %s134
      %p136 = scmp.eq.s32.totalorder %s26, 0
      %p137 = por %p135, %p136
      %s139 = sadd.s32 %s138, 1
      %p142 = scmp.eq.s32.totalorder %s20, 1
      %p143 = scmp.ne.s32.totalorder %s138, %s140
      %p144 = scmp.eq.s32.totalorder %s20, 0
      %p145 = por %p143, %p144
      %p146 = scmp.ne.s32.totalorder %s138, %s140
      %p147 = scmp.eq.s32.totalorder %s25, 1
      %p148 = por %p146, %p147
      %p149 = scmp.ne.s32.totalorder %s140, %s141
      %p150 = scmp.eq.s32.totalorder %s25, 0
      %p151 = por %p149, %p150
      %p152 = scmp.ne.s32.totalorder %s140, %s141
      %p153 = scmp.eq.s32.totalorder %s26, 1
      %p154 = por %p152, %p153
      %p156 = scmp.ne.s32.totalorder %s141, %s155
      %p157 = scmp.eq.s32.totalorder %s26, 0
      %p158 = por %p156, %p157
      %s160 = sadd.s32 %s159, 1
      %p163 = scmp.eq.s32.totalorder %s20, 1
      %p164 = scmp.ne.s32.totalorder %s159, %s161
      %p165 = scmp.eq.s32.totalorder %s20, 0
      %p166 = por %p164, %p165
      %p167 = scmp.ne.s32.totalorder %s159, %s161
      %p168 = scmp.eq.s32.totalorder %s25, 1
      %p169 = por %p167, %p168
      %p170 = scmp.ne.s32.totalorder %s161, %s162
      %p171 = scmp.eq.s32.totalorder %s25, 0
      %p172 = por %p170, %p171
      %p173 = scmp.ne.s32.totalorder %s161, %s162
      %p174 = scmp.eq.s32.totalorder %s26, 1
      %p175 = por %p173, %p174
      %p177 = scmp.ne.s32.totalorder %s162, %s176
      %p178 = scmp.eq.s32.totalorder %s26, 0
      %p179 = por %p177, %p178
      %s181 = sadd.s32 %s180, 1
      %p184 = scmp.eq.s32.totalorder %s20, 1
      %p185 = scmp.ne.s32.totalorder %s180, %s182
      %p186 = scmp.eq.s32.totalorder %s20, 0
      %p187 = por %p185, %p186
      %p188 = scmp.ne.s32.totalorder %s180, %s182
      %p189 = scmp.eq.s32.totalorder %s25, 1
      %p190 = por %p188, %p189
      %p191 = scmp.ne.s32.totalorder %s182, %s183
      %p192 = scmp.eq.s32.totalorder %s25, 0
      %p193 = por %p191, %p192
      %p194 = scmp.ne.s32.totalorder %s182, %s183
      %p195 = scmp.eq.s32.totalorder %s26, 1
      %p196 = por %p194, %p195
      %p198 = scmp.ne.s32.totalorder %s183, %s197
      %p199 = scmp.eq.s32.totalorder %s26, 0
      %p200 = por %p198, %p199
      %s202 = sadd.s32 %s201, 1
      %p205 = scmp.eq.s32.totalorder %s20, 1
      %p206 = scmp.ne.s32.totalorder %s201, %s203
      %p207 = scmp.eq.s32.totalorder %s20, 0
      %p208 = por %p206, %p207
      %p209 = scmp.ne.s32.totalorder %s201, %s203
      %p210 = scmp.eq.s32.totalorder %s25, 1
      %p211 = por %p209, %p210
      %p212 = scmp.ne.s32.totalorder %s203, %s204
      %p213 = scmp.eq.s32.totalorder %s25, 0
      %p214 = por %p212, %p213
      %p215 = scmp.ne.s32.totalorder %s203, %s204
      %p216 = scmp.eq.s32.totalorder %s26, 1
      %p217 = por %p215, %p216
      %p219 = scmp.ne.s32.totalorder %s204, %s218
      %p220 = scmp.eq.s32.totalorder %s26, 0
      %p221 = por %p219, %p220
      %s223 = sadd.s32 %s222, 1
      %p226 = scmp.eq.s32.totalorder %s20, 1
      %p227 = scmp.ne.s32.totalorder %s222, %s224
      %p228 = scmp.eq.s32.totalorder %s20, 0
      %p229 = por %p227, %p228
      %p230 = scmp.ne.s32.totalorder %s222, %s224
      %p231 = scmp.eq.s32.totalorder %s25, 1
      %p232 = por %p230, %p231
      %p233 = scmp.ne.s32.totalorder %s224, %s225
      %p234 = scmp.eq.s32.totalorder %s25, 0
      %p235 = por %p233, %p234
      %p236 = scmp.ne.s32.totalorder %s224, %s225
      %p237 = scmp.eq.s32.totalorder %s26, 1
      %p238 = por %p236, %p237
      %p240 = scmp.ne.s32.totalorder %s225, %s239
      %p241 = scmp.eq.s32.totalorder %s26, 0
      %p242 = por %p240, %p241
      %s244 = sadd.s32 %s243, 1
      %p247 = scmp.eq.s32.totalorder %s20, 1
      %p248 = scmp.ne.s32.totalorder %s243, %s245
      %p249 = scmp.eq.s32.totalorder %s20, 0
      %p250 = por %p248, %p249
      %p251 = scmp.ne.s32.totalorder %s243, %s245
      %p252 = scmp.eq.s32.totalorder %s25, 1
      %p253 = por %p251, %p252
      %p254 = scmp.ne.s32.totalorder %s245, %s246
      %p255 = scmp.eq.s32.totalorder %s25, 0
      %p256 = por %p254, %p255
      %p257 = scmp.ne.s32.totalorder %s245, %s246
      %p258 = scmp.eq.s32.totalorder %s26, 1
      %p259 = por %p257, %p258
      %p261 = scmp.ne.s32.totalorder %s246, %s260
      %p262 = scmp.eq.s32.totalorder %s26, 0
      %p263 = por %p261, %p262
      %s264 = ssub.s32 %s20, %s27
      %p265 = scmp.eq.s32.totalorder %s264, 0
      %s267 = sadd.s32 %s266, 1
      %s268 = scalar_select %p265, %s266, %s267
      %p271 = pneg %p265
      %p272 = scmp.eq.s32.totalorder %s20, 1
      %p273 = por %p271, %p272
      %p274 = scmp.ne.s32.totalorder %s266, %s269
      %p275 = scmp.eq.s32.totalorder %s20, 0
      %p276 = por %p274, %p275
      %p277 = scmp.ne.s32.totalorder %s266, %s269
      %p278 = scmp.eq.s32.totalorder %s25, 1
      %p279 = por %p277, %p278
      %p280 = scmp.ne.s32.totalorder %s269, %s270
      %p281 = scmp.eq.s32.totalorder %s25, 0
      %p282 = por %p280, %p281
      %p283 = scmp.ne.s32.totalorder %s269, %s270
      %p284 = scmp.eq.s32.totalorder %s26, 1
      %p285 = por %p283, %p284
      %p287 = scmp.ne.s32.totalorder %s270, %s286
      %p288 = scmp.eq.s32.totalorder %s26, 0
      %p289 = por %p287, %p288
      %p290 = scmp.le.s32.totalorder 1, %s20
      %p291 = scmp.lt.s32.totalorder %s20, 3
      %p292 = pnand %p290, %p291
      %p293 = pneg %p292
      // Predicated region
      $region9: #{tpu_custom_call.1} parent=5 // pred_check
        _
      $region10: #{tpu_custom_call.1} parent=5 // pred_check_branch
        %295 = sbr.rel (%p292) target = $region12
      $region11: #{tpu_custom_call.1} parent=5 // pred_region
        %s296 = ssub.s32 %s20, 1
        // Predicated region
        $region13: #{tpu_custom_call.1} parent=11 // pred_check
          %p297 = pneg %p67
        $region14: #{tpu_custom_call.1} parent=11 // pred_check_branch
          %299 = sbr.rel (%p297) target = $region16
        $region15: #{tpu_custom_call.1} parent=11 // pred_region
          _
        $region16: #{tpu_custom_call.1} parent=11 // pred_fallthru
          _
        // Predicated region
        $region17: #{tpu_custom_call.1} parent=11 // pred_check
          %p300 = pneg %p88
        $region18: #{tpu_custom_call.1} parent=11 // pred_check_branch
          %302 = sbr.rel (%p300) target = $region20
        $region19: #{tpu_custom_call.1} parent=11 // pred_region
          _
        $region20: #{tpu_custom_call.1} parent=11 // pred_fallthru
          _
        // Predicated region
        $region21: #{tpu_custom_call.1} parent=11 // pred_check
          %p303 = pneg %p109
        $region22: #{tpu_custom_call.1} parent=11 // pred_check_branch
          %305 = sbr.rel (%p303) target = $region24
        $region23: #{tpu_custom_call.1} parent=11 // pred_region
          _
        $region24: #{tpu_custom_call.1} parent=11 // pred_fallthru
          _
        // Predicated region
        $region25: #{tpu_custom_call.1} parent=11 // pred_check
          %p306 = pneg %p130
        $region26: #{tpu_custom_call.1} parent=11 // pred_check_branch
          %308 = sbr.rel (%p306) target = $region28
        $region27: #{tpu_custom_call.1} parent=11 // pred_region
          _
        $region28: #{tpu_custom_call.1} parent=11 // pred_fallthru
          _
        // Predicated region
        $region29: #{tpu_custom_call.1} parent=11 // pred_check
          %p309 = pneg %p151
        $region30: #{tpu_custom_call.1} parent=11 // pred_check_branch
          %311 = sbr.rel (%p309) target = $region32
        $region31: #{tpu_custom_call.1} parent=11 // pred_region
          _
        $region32: #{tpu_custom_call.1} parent=11 // pred_fallthru
          _
        // Predicated region
        $region33: #{tpu_custom_call.1} parent=11 // pred_check
          %p312 = pneg %p172
        $region34: #{tpu_custom_call.1} parent=11 // pred_check_branch
          %314 = sbr.rel (%p312) target = $region36
        $region35: #{tpu_custom_call.1} parent=11 // pred_region
          _
        $region36: #{tpu_custom_call.1} parent=11 // pred_fallthru
          _
        // Predicated region
        $region37: #{tpu_custom_call.1} parent=11 // pred_check
          %p315 = pneg %p193
        $region38: #{tpu_custom_call.1} parent=11 // pred_check_branch
          %317 = sbr.rel (%p315) target = $region40
        $region39: #{tpu_custom_call.1} parent=11 // pred_region
          _
        $region40: #{tpu_custom_call.1} parent=11 // pred_fallthru
          _
        // Predicated region
        $region41: #{tpu_custom_call.1} parent=11 // pred_check
          %p318 = pneg %p214
        $region42: #{tpu_custom_call.1} parent=11 // pred_check_branch
          %320 = sbr.rel (%p318) target = $region44
        $region43: #{tpu_custom_call.1} parent=11 // pred_region
          _
        $region44: #{tpu_custom_call.1} parent=11 // pred_fallthru
          _
        // Predicated region
        $region45: #{tpu_custom_call.1} parent=11 // pred_check
          %p321 = pneg %p235
        $region46: #{tpu_custom_call.1} parent=11 // pred_check_branch
          %323 = sbr.rel (%p321) target = $region48
        $region47: #{tpu_custom_call.1} parent=11 // pred_region
          _
        $region48: #{tpu_custom_call.1} parent=11 // pred_fallthru
          _
        // Predicated region
        $region49: #{tpu_custom_call.1} parent=11 // pred_check
          %p324 = pneg %p256
        $region50: #{tpu_custom_call.1} parent=11 // pred_check_branch
          %326 = sbr.rel (%p324) target = $region52
        $region51: #{tpu_custom_call.1} parent=11 // pred_region
          _
        $region52: #{tpu_custom_call.1} parent=11 // pred_fallthru
          _
      $region12: #{tpu_custom_call.1} parent=5 // pred_fallthru
        _
      %p327 = scmp.lt.s32.totalorder %s20, 2
      // Predicated region
      $region53: #{tpu_custom_call.1} parent=5 // pred_check
        %p328 = pneg %p327
      $region54: #{tpu_custom_call.1} parent=5 // pred_check_branch
        %330 = sbr.rel (%p328) target = $region56
      $region55: #{tpu_custom_call.1} parent=5 // pred_region
        // Predicated region
        $region57: #{tpu_custom_call.1} parent=55 // pred_check
          %p331 = pneg %p40
        $region58: #{tpu_custom_call.1} parent=55 // pred_check_branch
          %333 = sbr.rel (%p331) target = $region60
        $region59: #{tpu_custom_call.1} parent=55 // pred_region
          %s334 = smul.u32 128, %s20
          %p335 = scmp.lt.s32.totalorder %s334, 255
          %s336 = scalar_select %p335, %s334, 255
          %s337 = smul.addr %s336, 4
          %s338 = scalar_lea.vmem %s0, %s337
          %s339 = smul.u32 128, %s20
        $region60: #{tpu_custom_call.1} parent=55 // pred_fallthru
          _
      $region56: #{tpu_custom_call.1} parent=5 // pred_fallthru
        _
      %p340 = scmp.le.s32.totalorder 1, %s20
      %p341 = scmp.lt.s32.totalorder %s20, 3
      %p342 = pnand %p340, %p341
      %p343 = pneg %p342
      // Predicated region
      $region61: #{tpu_custom_call.1} parent=5 // pred_check
        _
      $region62: #{tpu_custom_call.1} parent=5 // pred_check_branch
        %345 = sbr.rel (%p342) target = $region64
      $region63: #{tpu_custom_call.1} parent=5 // pred_region
        %s346 = ssub.s32 %s20, 1
        %s347 = smul.u32 128, %s25
        %p348 = scmp.lt.s32.totalorder %s347, 255
        %s349 = scalar_select %p348, %s347, 255
        %s350 = smul.addr %s349, 4
        %s351 = scalar_lea.vmem %s0, %s350
        %p352 = pneg %p46
        %p353 = pneg %p43
        %p354 = pneg %p67
        %p355 = pneg %p64
        %p356 = pneg %p88
        %p357 = pneg %p85
        %p358 = pneg %p109
        %p359 = pneg %p106
        %p360 = pneg %p130
        %p361 = pneg %p127
        %p362 = pneg %p151
        %p363 = pneg %p148
        %p364 = pneg %p172
        %p365 = pneg %p169
        %p366 = pneg %p193
        %p367 = pneg %p190
        %p368 = pneg %p214
        %p369 = pneg %p211
        %p370 = pneg %p235
        %p371 = pneg %p232
        %p372 = pneg %p256
        %p373 = pneg %p253
        %p374 = pneg %p282
        %p375 = pneg %p279
        %s376 = sand.u32 %s269, 1
        %s377 = scalar_lea.sflag [#allocation3], %s376
        %s378 = sand.u32 %s269, 1
        %s379 = smul.addr %s378, 16
        %s380 = scalar_lea.vmem [#allocation2], %s379
        %s381 = smul.u32 128, %s25
        %p382 = scmp.lt.s32.totalorder %s381, 255
        %s383 = scalar_select %p382, %s381, 255
        %s384 = smul.addr %s383, 4
        %s385 = scalar_lea.vmem %s0, %s384
        %s386 = smul.u32 128, %s25
        %s387 = smul.u32 8, %s25
        %v389 = vld [vmem:[%s385] sm:$0xf]
        %v390 = vld [vmem:[%s385 + $0x4] sm:$0xf]
        %v391 = vld [vmem:[%s385 + $0x8] sm:$0xf]
        %v392 = vld [vmem:[%s385 + $0xc] sm:$0xf]
        %v393 = vld [vmem:[%s385 + $0x10] sm:$0xf]
        %v394 = vld [vmem:[%s385 + $0x14] sm:$0xf]
        %v395 = vld [vmem:[%s385 + $0x18] sm:$0xf]
        %v396 = vld [vmem:[%s385 + $0x1c] sm:$0xf]
        %v397 = vld [vmem:[%s385 + $0x20] sm:$0xf]
        %v398 = vld [vmem:[%s385 + $0x24] sm:$0xf]
        %v399 = vld [vmem:[%s385 + $0x28] sm:$0xf]
        %v400 = vld [vmem:[%s385 + $0x2c] sm:$0xf]
        %v401 = vld [vmem:[%s385 + $0x30] sm:$0xf]
        %v402 = vld [vmem:[%s385 + $0x34] sm:$0xf]
        %v403 = vld [vmem:[%s385 + $0x38] sm:$0xf]
        %v404 = vld [vmem:[%s385 + $0x3c] sm:$0xf]
        %v405 = vld [vmem:[%s385 + $0x40] sm:$0xf]
        %v406 = vld [vmem:[%s385 + $0x44] sm:$0xf]
        %v407 = vld [vmem:[%s385 + $0x48] sm:$0xf]
        %v408 = vld [vmem:[%s385 + $0x4c] sm:$0xf]
        %v409 = vld [vmem:[%s385 + $0x50] sm:$0xf]
        %v410 = vld [vmem:[%s385 + $0x54] sm:$0xf]
        %v411 = vld [vmem:[%s385 + $0x58] sm:$0xf]
        %v412 = vld [vmem:[%s385 + $0x5c] sm:$0xf]
        %v413 = vld [vmem:[%s385 + $0x60] sm:$0xf]
        %v414 = vld [vmem:[%s385 + $0x64] sm:$0xf]
        %v415 = vld [vmem:[%s385 + $0x68] sm:$0xf]
        %v416 = vld [vmem:[%s385 + $0x6c] sm:$0xf]
        %v417 = vld [vmem:[%s385 + $0x70] sm:$0xf]
        %v418 = vld [vmem:[%s385 + $0x74] sm:$0xf]
        %v419 = vld [vmem:[%s385 + $0x78] sm:$0xf]
        %v420 = vld [vmem:[%s385 + $0x7c] sm:$0xf]
        %v421 = vld [vmem:[%s385 + $0x80] sm:$0xf]
        %v422 = vld [vmem:[%s385 + $0x84] sm:$0xf]
        %v423 = vld [vmem:[%s385 + $0x88] sm:$0xf]
        %v424 = vld [vmem:[%s385 + $0x8c] sm:$0xf]
        %v425 = vld [vmem:[%s385 + $0x90] sm:$0xf]
        %v426 = vld [vmem:[%s385 + $0x94] sm:$0xf]
        %v427 = vld [vmem:[%s385 + $0x98] sm:$0xf]
        %v428 = vld [vmem:[%s385 + $0x9c] sm:$0xf]
        %v429 = vld [vmem:[%s385 + $0xa0] sm:$0xf]
        %v430 = vld [vmem:[%s385 + $0xa4] sm:$0xf]
        %v431 = vld [vmem:[%s385 + $0xa8] sm:$0xf]
        %v432 = vld [vmem:[%s385 + $0xac] sm:$0xf]
        %v433 = vld [vmem:[%s385 + $0xb0] sm:$0xf]
        %v434 = vld [vmem:[%s385 + $0xb4] sm:$0xf]
        %v435 = vld [vmem:[%s385 + $0xb8] sm:$0xf]
        %v436 = vld [vmem:[%s385 + $0xbc] sm:$0xf]
        %v437 = vld [vmem:[%s385 + $0xc0] sm:$0xf]
        %v438 = vld [vmem:[%s385 + $0xc4] sm:$0xf]
        %v439 = vld [vmem:[%s385 + $0xc8] sm:$0xf]
        %v440 = vld [vmem:[%s385 + $0xcc] sm:$0xf]
        %v441 = vld [vmem:[%s385 + $0xd0] sm:$0xf]
        %v442 = vld [vmem:[%s385 + $0xd4] sm:$0xf]
        %v443 = vld [vmem:[%s385 + $0xd8] sm:$0xf]
        %v444 = vld [vmem:[%s385 + $0xdc] sm:$0xf]
        %v445 = vld [vmem:[%s385 + $0xe0] sm:$0xf]
        %v446 = vld [vmem:[%s385 + $0xe4] sm:$0xf]
        %v447 = vld [vmem:[%s385 + $0xe8] sm:$0xf]
        %v448 = vld [vmem:[%s385 + $0xec] sm:$0xf]
        %v449 = vld [vmem:[%s385 + $0xf0] sm:$0xf]
        %v450 = vld [vmem:[%s385 + $0xf4] sm:$0xf]
        %v451 = vld [vmem:[%s385 + $0xf8] sm:$0xf]
        %v452 = vld [vmem:[%s385 + $0xfc] sm:$0xf]
        %v453 = vld [vmem:[%s385 + $0x100] sm:$0xf]
        %v454 = vld [vmem:[%s385 + $0x104] sm:$0xf]
        %v455 = vld [vmem:[%s385 + $0x108] sm:$0xf]
        %v456 = vld [vmem:[%s385 + $0x10c] sm:$0xf]
        %v457 = vld [vmem:[%s385 + $0x110] sm:$0xf]
        %v458 = vld [vmem:[%s385 + $0x114] sm:$0xf]
        %v459 = vld [vmem:[%s385 + $0x118] sm:$0xf]
        %v460 = vld [vmem:[%s385 + $0x11c] sm:$0xf]
        %v461 = vld [vmem:[%s385 + $0x120] sm:$0xf]
        %v462 = vld [vmem:[%s385 + $0x124] sm:$0xf]
        %v463 = vld [vmem:[%s385 + $0x128] sm:$0xf]
        %v464 = vld [vmem:[%s385 + $0x12c] sm:$0xf]
        %v465 = vld [vmem:[%s385 + $0x130] sm:$0xf]
        %v466 = vld [vmem:[%s385 + $0x134] sm:$0xf]
        %v467 = vld [vmem:[%s385 + $0x138] sm:$0xf]
        %v468 = vld [vmem:[%s385 + $0x13c] sm:$0xf]
        %v469 = vld [vmem:[%s385 + $0x140] sm:$0xf]
        %v470 = vld [vmem:[%s385 + $0x144] sm:$0xf]
        %v471 = vld [vmem:[%s385 + $0x148] sm:$0xf]
        %v472 = vld [vmem:[%s385 + $0x14c] sm:$0xf]
        %v473 = vld [vmem:[%s385 + $0x150] sm:$0xf]
        %v474 = vld [vmem:[%s385 + $0x154] sm:$0xf]
        %v475 = vld [vmem:[%s385 + $0x158] sm:$0xf]
        %v476 = vld [vmem:[%s385 + $0x15c] sm:$0xf]
        %v477 = vld [vmem:[%s385 + $0x160] sm:$0xf]
        %v478 = vld [vmem:[%s385 + $0x164] sm:$0xf]
        %v479 = vld [vmem:[%s385 + $0x168] sm:$0xf]
        %v480 = vld [vmem:[%s385 + $0x16c] sm:$0xf]
        %v481 = vld [vmem:[%s385 + $0x170] sm:$0xf]
        %v482 = vld [vmem:[%s385 + $0x174] sm:$0xf]
        %v483 = vld [vmem:[%s385 + $0x178] sm:$0xf]
        %v484 = vld [vmem:[%s385 + $0x17c] sm:$0xf]
        %v485 = vld [vmem:[%s385 + $0x180] sm:$0xf]
        %v486 = vld [vmem:[%s385 + $0x184] sm:$0xf]
        %v487 = vld [vmem:[%s385 + $0x188] sm:$0xf]
        %v488 = vld [vmem:[%s385 + $0x18c] sm:$0xf]
        %v489 = vld [vmem:[%s385 + $0x190] sm:$0xf]
        %v490 = vld [vmem:[%s385 + $0x194] sm:$0xf]
        %v491 = vld [vmem:[%s385 + $0x198] sm:$0xf]
        %v492 = vld [vmem:[%s385 + $0x19c] sm:$0xf]
        %v493 = vld [vmem:[%s385 + $0x1a0] sm:$0xf]
        %v494 = vld [vmem:[%s385 + $0x1a4] sm:$0xf]
        %v495 = vld [vmem:[%s385 + $0x1a8] sm:$0xf]
        %v496 = vld [vmem:[%s385 + $0x1ac] sm:$0xf]
        %v497 = vld [vmem:[%s385 + $0x1b0] sm:$0xf]
        %v498 = vld [vmem:[%s385 + $0x1b4] sm:$0xf]
        %v499 = vld [vmem:[%s385 + $0x1b8] sm:$0xf]
        %v500 = vld [vmem:[%s385 + $0x1bc] sm:$0xf]
        %v501 = vld [vmem:[%s385 + $0x1c0] sm:$0xf]
        %v502 = vld [vmem:[%s385 + $0x1c4] sm:$0xf]
        %v503 = vld [vmem:[%s385 + $0x1c8] sm:$0xf]
        %v504 = vld [vmem:[%s385 + $0x1cc] sm:$0xf]
        %v505 = vld [vmem:[%s385 + $0x1d0] sm:$0xf]
        %v506 = vld [vmem:[%s385 + $0x1d4] sm:$0xf]
        %v507 = vld [vmem:[%s385 + $0x1d8] sm:$0xf]
        %v508 = vld [vmem:[%s385 + $0x1dc] sm:$0xf]
        %v509 = vld [vmem:[%s385 + $0x1e0] sm:$0xf]
        %v510 = vld [vmem:[%s385 + $0x1e4] sm:$0xf]
        %v511 = vld [vmem:[%s385 + $0x1e8] sm:$0xf]
        %v512 = vld [vmem:[%s385 + $0x1ec] sm:$0xf]
        %v513 = vld [vmem:[%s385 + $0x1f0] sm:$0xf]
        %v514 = vld [vmem:[%s385 + $0x1f4] sm:$0xf]
        %v515 = vld [vmem:[%s385 + $0x1f8] sm:$0xf]
        %v516 = vld [vmem:[%s385 + $0x1fc] sm:$0xf]
        %v517 = vld [vmem:[%s1] sm:$0xf]
        %v518 = vld [vmem:[%s1 + $0x4] sm:$0xf]
        %v519 = vld [vmem:[%s1 + $0x8] sm:$0xf]
        %v520 = vld [vmem:[%s1 + $0xc] sm:$0xf]
        %v521 = vld [vmem:[%s1 + $0x10] sm:$0xf]
        %v522 = vld [vmem:[%s1 + $0x14] sm:$0x1]
        %v523 = vld [vmem:[%s2] sm:$0x1]
        %v525 = vlaneseq
        %v526 = vshrl.u32 %v525, 7
        %v527 = vsub.s32 0, %v526
        %v528 = vrot.slane %v523, %v527
        %v658 = vunpack.c.l.b16 %v389
        %v659 = vunpack.c.l.b16 %v390
        %v660 = vunpack.c.l.b16 %v391
        %v661 = vunpack.c.l.b16 %v392
        %v662 = vunpack.c.l.b16 %v393
        %v663 = vunpack.c.l.b16 %v394
        %v664 = vunpack.c.l.b16 %v395
        %v665 = vunpack.c.l.b16 %v396
        %v666 = vunpack.c.l.b16 %v397
        %v667 = vunpack.c.l.b16 %v398
        %v668 = vunpack.c.l.b16 %v399
        %v669 = vunpack.c.l.b16 %v400
        %v670 = vunpack.c.l.b16 %v401
        %v671 = vunpack.c.l.b16 %v402
        %v672 = vunpack.c.l.b16 %v403
        %v673 = vunpack.c.l.b16 %v404
        %v674 = vunpack.c.l.b16 %v405
        %v675 = vunpack.c.l.b16 %v406
        %v676 = vunpack.c.l.b16 %v407
        %v677 = vunpack.c.l.b16 %v408
        %v678 = vunpack.c.l.b16 %v409
        %v679 = vunpack.c.l.b16 %v410
        %v680 = vunpack.c.l.b16 %v411
        %v681 = vunpack.c.l.b16 %v412
        %v682 = vunpack.c.l.b16 %v413
        %v683 = vunpack.c.l.b16 %v414
        %v684 = vunpack.c.l.b16 %v415
        %v685 = vunpack.c.l.b16 %v416
        %v686 = vunpack.c.l.b16 %v417
        %v687 = vunpack.c.l.b16 %v418
        %v688 = vunpack.c.l.b16 %v419
        %v689 = vunpack.c.l.b16 %v420
        %v690 = vunpack.c.l.b16 %v421
        %v691 = vunpack.c.l.b16 %v422
        %v692 = vunpack.c.l.b16 %v423
        %v693 = vunpack.c.l.b16 %v424
        %v694 = vunpack.c.l.b16 %v425
        %v695 = vunpack.c.l.b16 %v426
        %v696 = vunpack.c.l.b16 %v427
        %v697 = vunpack.c.l.b16 %v428
        %v698 = vunpack.c.l.b16 %v429
        %v699 = vunpack.c.l.b16 %v430
        %v700 = vunpack.c.l.b16 %v431
        %v701 = vunpack.c.l.b16 %v432
        %v702 = vunpack.c.l.b16 %v433
        %v703 = vunpack.c.l.b16 %v434
        %v704 = vunpack.c.l.b16 %v435
        %v705 = vunpack.c.l.b16 %v436
        %v706 = vunpack.c.l.b16 %v437
        %v707 = vunpack.c.l.b16 %v438
        %v708 = vunpack.c.l.b16 %v439
        %v709 = vunpack.c.l.b16 %v440
        %v710 = vunpack.c.l.b16 %v441
        %v711 = vunpack.c.l.b16 %v442
        %v712 = vunpack.c.l.b16 %v443
        %v713 = vunpack.c.l.b16 %v444
        %v714 = vunpack.c.l.b16 %v445
        %v715 = vunpack.c.l.b16 %v446
        %v716 = vunpack.c.l.b16 %v447
        %v717 = vunpack.c.l.b16 %v448
        %v718 = vunpack.c.l.b16 %v449
        %v719 = vunpack.c.l.b16 %v450
        %v720 = vunpack.c.l.b16 %v451
        %v721 = vunpack.c.l.b16 %v452
        %v722 = vunpack.c.l.b16 %v453
        %v723 = vunpack.c.l.b16 %v454
        %v724 = vunpack.c.l.b16 %v455
        %v725 = vunpack.c.l.b16 %v456
        %v726 = vunpack.c.l.b16 %v457
        %v727 = vunpack.c.l.b16 %v458
        %v728 = vunpack.c.l.b16 %v459
        %v729 = vunpack.c.l.b16 %v460
        %v730 = vunpack.c.l.b16 %v461
        %v731 = vunpack.c.l.b16 %v462
        %v732 = vunpack.c.l.b16 %v463
        %v733 = vunpack.c.l.b16 %v464
        %v734 = vunpack.c.l.b16 %v465
        %v735 = vunpack.c.l.b16 %v466
        %v736 = vunpack.c.l.b16 %v467
        %v737 = vunpack.c.l.b16 %v468
        %v738 = vunpack.c.l.b16 %v469
        %v739 = vunpack.c.l.b16 %v470
        %v740 = vunpack.c.l.b16 %v471
        %v741 = vunpack.c.l.b16 %v472
        %v742 = vunpack.c.l.b16 %v473
        %v743 = vunpack.c.l.b16 %v474
        %v744 = vunpack.c.l.b16 %v475
        %v745 = vunpack.c.l.b16 %v476
        %v746 = vunpack.c.l.b16 %v477
        %v747 = vunpack.c.l.b16 %v478
        %v748 = vunpack.c.l.b16 %v479
        %v749 = vunpack.c.l.b16 %v480
        %v750 = vunpack.c.l.b16 %v481
        %v751 = vunpack.c.l.b16 %v482
        %v752 = vunpack.c.l.b16 %v483
        %v753 = vunpack.c.l.b16 %v484
        %v754 = vunpack.c.l.b16 %v485
        %v755 = vunpack.c.l.b16 %v486
        %v756 = vunpack.c.l.b16 %v487
        %v757 = vunpack.c.l.b16 %v488
        %v758 = vunpack.c.l.b16 %v489
        %v759 = vunpack.c.l.b16 %v490
        %v760 = vunpack.c.l.b16 %v491
        %v761 = vunpack.c.l.b16 %v492
        %v762 = vunpack.c.l.b16 %v493
        %v763 = vunpack.c.l.b16 %v494
        %v764 = vunpack.c.l.b16 %v495
        %v765 = vunpack.c.l.b16 %v496
        %v766 = vunpack.c.l.b16 %v497
        %v767 = vunpack.c.l.b16 %v498
        %v768 = vunpack.c.l.b16 %v499
        %v769 = vunpack.c.l.b16 %v500
        %v770 = vunpack.c.l.b16 %v501
        %v771 = vunpack.c.l.b16 %v502
        %v772 = vunpack.c.l.b16 %v503
        %v773 = vunpack.c.l.b16 %v504
        %v774 = vunpack.c.l.b16 %v505
        %v775 = vunpack.c.l.b16 %v506
        %v776 = vunpack.c.l.b16 %v507
        %v777 = vunpack.c.l.b16 %v508
        %v778 = vunpack.c.l.b16 %v509
        %v779 = vunpack.c.l.b16 %v510
        %v780 = vunpack.c.l.b16 %v511
        %v781 = vunpack.c.l.b16 %v512
        %v782 = vunpack.c.l.b16 %v513
        %v783 = vunpack.c.l.b16 %v514
        %v784 = vunpack.c.l.b16 %v515
        %v785 = vunpack.c.l.b16 %v516
        %v786 = vpack.c.b16 %v659, %v658
        %v787 = vpack.c.b16 %v661, %v660
        %v788 = vpack.c.b16 %v663, %v662
        %v789 = vpack.c.b16 %v665, %v664
        %v790 = vpack.c.b16 %v667, %v666
        %v791 = vpack.c.b16 %v669, %v668
        %v792 = vpack.c.b16 %v671, %v670
        %v793 = vpack.c.b16 %v673, %v672
        %v794 = vpack.c.b16 %v675, %v674
        %v795 = vpack.c.b16 %v677, %v676
        %v796 = vpack.c.b16 %v679, %v678
        %v797 = vpack.c.b16 %v681, %v680
        %v798 = vpack.c.b16 %v683, %v682
        %v799 = vpack.c.b16 %v685, %v684
        %v800 = vpack.c.b16 %v687, %v686
        %v801 = vpack.c.b16 %v689, %v688
        %v802 = vpack.c.b16 %v691, %v690
        %v803 = vpack.c.b16 %v693, %v692
        %v804 = vpack.c.b16 %v695, %v694
        %v805 = vpack.c.b16 %v697, %v696
        %v806 = vpack.c.b16 %v699, %v698
        %v807 = vpack.c.b16 %v701, %v700
        %v808 = vpack.c.b16 %v703, %v702
        %v809 = vpack.c.b16 %v705, %v704
        %v810 = vpack.c.b16 %v707, %v706
        %v811 = vpack.c.b16 %v709, %v708
        %v812 = vpack.c.b16 %v711, %v710
        %v813 = vpack.c.b16 %v713, %v712
        %v814 = vpack.c.b16 %v715, %v714
        %v815 = vpack.c.b16 %v717, %v716
        %v816 = vpack.c.b16 %v719, %v718
        %v817 = vpack.c.b16 %v721, %v720
        %v818 = vpack.c.b16 %v723, %v722
        %v819 = vpack.c.b16 %v725, %v724
        %v820 = vpack.c.b16 %v727, %v726
        %v821 = vpack.c.b16 %v729, %v728
        %v822 = vpack.c.b16 %v731, %v730
        %v823 = vpack.c.b16 %v733, %v732
        %v824 = vpack.c.b16 %v735, %v734
        %v825 = vpack.c.b16 %v737, %v736
        %v826 = vpack.c.b16 %v739, %v738
        %v827 = vpack.c.b16 %v741, %v740
        %v828 = vpack.c.b16 %v743, %v742
        %v829 = vpack.c.b16 %v745, %v744
        %v830 = vpack.c.b16 %v747, %v746
        %v831 = vpack.c.b16 %v749, %v748
        %v832 = vpack.c.b16 %v751, %v750
        %v833 = vpack.c.b16 %v753, %v752
        %v834 = vpack.c.b16 %v755, %v754
        %v835 = vpack.c.b16 %v757, %v756
        %v836 = vpack.c.b16 %v759, %v758
        %v837 = vpack.c.b16 %v761, %v760
        %v838 = vpack.c.b16 %v763, %v762
        %v839 = vpack.c.b16 %v765, %v764
        %v840 = vpack.c.b16 %v767, %v766
        %v841 = vpack.c.b16 %v769, %v768
        %v842 = vpack.c.b16 %v771, %v770
        %v843 = vpack.c.b16 %v773, %v772
        %v844 = vpack.c.b16 %v775, %v774
        %v845 = vpack.c.b16 %v777, %v776
        %v846 = vpack.c.b16 %v779, %v778
        %v847 = vpack.c.b16 %v781, %v780
        %v848 = vpack.c.b16 %v783, %v782
        %v849 = vpack.c.b16 %v785, %v784
        %v856 = vunpack.c.l.b16 %v517
        %v857 = vunpack.c.l.b16 %v518
        %v858 = vunpack.c.l.b16 %v519
        %v859 = vunpack.c.l.b16 %v520
        %v860 = vunpack.c.l.b16 %v521
        %v861 = vunpack.c.l.b16 %v522
        %v862 = vpack.c.b16 %v857, %v856
        %v863 = vpack.c.b16 %v859, %v858
        %v864 = vpack.c.b16 %v861, %v860
        %vm867 = vcmask 343040
        %v869 = vsel %vm867, %v786, 0
        %v872 = vsel %vm867, %v787, 0
        %v875 = vsel %vm867, %v788, 0
        %v878 = vsel %vm867, %v789, 0
        %v881 = vsel %vm867, %v790, 0
        %v884 = vsel %vm867, %v791, 0
        %v887 = vsel %vm867, %v792, 0
        %v890 = vsel %vm867, %v793, 0
        %v893 = vsel %vm867, %v794, 0
        %v896 = vsel %vm867, %v795, 0
        %v899 = vsel %vm867, %v796, 0
        %v902 = vsel %vm867, %v797, 0
        %v905 = vsel %vm867, %v798, 0
        %v908 = vsel %vm867, %v799, 0
        %v911 = vsel %vm867, %v800, 0
        %v914 = vsel %vm867, %v801, 0
        %v917 = vsel %vm867, %v802, 0
        %v920 = vsel %vm867, %v803, 0
        %v923 = vsel %vm867, %v804, 0
        %v926 = vsel %vm867, %v805, 0
        %v929 = vsel %vm867, %v806, 0
        %v932 = vsel %vm867, %v807, 0
        %v935 = vsel %vm867, %v808, 0
        %v938 = vsel %vm867, %v809, 0
        %v941 = vsel %vm867, %v810, 0
        %v944 = vsel %vm867, %v811, 0
        %v947 = vsel %vm867, %v812, 0
        %v950 = vsel %vm867, %v813, 0
        %v953 = vsel %vm867, %v814, 0
        %v956 = vsel %vm867, %v815, 0
        %v959 = vsel %vm867, %v816, 0
        %v962 = vsel %vm867, %v817, 0
        %v965 = vsel %vm867, %v818, 0
        %v968 = vsel %vm867, %v819, 0
        %v971 = vsel %vm867, %v820, 0
        %v974 = vsel %vm867, %v821, 0
        %v977 = vsel %vm867, %v822, 0
        %v980 = vsel %vm867, %v823, 0
        %v983 = vsel %vm867, %v824, 0
        %v986 = vsel %vm867, %v825, 0
        %v989 = vsel %vm867, %v826, 0
        %v992 = vsel %vm867, %v827, 0
        %v995 = vsel %vm867, %v828, 0
        %v998 = vsel %vm867, %v829, 0
        %v1001 = vsel %vm867, %v830, 0
        %v1004 = vsel %vm867, %v831, 0
        %v1007 = vsel %vm867, %v832, 0
        %v1010 = vsel %vm867, %v833, 0
        %v1013 = vsel %vm867, %v834, 0
        %v1016 = vsel %vm867, %v835, 0
        %v1019 = vsel %vm867, %v836, 0
        %v1022 = vsel %vm867, %v837, 0
        %v1025 = vsel %vm867, %v838, 0
        %v1028 = vsel %vm867, %v839, 0
        %v1031 = vsel %vm867, %v840, 0
        %v1034 = vsel %vm867, %v841, 0
        %v1037 = vsel %vm867, %v842, 0
        %v1040 = vsel %vm867, %v843, 0
        %v1043 = vsel %vm867, %v844, 0
        %v1046 = vsel %vm867, %v845, 0
        %v1049 = vsel %vm867, %v846, 0
        %v1052 = vsel %vm867, %v847, 0
        %v1055 = vsel %vm867, %v848, 0
        %v1058 = vsel %vm867, %v849, 0
        %vm1060 = vcmask 1044480
        %v1062 = vsel %vm1060, %v864, 0
        %1064 = vmatprep.subr.bf16.mxu0 0
        %1065 = vmatpush1.bf16.msra.mxu0 %v862
        %1066 = vmatprep.subr.bf16.mxu0 0
        %1067 = vmatpush1.bf16.msra.mxu0 %v863
        %1068 = vmatprep.subr.bf16.mxu0 0
        %1069 = vmatpush1.bf16.msra.mxu0 %v1062
        %1070 = vmatprep.subr.bf16.mxu0 0
        %1071 = vmatpush1.bf16.msra.mxu0 0
        %1072 = vmatprep.subr.bf16.mxu0 0
        %1073 = vmatpush1.bf16.msra.mxu0 0
        %1074 = vmatprep.subr.bf16.mxu0 0
        %1075 = vmatpush1.bf16.msra.mxu0 0
        %1076 = vmatprep.subr.bf16.mxu0 0
        %1077 = vmatpush1.bf16.msra.mxu0 0
        %1078 = vmatprep.subr.bf16.mxu0 0
        %1079 = vmatpush1.bf16.msra.mxu0 0
        %1080 = vmatprep.subr.bf16.mxu0 0
        %1081 = vmatpush1.bf16.msra.mxu0 0
        %1082 = vmatprep.subr.bf16.mxu0 0
        %1083 = vmatpush1.bf16.msra.mxu0 0
        %1084 = vmatprep.subr.bf16.mxu0 0
        %1085 = vmatpush1.bf16.msra.mxu0 0
        %1086 = vmatprep.subr.bf16.mxu0 0
        %1087 = vmatpush1.bf16.msra.mxu0 0
        %1088 = vmatprep.subr.bf16.mxu0 0
        %1089 = vmatpush1.bf16.msra.mxu0 0
        %1090 = vmatprep.subr.bf16.mxu0 0
        %1091 = vmatpush1.bf16.msra.mxu0 0
        %1092 = vmatprep.subr.bf16.mxu0 0
        %1093 = vmatpush1.bf16.msra.mxu0 0
        %1094 = vmatprep.subr.bf16.mxu0 0
        %1095 = vmatpush1.bf16.msra.mxu0 0
        %1096 = vmatprep.mubr.bf16.mxu0 0
        %1097 = vmatmul.mubr.bf16.gmra.mrb[0].mxu0 %v869
        %v1098 = vpop.f32.mrb[0].mxu0
        %v1099 = vadd.f32 %v528, %v1098
        %v1100 = vpop.f32.mrb[0].mxu0
        %v1101 = vpop.f32.mrb[0].mxu0
        %v1102 = vadd.f32 %v528, %v1101
        %v1103 = vpop.f32.mrb[0].mxu0
        %1104 = vmatprep.mubr.bf16.mxu0 0
        %1105 = vmatmul.mubr.bf16.gmra.mrb[0].mxu0 %v872
        %v1106 = vpop.f32.mrb[0].mxu0
        %v1107 = vadd.f32 %v528, %v1106
        %v1108 = vpop.f32.mrb[0].mxu0
        %v1109 = vpop.f32.mrb[0].mxu0
        %v1110 = vadd.f32 %v528, %v1109
        %v1111 = vpop.f32.mrb[0].mxu0
        %1112 = vmatprep.mubr.bf16.mxu0 0
        %1113 = vmatmul.mubr.bf16.gmra.mrb[0].mxu0 %v875
        %v1114 = vpop.f32.mrb[0].mxu0
        %v1115 = vadd.f32 %v528, %v1114
        %v1116 = vpop.f32.mrb[0].mxu0
        %v1117 = vpop.f32.mrb[0].mxu0
        %v1118 = vadd.f32 %v528, %v1117
        %v1119 = vpop.f32.mrb[0].mxu0
        %1120 = vmatprep.mubr.bf16.mxu0 0
        %1121 = vmatmul.mubr.bf16.gmra.mrb[0].mxu0 %v878
        %v1122 = vpop.f32.mrb[0].mxu0
        %v1123 = vadd.f32 %v528, %v1122
        %v1124 = vpop.f32.mrb[0].mxu0
        %v1125 = vpop.f32.mrb[0].mxu0
        %v1126 = vadd.f32 %v528, %v1125
        %v1127 = vpop.f32.mrb[0].mxu0
        %1128 = vmatprep.mubr.bf16.mxu0 0
        %1129 = vmatmul.mubr.bf16.gmra.mrb[0].mxu0 %v881
        %v1130 = vpop.f32.mrb[0].mxu0
        %v1131 = vadd.f32 %v528, %v1130
        %v1132 = vpop.f32.mrb[0].mxu0
        %v1133 = vpop.f32.mrb[0].mxu0
        %v1134 = vadd.f32 %v528, %v1133
        %v1135 = vpop.f32.mrb[0].mxu0
        %1136 = vmatprep.mubr.bf16.mxu0 0
        %1137 = vmatmul.mubr.bf16.gmra.mrb[0].mxu0 %v884
        %v1138 = vpop.f32.mrb[0].mxu0
        %v1139 = vadd.f32 %v528, %v1138
        %v1140 = vpop.f32.mrb[0].mxu0
        %v1141 = vpop.f32.mrb[0].mxu0
        %v1142 = vadd.f32 %v528, %v1141
        %v1143 = vpop.f32.mrb[0].mxu0
        %1144 = vmatprep.mubr.bf16.mxu0 0
        %1145 = vmatmul.mubr.bf16.gmra.mrb[0].mxu0 %v887
        %v1146 = vpop.f32.mrb[0].mxu0
        %v1147 = vadd.f32 %v528, %v1146
        %v1148 = vpop.f32.mrb[0].mxu0
        %v1149 = vpop.f32.mrb[0].mxu0
        %v1150 = vadd.f32 %v528, %v1149
        %v1151 = vpop.f32.mrb[0].mxu0
        %1152 = vmatprep.mubr.bf16.mxu0 0
        %1153 = vmatmul.mubr.bf16.gmra.mrb[0].mxu0 %v890
        %v1154 = vpop.f32.mrb[0].mxu0
        %v1155 = vadd.f32 %v528, %v1154
        %v1156 = vpop.f32.mrb[0].mxu0
        %v1157 = vpop.f32.mrb[0].mxu0
        %v1158 = vadd.f32 %v528, %v1157
        %v1159 = vpop.f32.mrb[0].mxu0
        %1160 = vmatprep.mubr.bf16.mxu0 0
        %1161 = vmatmul.mubr.bf16.gmra.mrb[0].mxu0 %v893
        %v1162 = vpop.f32.mrb[0].mxu0
        %v1163 = vadd.f32 %v528, %v1162
        %v1164 = vpop.f32.mrb[0].mxu0
        %v1165 = vpop.f32.mrb[0].mxu0
        %v1166 = vadd.f32 %v528, %v1165
        %v1167 = vpop.f32.mrb[0].mxu0
        %1168 = vmatprep.mubr.bf16.mxu0 0
        %1169 = vmatmul.mubr.bf16.gmra.mrb[0].mxu0 %v896
        %v1170 = vpop.f32.mrb[0].mxu0
        %v1171 = vadd.f32 %v528, %v1170
        %v1172 = vpop.f32.mrb[0].mxu0
        %v1173 = vpop.f32.mrb[0].mxu0
        %v1174 = vadd.f32 %v528, %v1173
        %v1175 = vpop.f32.mrb[0].mxu0
        %1176 = vmatprep.mubr.bf16.mxu0 0
        %1177 = vmatmul.mubr.bf16.gmra.mrb[0].mxu0 %v899
        %v1178 = vpop.f32.mrb[0].mxu0
        %v1179 = vadd.f32 %v528, %v1178
        %v1180 = vpop.f32.mrb[0].mxu0
        %v1181 = vpop.f32.mrb[0].mxu0
        %v1182 = vadd.f32 %v528, %v1181
        %v1183 = vpop.f32.mrb[0].mxu0
        %1184 = vmatprep.mubr.bf16.mxu0 0
        %1185 = vmatmul.mubr.bf16.gmra.mrb[0].mxu0 %v902
        %v1186 = vpop.f32.mrb[0].mxu0
        %v1187 = vadd.f32 %v528, %v1186
        %v1188 = vpop.f32.mrb[0].mxu0
        %v1189 = vpop.f32.mrb[0].mxu0
        %v1190 = vadd.f32 %v528, %v1189
        %v1191 = vpop.f32.mrb[0].mxu0
        %1192 = vmatprep.mubr.bf16.mxu0 0
        %1193 = vmatmul.mubr.bf16.gmra.mrb[0].mxu0 %v905
        %v1194 = vpop.f32.mrb[0].mxu0
        %v1195 = vadd.f32 %v528, %v1194
        %v1196 = vpop.f32.mrb[0].mxu0
        %v1197 = vpop.f32.mrb[0].mxu0
        %v1198 = vadd.f32 %v528, %v1197
        %v1199 = vpop.f32.mrb[0].mxu0
        %1200 = vmatprep.mubr.bf16.mxu0 0
        %1201 = vmatmul.mubr.bf16.gmra.mrb[0].mxu0 %v908
        %v1202 = vpop.f32.mrb[0].mxu0
        %v1203 = vadd.f32 %v528, %v1202
        %v1204 = vpop.f32.mrb[0].mxu0
        %v1205 = vpop.f32.mrb[0].mxu0
        %v1206 = vadd.f32 %v528, %v1205
        %v1207 = vpop.f32.mrb[0].mxu0
        %1208 = vmatprep.mubr.bf16.mxu0 0
        %1209 = vmatmul.mubr.bf16.gmra.mrb[0].mxu0 %v911
        %v1210 = vpop.f32.mrb[0].mxu0
        %v1211 = vadd.f32 %v528, %v1210
        %v1212 = vpop.f32.mrb[0].mxu0
        %v1213 = vpop.f32.mrb[0].mxu0
        %v1214 = vadd.f32 %v528, %v1213
        %v1215 = vpop.f32.mrb[0].mxu0
        %1216 = vmatprep.mubr.bf16.mxu0 0
        %1217 = vmatmul.mubr.bf16.gmra.mrb[0].mxu0 %v914
        %v1218 = vpop.f32.mrb[0].mxu0
        %v1219 = vadd.f32 %v528, %v1218
        %v1220 = vpop.f32.mrb[0].mxu0
        %v1221 = vpop.f32.mrb[0].mxu0
        %v1222 = vadd.f32 %v528, %v1221
        %v1223 = vpop.f32.mrb[0].mxu0
        %1224 = vmatprep.mubr.bf16.mxu0 0
        %1225 = vmatmul.mubr.bf16.gmra.mrb[0].mxu0 %v917
        %v1226 = vpop.f32.mrb[0].mxu0
        %v1227 = vadd.f32 %v528, %v1226
        %v1228 = vpop.f32.mrb[0].mxu0
        %v1229 = vpop.f32.mrb[0].mxu0
        %v1230 = vadd.f32 %v528, %v1229
        %v1231 = vpop.f32.mrb[0].mxu0
        %1232 = vmatprep.mubr.bf16.mxu0 0
        %1233 = vmatmul.mubr.bf16.gmra.mrb[0].mxu0 %v920
        %v1234 = vpop.f32.mrb[0].mxu0
        %v1235 = vadd.f32 %v528, %v1234
        %v1236 = vpop.f32.mrb[0].mxu0
        %v1237 = vpop.f32.mrb[0].mxu0
        %v1238 = vadd.f32 %v528, %v1237
        %v1239 = vpop.f32.mrb[0].mxu0
        %1240 = vmatprep.mubr.bf16.mxu0 0
        %1241 = vmatmul.mubr.bf16.gmra.mrb[0].mxu0 %v923
        %v1242 = vpop.f32.mrb[0].mxu0
        %v1243 = vadd.f32 %v528, %v1242
        %v1244 = vpop.f32.mrb[0].mxu0
        %v1245 = vpop.f32.mrb[0].mxu0
        %v1246 = vadd.f32 %v528, %v1245
        %v1247 = vpop.f32.mrb[0].mxu0
        %1248 = vmatprep.mubr.bf16.mxu0 0
        %1249 = vmatmul.mubr.bf16.gmra.mrb[0].mxu0 %v926
        %v1250 = vpop.f32.mrb[0].mxu0
        %v1251 = vadd.f32 %v528, %v1250
        %v1252 = vpop.f32.mrb[0].mxu0
        %v1253 = vpop.f32.mrb[0].mxu0
        %v1254 = vadd.f32 %v528, %v1253
        %v1255 = vpop.f32.mrb[0].mxu0
        %1256 = vmatprep.mubr.bf16.mxu0 0
        %1257 = vmatmul.mubr.bf16.gmra.mrb[0].mxu0 %v929
        %v1258 = vpop.f32.mrb[0].mxu0
        %v1259 = vadd.f32 %v528, %v1258
        %v1260 = vpop.f32.mrb[0].mxu0
        %v1261 = vpop.f32.mrb[0].mxu0
        %v1262 = vadd.f32 %v528, %v1261
        %v1263 = vpop.f32.mrb[0].mxu0
        %1264 = vmatprep.mubr.bf16.mxu0 0
        %1265 = vmatmul.mubr.bf16.gmra.mrb[0].mxu0 %v932
        %v1266 = vpop.f32.mrb[0].mxu0
        %v1267 = vadd.f32 %v528, %v1266
        %v1268 = vpop.f32.mrb[0].mxu0
        %v1269 = vpop.f32.mrb[0].mxu0
        %v1270 = vadd.f32 %v528, %v1269
        %v1271 = vpop.f32.mrb[0].mxu0
        %1272 = vmatprep.mubr.bf16.mxu0 0
        %1273 = vmatmul.mubr.bf16.gmra.mrb[0].mxu0 %v935
        %v1274 = vpop.f32.mrb[0].mxu0
        %v1275 = vadd.f32 %v528, %v1274
        %v1276 = vpop.f32.mrb[0].mxu0
        %v1277 = vpop.f32.mrb[0].mxu0
        %v1278 = vadd.f32 %v528, %v1277
        %v1279 = vpop.f32.mrb[0].mxu0
        %1280 = vmatprep.mubr.bf16.mxu0 0
        %1281 = vmatmul.mubr.bf16.gmra.mrb[0].mxu0 %v938
        %v1282 = vpop.f32.mrb[0].mxu0
        %v1283 = vadd.f32 %v528, %v1282
        %v1284 = vpop.f32.mrb[0].mxu0
        %v1285 = vpop.f32.mrb[0].mxu0
        %v1286 = vadd.f32 %v528, %v1285
        %v1287 = vpop.f32.mrb[0].mxu0
        %1288 = vmatprep.mubr.bf16.mxu0 0
        %1289 = vmatmul.mubr.bf16.gmra.mrb[0].mxu0 %v941
        %v1290 = vpop.f32.mrb[0].mxu0
        %v1291 = vadd.f32 %v528, %v1290
        %v1292 = vpop.f32.mrb[0].mxu0
        %v1293 = vpop.f32.mrb[0].mxu0
        %v1294 = vadd.f32 %v528, %v1293
        %v1295 = vpop.f32.mrb[0].mxu0
        %1296 = vmatprep.mubr.bf16.mxu0 0
        %1297 = vmatmul.mubr.bf16.gmra.mrb[0].mxu0 %v944
        %v1298 = vpop.f32.mrb[0].mxu0
        %v1299 = vadd.f32 %v528, %v1298
        %v1300 = vpop.f32.mrb[0].mxu0
        %v1301 = vpop.f32.mrb[0].mxu0
        %v1302 = vadd.f32 %v528, %v1301
        %v1303 = vpop.f32.mrb[0].mxu0
        %1304 = vmatprep.mubr.bf16.mxu0 0
        %1305 = vmatmul.mubr.bf16.gmra.mrb[0].mxu0 %v947
        %v1306 = vpop.f32.mrb[0].mxu0
        %v1307 = vadd.f32 %v528, %v1306
        %v1308 = vpop.f32.mrb[0].mxu0
        %v1309 = vpop.f32.mrb[0].mxu0
        %v1310 = vadd.f32 %v528, %v1309
        %v1311 = vpop.f32.mrb[0].mxu0
        %1312 = vmatprep.mubr.bf16.mxu0 0
        %1313 = vmatmul.mubr.bf16.gmra.mrb[0].mxu0 %v950
        %v1314 = vpop.f32.mrb[0].mxu0
        %v1315 = vadd.f32 %v528, %v1314
        %v1316 = vpop.f32.mrb[0].mxu0
        %v1317 = vpop.f32.mrb[0].mxu0
        %v1318 = vadd.f32 %v528, %v1317
        %v1319 = vpop.f32.mrb[0].mxu0
        %1320 = vmatprep.mubr.bf16.mxu0 0
        %1321 = vmatmul.mubr.bf16.gmra.mrb[0].mxu0 %v953
        %v1322 = vpop.f32.mrb[0].mxu0
        %v1323 = vadd.f32 %v528, %v1322
        %v1324 = vpop.f32.mrb[0].mxu0
        %v1325 = vpop.f32.mrb[0].mxu0
        %v1326 = vadd.f32 %v528, %v1325
        %v1327 = vpop.f32.mrb[0].mxu0
        %1328 = vmatprep.mubr.bf16.mxu0 0
        %1329 = vmatmul.mubr.bf16.gmra.mrb[0].mxu0 %v956
        %v1330 = vpop.f32.mrb[0].mxu0
        %v1331 = vadd.f32 %v528, %v1330
        %v1332 = vpop.f32.mrb[0].mxu0
        %v1333 = vpop.f32.mrb[0].mxu0
        %v1334 = vadd.f32 %v528, %v1333
        %v1335 = vpop.f32.mrb[0].mxu0
        %1336 = vmatprep.mubr.bf16.mxu0 0
        %1337 = vmatmul.mubr.bf16.gmra.mrb[0].mxu0 %v959
        %v1338 = vpop.f32.mrb[0].mxu0
        %v1339 = vadd.f32 %v528, %v1338
        %v1340 = vpop.f32.mrb[0].mxu0
        %v1341 = vpop.f32.mrb[0].mxu0
        %v1342 = vadd.f32 %v528, %v1341
        %v1343 = vpop.f32.mrb[0].mxu0
        %1344 = vmatprep.mubr.bf16.mxu0 0
        %1345 = vmatmul.mubr.bf16.gmra.mrb[0].mxu0 %v962
        %v1346 = vpop.f32.mrb[0].mxu0
        %v1347 = vadd.f32 %v528, %v1346
        %v1348 = vpop.f32.mrb[0].mxu0
        %v1349 = vpop.f32.mrb[0].mxu0
        %v1350 = vadd.f32 %v528, %v1349
        %v1351 = vpop.f32.mrb[0].mxu0
        %1352 = vmatprep.mubr.bf16.mxu0 0
        %1353 = vmatmul.mubr.bf16.gmra.mrb[0].mxu0 %v965
        %v1354 = vpop.f32.mrb[0].mxu0
        %v1355 = vadd.f32 %v528, %v1354
        %v1356 = vpop.f32.mrb[0].mxu0
        %v1357 = vpop.f32.mrb[0].mxu0
        %v1358 = vadd.f32 %v528, %v1357
        %v1359 = vpop.f32.mrb[0].mxu0
        %1360 = vmatprep.mubr.bf16.mxu0 0
        %1361 = vmatmul.mubr.bf16.gmra.mrb[0].mxu0 %v968
        %v1362 = vpop.f32.mrb[0].mxu0
        %v1363 = vadd.f32 %v528, %v1362
        %v1364 = vpop.f32.mrb[0].mxu0
        %v1365 = vpop.f32.mrb[0].mxu0
        %v1366 = vadd.f32 %v528, %v1365
        %v1367 = vpop.f32.mrb[0].mxu0
        %1368 = vmatprep.mubr.bf16.mxu0 0
        %1369 = vmatmul.mubr.bf16.gmra.mrb[0].mxu0 %v971
        %v1370 = vpop.f32.mrb[0].mxu0
        %v1371 = vadd.f32 %v528, %v1370
        %v1372 = vpop.f32.mrb[0].mxu0
        %v1373 = vpop.f32.mrb[0].mxu0
        %v1374 = vadd.f32 %v528, %v1373
        %v1375 = vpop.f32.mrb[0].mxu0
        %1376 = vmatprep.mubr.bf16.mxu0 0
        %1377 = vmatmul.mubr.bf16.gmra.mrb[0].mxu0 %v974
        %v1378 = vpop.f32.mrb[0].mxu0
        %v1379 = vadd.f32 %v528, %v1378
        %v1380 = vpop.f32.mrb[0].mxu0
        %v1381 = vpop.f32.mrb[0].mxu0
        %v1382 = vadd.f32 %v528, %v1381
        %v1383 = vpop.f32.mrb[0].mxu0
        %1384 = vmatprep.mubr.bf16.mxu0 0
        %1385 = vmatmul.mubr.bf16.gmra.mrb[0].mxu0 %v977
        %v1386 = vpop.f32.mrb[0].mxu0
        %v1387 = vadd.f32 %v528, %v1386
        %v1388 = vpop.f32.mrb[0].mxu0
        %v1389 = vpop.f32.mrb[0].mxu0
        %v1390 = vadd.f32 %v528, %v1389
        %v1391 = vpop.f32.mrb[0].mxu0
        %1392 = vmatprep.mubr.bf16.mxu0 0
        %1393 = vmatmul.mubr.bf16.gmra.mrb[0].mxu0 %v980
        %v1394 = vpop.f32.mrb[0].mxu0
        %v1395 = vadd.f32 %v528, %v1394
        %v1396 = vpop.f32.mrb[0].mxu0
        %v1397 = vpop.f32.mrb[0].mxu0
        %v1398 = vadd.f32 %v528, %v1397
        %v1399 = vpop.f32.mrb[0].mxu0
        %1400 = vmatprep.mubr.bf16.mxu0 0
        %1401 = vmatmul.mubr.bf16.gmra.mrb[0].mxu0 %v983
        %v1402 = vpop.f32.mrb[0].mxu0
        %v1403 = vadd.f32 %v528, %v1402
        %v1404 = vpop.f32.mrb[0].mxu0
        %v1405 = vpop.f32.mrb[0].mxu0
        %v1406 = vadd.f32 %v528, %v1405
        %v1407 = vpop.f32.mrb[0].mxu0
        %1408 = vmatprep.mubr.bf16.mxu0 0
        %1409 = vmatmul.mubr.bf16.gmra.mrb[0].mxu0 %v986
        %v1410 = vpop.f32.mrb[0].mxu0
        %v1411 = vadd.f32 %v528, %v1410
        %v1412 = vpop.f32.mrb[0].mxu0
        %v1413 = vpop.f32.mrb[0].mxu0
        %v1414 = vadd.f32 %v528, %v1413
        %v1415 = vpop.f32.mrb[0].mxu0
        %1416 = vmatprep.mubr.bf16.mxu0 0
        %1417 = vmatmul.mubr.bf16.gmra.mrb[0].mxu0 %v989
        %v1418 = vpop.f32.mrb[0].mxu0
        %v1419 = vadd.f32 %v528, %v1418
        %v1420 = vpop.f32.mrb[0].mxu0
        %v1421 = vpop.f32.mrb[0].mxu0
        %v1422 = vadd.f32 %v528, %v1421
        %v1423 = vpop.f32.mrb[0].mxu0
        %1424 = vmatprep.mubr.bf16.mxu0 0
        %1425 = vmatmul.mubr.bf16.gmra.mrb[0].mxu0 %v992
        %v1426 = vpop.f32.mrb[0].mxu0
        %v1427 = vadd.f32 %v528, %v1426
        %v1428 = vpop.f32.mrb[0].mxu0
        %v1429 = vpop.f32.mrb[0].mxu0
        %v1430 = vadd.f32 %v528, %v1429
        %v1431 = vpop.f32.mrb[0].mxu0
        %1432 = vmatprep.mubr.bf16.mxu0 0
        %1433 = vmatmul.mubr.bf16.gmra.mrb[0].mxu0 %v995
        %v1434 = vpop.f32.mrb[0].mxu0
        %v1435 = vadd.f32 %v528, %v1434
        %v1436 = vpop.f32.mrb[0].mxu0
        %v1437 = vpop.f32.mrb[0].mxu0
        %v1438 = vadd.f32 %v528, %v1437
        %v1439 = vpop.f32.mrb[0].mxu0
        %1440 = vmatprep.mubr.bf16.mxu0 0
        %1441 = vmatmul.mubr.bf16.gmra.mrb[0].mxu0 %v998
        %v1442 = vpop.f32.mrb[0].mxu0
        %v1443 = vadd.f32 %v528, %v1442
        %v1444 = vpop.f32.mrb[0].mxu0
        %v1445 = vpop.f32.mrb[0].mxu0
        %v1446 = vadd.f32 %v528, %v1445
        %v1447 = vpop.f32.mrb[0].mxu0
        %1448 = vmatprep.mubr.bf16.mxu0 0
        %1449 = vmatmul.mubr.bf16.gmra.mrb[0].mxu0 %v1001
        %v1450 = vpop.f32.mrb[0].mxu0
        %v1451 = vadd.f32 %v528, %v1450
        %v1452 = vpop.f32.mrb[0].mxu0
        %v1453 = vpop.f32.mrb[0].mxu0
        %v1454 = vadd.f32 %v528, %v1453
        %v1455 = vpop.f32.mrb[0].mxu0
        %1456 = vmatprep.mubr.bf16.mxu0 0
        %1457 = vmatmul.mubr.bf16.gmra.mrb[0].mxu0 %v1004
        %v1458 = vpop.f32.mrb[0].mxu0
        %v1459 = vadd.f32 %v528, %v1458
        %v1460 = vpop.f32.mrb[0].mxu0
        %v1461 = vpop.f32.mrb[0].mxu0
        %v1462 = vadd.f32 %v528, %v1461
        %v1463 = vpop.f32.mrb[0].mxu0
        %1464 = vmatprep.mubr.bf16.mxu0 0
        %1465 = vmatmul.mubr.bf16.gmra.mrb[0].mxu0 %v1007
        %v1466 = vpop.f32.mrb[0].mxu0
        %v1467 = vadd.f32 %v528, %v1466
        %v1468 = vpop.f32.mrb[0].mxu0
        %v1469 = vpop.f32.mrb[0].mxu0
        %v1470 = vadd.f32 %v528, %v1469
        %v1471 = vpop.f32.mrb[0].mxu0
        %1472 = vmatprep.mubr.bf16.mxu0 0
        %1473 = vmatmul.mubr.bf16.gmra.mrb[0].mxu0 %v1010
        %v1474 = vpop.f32.mrb[0].mxu0
        %v1475 = vadd.f32 %v528, %v1474
        %v1476 = vpop.f32.mrb[0].mxu0
        %v1477 = vpop.f32.mrb[0].mxu0
        %v1478 = vadd.f32 %v528, %v1477
        %v1479 = vpop.f32.mrb[0].mxu0
        %1480 = vmatprep.mubr.bf16.mxu0 0
        %1481 = vmatmul.mubr.bf16.gmra.mrb[0].mxu0 %v1013
        %v1482 = vpop.f32.mrb[0].mxu0
        %v1483 = vadd.f32 %v528, %v1482
        %v1484 = vpop.f32.mrb[0].mxu0
        %v1485 = vpop.f32.mrb[0].mxu0
        %v1486 = vadd.f32 %v528, %v1485
        %v1487 = vpop.f32.mrb[0].mxu0
        %1488 = vmatprep.mubr.bf16.mxu0 0
        %1489 = vmatmul.mubr.bf16.gmra.mrb[0].mxu0 %v1016
        %v1490 = vpop.f32.mrb[0].mxu0
        %v1491 = vadd.f32 %v528, %v1490
        %v1492 = vpop.f32.mrb[0].mxu0
        %v1493 = vpop.f32.mrb[0].mxu0
        %v1494 = vadd.f32 %v528, %v1493
        %v1495 = vpop.f32.mrb[0].mxu0
        %1496 = vmatprep.mubr.bf16.mxu0 0
        %1497 = vmatmul.mubr.bf16.gmra.mrb[0].mxu0 %v1019
        %v1498 = vpop.f32.mrb[0].mxu0
        %v1499 = vadd.f32 %v528, %v1498
        %v1500 = vpop.f32.mrb[0].mxu0
        %v1501 = vpop.f32.mrb[0].mxu0
        %v1502 = vadd.f32 %v528, %v1501
        %v1503 = vpop.f32.mrb[0].mxu0
        %1504 = vmatprep.mubr.bf16.mxu0 0
        %1505 = vmatmul.mubr.bf16.gmra.mrb[0].mxu0 %v1022
        %v1506 = vpop.f32.mrb[0].mxu0
        %v1507 = vadd.f32 %v528, %v1506
        %v1508 = vpop.f32.mrb[0].mxu0
        %v1509 = vpop.f32.mrb[0].mxu0
        %v1510 = vadd.f32 %v528, %v1509
        %v1511 = vpop.f32.mrb[0].mxu0
        %1512 = vmatprep.mubr.bf16.mxu0 0
        %1513 = vmatmul.mubr.bf16.gmra.mrb[0].mxu0 %v1025
        %v1514 = vpop.f32.mrb[0].mxu0
        %v1515 = vadd.f32 %v528, %v1514
        %v1516 = vpop.f32.mrb[0].mxu0
        %v1517 = vpop.f32.mrb[0].mxu0
        %v1518 = vadd.f32 %v528, %v1517
        %v1519 = vpop.f32.mrb[0].mxu0
        %1520 = vmatprep.mubr.bf16.mxu0 0
        %1521 = vmatmul.mubr.bf16.gmra.mrb[0].mxu0 %v1028
        %v1522 = vpop.f32.mrb[0].mxu0
        %v1523 = vadd.f32 %v528, %v1522
        %v1524 = vpop.f32.mrb[0].mxu0
        %v1525 = vpop.f32.mrb[0].mxu0
        %v1526 = vadd.f32 %v528, %v1525
        %v1527 = vpop.f32.mrb[0].mxu0
        %1528 = vmatprep.mubr.bf16.mxu0 0
        %1529 = vmatmul.mubr.bf16.gmra.mrb[0].mxu0 %v1031
        %v1530 = vpop.f32.mrb[0].mxu0
        %v1531 = vadd.f32 %v528, %v1530
        %v1532 = vpop.f32.mrb[0].mxu0
        %v1533 = vpop.f32.mrb[0].mxu0
        %v1534 = vadd.f32 %v528, %v1533
        %v1535 = vpop.f32.mrb[0].mxu0
        %1536 = vmatprep.mubr.bf16.mxu0 0
        %1537 = vmatmul.mubr.bf16.gmra.mrb[0].mxu0 %v1034
        %v1538 = vpop.f32.mrb[0].mxu0
        %v1539 = vadd.f32 %v528, %v1538
        %v1540 = vpop.f32.mrb[0].mxu0
        %v1541 = vpop.f32.mrb[0].mxu0
        %v1542 = vadd.f32 %v528, %v1541
        %v1543 = vpop.f32.mrb[0].mxu0
        %1544 = vmatprep.mubr.bf16.mxu0 0
        %1545 = vmatmul.mubr.bf16.gmra.mrb[0].mxu0 %v1037
        %v1546 = vpop.f32.mrb[0].mxu0
        %v1547 = vadd.f32 %v528, %v1546
        %v1548 = vpop.f32.mrb[0].mxu0
        %v1549 = vpop.f32.mrb[0].mxu0
        %v1550 = vadd.f32 %v528, %v1549
        %v1551 = vpop.f32.mrb[0].mxu0
        %1552 = vmatprep.mubr.bf16.mxu0 0
        %1553 = vmatmul.mubr.bf16.gmra.mrb[0].mxu0 %v1040
        %v1554 = vpop.f32.mrb[0].mxu0
        %v1555 = vadd.f32 %v528, %v1554
        %v1556 = vpop.f32.mrb[0].mxu0
        %v1557 = vpop.f32.mrb[0].mxu0
        %v1558 = vadd.f32 %v528, %v1557
        %v1559 = vpop.f32.mrb[0].mxu0
        %1560 = vmatprep.mubr.bf16.mxu0 0
        %1561 = vmatmul.mubr.bf16.gmra.mrb[0].mxu0 %v1043
        %v1562 = vpop.f32.mrb[0].mxu0
        %v1563 = vadd.f32 %v528, %v1562
        %v1564 = vpop.f32.mrb[0].mxu0
        %v1565 = vpop.f32.mrb[0].mxu0
        %v1566 = vadd.f32 %v528, %v1565
        %v1567 = vpop.f32.mrb[0].mxu0
        %1568 = vmatprep.mubr.bf16.mxu0 0
        %1569 = vmatmul.mubr.bf16.gmra.mrb[0].mxu0 %v1046
        %v1570 = vpop.f32.mrb[0].mxu0
        %v1571 = vadd.f32 %v528, %v1570
        %v1572 = vpop.f32.mrb[0].mxu0
        %v1573 = vpop.f32.mrb[0].mxu0
        %v1574 = vadd.f32 %v528, %v1573
        %v1575 = vpop.f32.mrb[0].mxu0
        %1576 = vmatprep.mubr.bf16.mxu0 0
        %1577 = vmatmul.mubr.bf16.gmra.mrb[0].mxu0 %v1049
        %v1578 = vpop.f32.mrb[0].mxu0
        %v1579 = vadd.f32 %v528, %v1578
        %v1580 = vpop.f32.mrb[0].mxu0
        %v1581 = vpop.f32.mrb[0].mxu0
        %v1582 = vadd.f32 %v528, %v1581
        %v1583 = vpop.f32.mrb[0].mxu0
        %1584 = vmatprep.mubr.bf16.mxu0 0
        %1585 = vmatmul.mubr.bf16.gmra.mrb[0].mxu0 %v1052
        %v1586 = vpop.f32.mrb[0].mxu0
        %v1587 = vadd.f32 %v528, %v1586
        %v1588 = vpop.f32.mrb[0].mxu0
        %v1589 = vpop.f32.mrb[0].mxu0
        %v1590 = vadd.f32 %v528, %v1589
        %v1591 = vpop.f32.mrb[0].mxu0
        %1592 = vmatprep.mubr.bf16.mxu0 0
        %1593 = vmatmul.mubr.bf16.gmra.mrb[0].mxu0 %v1055
        %v1594 = vpop.f32.mrb[0].mxu0
        %v1595 = vadd.f32 %v528, %v1594
        %v1596 = vpop.f32.mrb[0].mxu0
        %v1597 = vpop.f32.mrb[0].mxu0
        %v1598 = vadd.f32 %v528, %v1597
        %v1599 = vpop.f32.mrb[0].mxu0
        %1600 = vmatprep.mubr.bf16.mxu0 0
        %1601 = vmatmul.mubr.bf16.gmra.mrb[0].mxu0 %v1058
        %v1602 = vpop.f32.mrb[0].mxu0
        %v1603 = vadd.f32 %v528, %v1602
        %v1604 = vpop.f32.mrb[0].mxu0
        %v1605 = vpop.f32.mrb[0].mxu0
        %v1606 = vadd.f32 %v528, %v1605
        %v1607 = vpop.f32.mrb[0].mxu0
        %1608 = vdwg.mxu0
        %v1609 = vmul.f32 %v1099, 0.1
        %v1610 = vmul.f32 %v1102, 0.1
        %v1611 = vmul.f32 %v1107, 0.1
        %v1612 = vmul.f32 %v1110, 0.1
        %v1613 = vmul.f32 %v1115, 0.1
        %v1614 = vmul.f32 %v1118, 0.1
        %v1615 = vmul.f32 %v1123, 0.1
        %v1616 = vmul.f32 %v1126, 0.1
        %v1617 = vmul.f32 %v1131, 0.1
        %v1618 = vmul.f32 %v1134, 0.1
        %v1619 = vmul.f32 %v1139, 0.1
        %v1620 = vmul.f32 %v1142, 0.1
        %v1621 = vmul.f32 %v1147, 0.1
        %v1622 = vmul.f32 %v1150, 0.1
        %v1623 = vmul.f32 %v1155, 0.1
        %v1624 = vmul.f32 %v1158, 0.1
        %v1625 = vmul.f32 %v1163, 0.1
        %v1626 = vmul.f32 %v1166, 0.1
        %v1627 = vmul.f32 %v1171, 0.1
        %v1628 = vmul.f32 %v1174, 0.1
        %v1629 = vmul.f32 %v1179, 0.1
        %v1630 = vmul.f32 %v1182, 0.1
        %v1631 = vmul.f32 %v1187, 0.1
        %v1632 = vmul.f32 %v1190, 0.1
        %v1633 = vmul.f32 %v1195, 0.1
        %v1634 = vmul.f32 %v1198, 0.1
        %v1635 = vmul.f32 %v1203, 0.1
        %v1636 = vmul.f32 %v1206, 0.1
        %v1637 = vmul.f32 %v1211, 0.1
        %v1638 = vmul.f32 %v1214, 0.1
        %v1639 = vmul.f32 %v1219, 0.1
        %v1640 = vmul.f32 %v1222, 0.1
        %v1641 = vmul.f32 %v1227, 0.1
        %v1642 = vmul.f32 %v1230, 0.1
        %v1643 = vmul.f32 %v1235, 0.1
        %v1644 = vmul.f32 %v1238, 0.1
        %v1645 = vmul.f32 %v1243, 0.1
        %v1646 = vmul.f32 %v1246, 0.1
        %v1647 = vmul.f32 %v1251, 0.1
        %v1648 = vmul.f32 %v1254, 0.1
        %v1649 = vmul.f32 %v1259, 0.1
        %v1650 = vmul.f32 %v1262, 0.1
        %v1651 = vmul.f32 %v1267, 0.1
        %v1652 = vmul.f32 %v1270, 0.1
        %v1653 = vmul.f32 %v1275, 0.1
        %v1654 = vmul.f32 %v1278, 0.1
        %v1655 = vmul.f32 %v1283, 0.1
        %v1656 = vmul.f32 %v1286, 0.1
        %v1657 = vmul.f32 %v1291, 0.1
        %v1658 = vmul.f32 %v1294, 0.1
        %v1659 = vmul.f32 %v1299, 0.1
        %v1660 = vmul.f32 %v1302, 0.1
        %v1661 = vmul.f32 %v1307, 0.1
        %v1662 = vmul.f32 %v1310, 0.1
        %v1663 = vmul.f32 %v1315, 0.1
        %v1664 = vmul.f32 %v1318, 0.1
        %v1665 = vmul.f32 %v1323, 0.1
        %v1666 = vmul.f32 %v1326, 0.1
        %v1667 = vmul.f32 %v1331, 0.1
        %v1668 = vmul.f32 %v1334, 0.1
        %v1669 = vmul.f32 %v1339, 0.1
        %v1670 = vmul.f32 %v1342, 0.1
        %v1671 = vmul.f32 %v1347, 0.1
        %v1672 = vmul.f32 %v1350, 0.1
        %v1673 = vmul.f32 %v1355, 0.1
        %v1674 = vmul.f32 %v1358, 0.1
        %v1675 = vmul.f32 %v1363, 0.1
        %v1676 = vmul.f32 %v1366, 0.1
        %v1677 = vmul.f32 %v1371, 0.1
        %v1678 = vmul.f32 %v1374, 0.1
        %v1679 = vmul.f32 %v1379, 0.1
        %v1680 = vmul.f32 %v1382, 0.1
        %v1681 = vmul.f32 %v1387, 0.1
        %v1682 = vmul.f32 %v1390, 0.1
        %v1683 = vmul.f32 %v1395, 0.1
        %v1684 = vmul.f32 %v1398, 0.1
        %v1685 = vmul.f32 %v1403, 0.1
        %v1686 = vmul.f32 %v1406, 0.1
        %v1687 = vmul.f32 %v1411, 0.1
        %v1688 = vmul.f32 %v1414, 0.1
        %v1689 = vmul.f32 %v1419, 0.1
        %v1690 = vmul.f32 %v1422, 0.1
        %v1691 = vmul.f32 %v1427, 0.1
        %v1692 = vmul.f32 %v1430, 0.1
        %v1693 = vmul.f32 %v1435, 0.1
        %v1694 = vmul.f32 %v1438, 0.1
        %v1695 = vmul.f32 %v1443, 0.1
        %v1696 = vmul.f32 %v1446, 0.1
        %v1697 = vmul.f32 %v1451, 0.1
        %v1698 = vmul.f32 %v1454, 0.1
        %v1699 = vmul.f32 %v1459, 0.1
        %v1700 = vmul.f32 %v1462, 0.1
        %v1701 = vmul.f32 %v1467, 0.1
        %v1702 = vmul.f32 %v1470, 0.1
        %v1703 = vmul.f32 %v1475, 0.1
        %v1704 = vmul.f32 %v1478, 0.1
        %v1705 = vmul.f32 %v1483, 0.1
        %v1706 = vmul.f32 %v1486, 0.1
        %v1707 = vmul.f32 %v1491, 0.1
        %v1708 = vmul.f32 %v1494, 0.1
        %v1709 = vmul.f32 %v1499, 0.1
        %v1710 = vmul.f32 %v1502, 0.1
        %v1711 = vmul.f32 %v1507, 0.1
        %v1712 = vmul.f32 %v1510, 0.1
        %v1713 = vmul.f32 %v1515, 0.1
        %v1714 = vmul.f32 %v1518, 0.1
        %v1715 = vmul.f32 %v1523, 0.1
        %v1716 = vmul.f32 %v1526, 0.1
        %v1717 = vmul.f32 %v1531, 0.1
        %v1718 = vmul.f32 %v1534, 0.1
        %v1719 = vmul.f32 %v1539, 0.1
        %v1720 = vmul.f32 %v1542, 0.1
        %v1721 = vmul.f32 %v1547, 0.1
        %v1722 = vmul.f32 %v1550, 0.1
        %v1723 = vmul.f32 %v1555, 0.1
        %v1724 = vmul.f32 %v1558, 0.1
        %v1725 = vmul.f32 %v1563, 0.1
        %v1726 = vmul.f32 %v1566, 0.1
        %v1727 = vmul.f32 %v1571, 0.1
        %v1728 = vmul.f32 %v1574, 0.1
        %v1729 = vmul.f32 %v1579, 0.1
        %v1730 = vmul.f32 %v1582, 0.1
        %v1731 = vmul.f32 %v1587, 0.1
        %v1732 = vmul.f32 %v1590, 0.1
        %v1733 = vmul.f32 %v1595, 0.1
        %v1734 = vmul.f32 %v1598, 0.1
        %v1735 = vmul.f32 %v1603, 0.1
        %v1736 = vmul.f32 %v1606, 0.1
        %v1737 = vmax.f32 %v1099, %v1609
        %v1738 = vmax.f32 %v1102, %v1610
        %v1739 = vmax.f32 %v1107, %v1611
        %v1740 = vmax.f32 %v1110, %v1612
        %v1741 = vmax.f32 %v1115, %v1613
        %v1742 = vmax.f32 %v1118, %v1614
        %v1743 = vmax.f32 %v1123, %v1615
        %v1744 = vmax.f32 %v1126, %v1616
        %v1745 = vmax.f32 %v1131, %v1617
        %v1746 = vmax.f32 %v1134, %v1618
        %v1747 = vmax.f32 %v1139, %v1619
        %v1748 = vmax.f32 %v1142, %v1620
        %v1749 = vmax.f32 %v1147, %v1621
        %v1750 = vmax.f32 %v1150, %v1622
        %v1751 = vmax.f32 %v1155, %v1623
        %v1752 = vmax.f32 %v1158, %v1624
        %v1753 = vmax.f32 %v1163, %v1625
        %v1754 = vmax.f32 %v1166, %v1626
        %v1755 = vmax.f32 %v1171, %v1627
        %v1756 = vmax.f32 %v1174, %v1628
        %v1757 = vmax.f32 %v1179, %v1629
        %v1758 = vmax.f32 %v1182, %v1630
        %v1759 = vmax.f32 %v1187, %v1631
        %v1760 = vmax.f32 %v1190, %v1632
        %v1761 = vmax.f32 %v1195, %v1633
        %v1762 = vmax.f32 %v1198, %v1634
        %v1763 = vmax.f32 %v1203, %v1635
        %v1764 = vmax.f32 %v1206, %v1636
        %v1765 = vmax.f32 %v1211, %v1637
        %v1766 = vmax.f32 %v1214, %v1638
        %v1767 = vmax.f32 %v1219, %v1639
        %v1768 = vmax.f32 %v1222, %v1640
        %v1769 = vmax.f32 %v1227, %v1641
        %v1770 = vmax.f32 %v1230, %v1642
        %v1771 = vmax.f32 %v1235, %v1643
        %v1772 = vmax.f32 %v1238, %v1644
        %v1773 = vmax.f32 %v1243, %v1645
        %v1774 = vmax.f32 %v1246, %v1646
        %v1775 = vmax.f32 %v1251, %v1647
        %v1776 = vmax.f32 %v1254, %v1648
        %v1777 = vmax.f32 %v1259, %v1649
        %v1778 = vmax.f32 %v1262, %v1650
        %v1779 = vmax.f32 %v1267, %v1651
        %v1780 = vmax.f32 %v1270, %v1652
        %v1781 = vmax.f32 %v1275, %v1653
        %v1782 = vmax.f32 %v1278, %v1654
        %v1783 = vmax.f32 %v1283, %v1655
        %v1784 = vmax.f32 %v1286, %v1656
        %v1785 = vmax.f32 %v1291, %v1657
        %v1786 = vmax.f32 %v1294, %v1658
        %v1787 = vmax.f32 %v1299, %v1659
        %v1788 = vmax.f32 %v1302, %v1660
        %v1789 = vmax.f32 %v1307, %v1661
        %v1790 = vmax.f32 %v1310, %v1662
        %v1791 = vmax.f32 %v1315, %v1663
        %v1792 = vmax.f32 %v1318, %v1664
        %v1793 = vmax.f32 %v1323, %v1665
        %v1794 = vmax.f32 %v1326, %v1666
        %v1795 = vmax.f32 %v1331, %v1667
        %v1796 = vmax.f32 %v1334, %v1668
        %v1797 = vmax.f32 %v1339, %v1669
        %v1798 = vmax.f32 %v1342, %v1670
        %v1799 = vmax.f32 %v1347, %v1671
        %v1800 = vmax.f32 %v1350, %v1672
        %v1801 = vmax.f32 %v1355, %v1673
        %v1802 = vmax.f32 %v1358, %v1674
        %v1803 = vmax.f32 %v1363, %v1675
        %v1804 = vmax.f32 %v1366, %v1676
        %v1805 = vmax.f32 %v1371, %v1677
        %v1806 = vmax.f32 %v1374, %v1678
        %v1807 = vmax.f32 %v1379, %v1679
        %v1808 = vmax.f32 %v1382, %v1680
        %v1809 = vmax.f32 %v1387, %v1681
        %v1810 = vmax.f32 %v1390, %v1682
        %v1811 = vmax.f32 %v1395, %v1683
        %v1812 = vmax.f32 %v1398, %v1684
        %v1813 = vmax.f32 %v1403, %v1685
        %v1814 = vmax.f32 %v1406, %v1686
        %v1815 = vmax.f32 %v1411, %v1687
        %v1816 = vmax.f32 %v1414, %v1688
        %v1817 = vmax.f32 %v1419, %v1689
        %v1818 = vmax.f32 %v1422, %v1690
        %v1819 = vmax.f32 %v1427, %v1691
        %v1820 = vmax.f32 %v1430, %v1692
        %v1821 = vmax.f32 %v1435, %v1693
        %v1822 = vmax.f32 %v1438, %v1694
        %v1823 = vmax.f32 %v1443, %v1695
        %v1824 = vmax.f32 %v1446, %v1696
        %v1825 = vmax.f32 %v1451, %v1697
        %v1826 = vmax.f32 %v1454, %v1698
        %v1827 = vmax.f32 %v1459, %v1699
        %v1828 = vmax.f32 %v1462, %v1700
        %v1829 = vmax.f32 %v1467, %v1701
        %v1830 = vmax.f32 %v1470, %v1702
        %v1831 = vmax.f32 %v1475, %v1703
        %v1832 = vmax.f32 %v1478, %v1704
        %v1833 = vmax.f32 %v1483, %v1705
        %v1834 = vmax.f32 %v1486, %v1706
        %v1835 = vmax.f32 %v1491, %v1707
        %v1836 = vmax.f32 %v1494, %v1708
        %v1837 = vmax.f32 %v1499, %v1709
        %v1838 = vmax.f32 %v1502, %v1710
        %v1839 = vmax.f32 %v1507, %v1711
        %v1840 = vmax.f32 %v1510, %v1712
        %v1841 = vmax.f32 %v1515, %v1713
        %v1842 = vmax.f32 %v1518, %v1714
        %v1843 = vmax.f32 %v1523, %v1715
        %v1844 = vmax.f32 %v1526, %v1716
        %v1845 = vmax.f32 %v1531, %v1717
        %v1846 = vmax.f32 %v1534, %v1718
        %v1847 = vmax.f32 %v1539, %v1719
        %v1848 = vmax.f32 %v1542, %v1720
        %v1849 = vmax.f32 %v1547, %v1721
        %v1850 = vmax.f32 %v1550, %v1722
        %v1851 = vmax.f32 %v1555, %v1723
        %v1852 = vmax.f32 %v1558, %v1724
        %v1853 = vmax.f32 %v1563, %v1725
        %v1854 = vmax.f32 %v1566, %v1726
        %v1855 = vmax.f32 %v1571, %v1727
        %v1856 = vmax.f32 %v1574, %v1728
        %v1857 = vmax.f32 %v1579, %v1729
        %v1858 = vmax.f32 %v1582, %v1730
        %v1859 = vmax.f32 %v1587, %v1731
        %v1860 = vmax.f32 %v1590, %v1732
        %v1861 = vmax.f32 %v1595, %v1733
        %v1862 = vmax.f32 %v1598, %v1734
        %v1863 = vmax.f32 %v1603, %v1735
        %v1864 = vmax.f32 %v1606, %v1736
        %v1865 = vpack.c.bf16 %v1738, %v1737
        %v1866 = vpack.c.bf16 %v1740, %v1739
        %v1867 = vpack.c.bf16 %v1742, %v1741
        %v1868 = vpack.c.bf16 %v1744, %v1743
        %v1869 = vpack.c.bf16 %v1746, %v1745
        %v1870 = vpack.c.bf16 %v1748, %v1747
        %v1871 = vpack.c.bf16 %v1750, %v1749
        %v1872 = vpack.c.bf16 %v1752, %v1751
        %v1873 = vpack.c.bf16 %v1754, %v1753
        %v1874 = vpack.c.bf16 %v1756, %v1755
        %v1875 = vpack.c.bf16 %v1758, %v1757
        %v1876 = vpack.c.bf16 %v1760, %v1759
        %v1877 = vpack.c.bf16 %v1762, %v1761
        %v1878 = vpack.c.bf16 %v1764, %v1763
        %v1879 = vpack.c.bf16 %v1766, %v1765
        %v1880 = vpack.c.bf16 %v1768, %v1767
        %v1881 = vpack.c.bf16 %v1770, %v1769
        %v1882 = vpack.c.bf16 %v1772, %v1771
        %v1883 = vpack.c.bf16 %v1774, %v1773
        %v1884 = vpack.c.bf16 %v1776, %v1775
        %v1885 = vpack.c.bf16 %v1778, %v1777
        %v1886 = vpack.c.bf16 %v1780, %v1779
        %v1887 = vpack.c.bf16 %v1782, %v1781
        %v1888 = vpack.c.bf16 %v1784, %v1783
        %v1889 = vpack.c.bf16 %v1786, %v1785
        %v1890 = vpack.c.bf16 %v1788, %v1787
        %v1891 = vpack.c.bf16 %v1790, %v1789
        %v1892 = vpack.c.bf16 %v1792, %v1791
        %v1893 = vpack.c.bf16 %v1794, %v1793
        %v1894 = vpack.c.bf16 %v1796, %v1795
        %v1895 = vpack.c.bf16 %v1798, %v1797
        %v1896 = vpack.c.bf16 %v1800, %v1799
        %v1897 = vpack.c.bf16 %v1802, %v1801
        %v1898 = vpack.c.bf16 %v1804, %v1803
        %v1899 = vpack.c.bf16 %v1806, %v1805
        %v1900 = vpack.c.bf16 %v1808, %v1807
        %v1901 = vpack.c.bf16 %v1810, %v1809
        %v1902 = vpack.c.bf16 %v1812, %v1811
        %v1903 = vpack.c.bf16 %v1814, %v1813
        %v1904 = vpack.c.bf16 %v1816, %v1815
        %v1905 = vpack.c.bf16 %v1818, %v1817
        %v1906 = vpack.c.bf16 %v1820, %v1819
        %v1907 = vpack.c.bf16 %v1822, %v1821
        %v1908 = vpack.c.bf16 %v1824, %v1823
        %v1909 = vpack.c.bf16 %v1826, %v1825
        %v1910 = vpack.c.bf16 %v1828, %v1827
        %v1911 = vpack.c.bf16 %v1830, %v1829
        %v1912 = vpack.c.bf16 %v1832, %v1831
        %v1913 = vpack.c.bf16 %v1834, %v1833
        %v1914 = vpack.c.bf16 %v1836, %v1835
        %v1915 = vpack.c.bf16 %v1838, %v1837
        %v1916 = vpack.c.bf16 %v1840, %v1839
        %v1917 = vpack.c.bf16 %v1842, %v1841
        %v1918 = vpack.c.bf16 %v1844, %v1843
        %v1919 = vpack.c.bf16 %v1846, %v1845
        %v1920 = vpack.c.bf16 %v1848, %v1847
        %v1921 = vpack.c.bf16 %v1850, %v1849
        %v1922 = vpack.c.bf16 %v1852, %v1851
        %v1923 = vpack.c.bf16 %v1854, %v1853
        %v1924 = vpack.c.bf16 %v1856, %v1855
        %v1925 = vpack.c.bf16 %v1858, %v1857
        %v1926 = vpack.c.bf16 %v1860, %v1859
        %v1927 = vpack.c.bf16 %v1862, %v1861
        %v1928 = vpack.c.bf16 %v1864, %v1863
        %v1929 = vld [vmem:[%s3] sm:$0xf]
        %v1930 = vld [vmem:[%s3 + $0x4] sm:$0xf]
        %v1931 = vld [vmem:[%s3 + $0x8] sm:$0xf]
        %v1932 = vld [vmem:[%s3 + $0xc] sm:$0xf]
        %v1933 = vld [vmem:[%s3 + $0x10] sm:$0xf]
        %v1934 = vld [vmem:[%s3 + $0x14] sm:$0xf]
        %v1935 = vld [vmem:[%s3 + $0x18] sm:$0xf]
        %v1936 = vld [vmem:[%s3 + $0x1c] sm:$0xf]
        %v1937 = vld [vmem:[%s4] sm:$0x1]
        %v1939 = vlaneseq
        %v1940 = vshrl.u32 %v1939, 7
        %v1941 = vsub.s32 0, %v1940
        %v1942 = vrot.slane %v1937, %v1941
        %v1952 = vunpack.c.l.b16 %v1929
        %v1953 = vunpack.c.l.b16 %v1930
        %v1954 = vunpack.c.l.b16 %v1931
        %v1955 = vunpack.c.l.b16 %v1932
        %v1956 = vunpack.c.l.b16 %v1933
        %v1957 = vunpack.c.l.b16 %v1934
        %v1958 = vunpack.c.l.b16 %v1935
        %v1959 = vunpack.c.l.b16 %v1936
        %v1960 = vpack.c.b16 %v1953, %v1952
        %v1961 = vpack.c.b16 %v1955, %v1954
        %v1962 = vpack.c.b16 %v1957, %v1956
        %v1963 = vpack.c.b16 %v1959, %v1958
        %vm1968 = vcmask 523264
        %v1970 = vsel %vm1968, %v1865, 0
        %v1973 = vsel %vm1968, %v1866, 0
        %v1976 = vsel %vm1968, %v1867, 0
        %v1979 = vsel %vm1968, %v1868, 0
        %v1982 = vsel %vm1968, %v1869, 0
        %v1985 = vsel %vm1968, %v1870, 0
        %v1988 = vsel %vm1968, %v1871, 0
        %v1991 = vsel %vm1968, %v1872, 0
        %v1994 = vsel %vm1968, %v1873, 0
        %v1997 = vsel %vm1968, %v1874, 0
        %v2000 = vsel %vm1968, %v1875, 0
        %v2003 = vsel %vm1968, %v1876, 0
        %v2006 = vsel %vm1968, %v1877, 0
        %v2009 = vsel %vm1968, %v1878, 0
        %v2012 = vsel %vm1968, %v1879, 0
        %v2015 = vsel %vm1968, %v1880, 0
        %v2018 = vsel %vm1968, %v1881, 0
        %v2021 = vsel %vm1968, %v1882, 0
        %v2024 = vsel %vm1968, %v1883, 0
        %v2027 = vsel %vm1968, %v1884, 0
        %v2030 = vsel %vm1968, %v1885, 0
        %v2033 = vsel %vm1968, %v1886, 0
        %v2036 = vsel %vm1968, %v1887, 0
        %v2039 = vsel %vm1968, %v1888, 0
        %v2042 = vsel %vm1968, %v1889, 0
        %v2045 = vsel %vm1968, %v1890, 0
        %v2048 = vsel %vm1968, %v1891, 0
        %v2051 = vsel %vm1968, %v1892, 0
        %v2054 = vsel %vm1968, %v1893, 0
        %v2057 = vsel %vm1968, %v1894, 0
        %v2060 = vsel %vm1968, %v1895, 0
        %v2063 = vsel %vm1968, %v1896, 0
        %v2066 = vsel %vm1968, %v1897, 0
        %v2069 = vsel %vm1968, %v1898, 0
        %v2072 = vsel %vm1968, %v1899, 0
        %v2075 = vsel %vm1968, %v1900, 0
        %v2078 = vsel %vm1968, %v1901, 0
        %v2081 = vsel %vm1968, %v1902, 0
        %v2084 = vsel %vm1968, %v1903, 0
        %v2087 = vsel %vm1968, %v1904, 0
        %v2090 = vsel %vm1968, %v1905, 0
        %v2093 = vsel %vm1968, %v1906, 0
        %v2096 = vsel %vm1968, %v1907, 0
        %v2099 = vsel %vm1968, %v1908, 0
        %v2102 = vsel %vm1968, %v1909, 0
        %v2105 = vsel %vm1968, %v1910, 0
        %v2108 = vsel %vm1968, %v1911, 0
        %v2111 = vsel %vm1968, %v1912, 0
        %v2114 = vsel %vm1968, %v1913, 0
        %v2117 = vsel %vm1968, %v1914, 0
        %v2120 = vsel %vm1968, %v1915, 0
        %v2123 = vsel %vm1968, %v1916, 0
        %v2126 = vsel %vm1968, %v1917, 0
        %v2129 = vsel %vm1968, %v1918, 0
        %v2132 = vsel %vm1968, %v1919, 0
        %v2135 = vsel %vm1968, %v1920, 0
        %v2138 = vsel %vm1968, %v1921, 0
        %v2141 = vsel %vm1968, %v1922, 0
        %v2144 = vsel %vm1968, %v1923, 0
        %v2147 = vsel %vm1968, %v1924, 0
        %v2150 = vsel %vm1968, %v1925, 0
        %v2153 = vsel %vm1968, %v1926, 0
        %v2156 = vsel %vm1968, %v1927, 0
        %v2159 = vsel %vm1968, %v1928, 0
        %2161 = vmatprep.subr.bf16.mxu0 0
        %2162 = vmatpush1.bf16.msra.mxu0 %v1960
        %2163 = vmatprep.subr.bf16.mxu0 0
        %2164 = vmatpush1.bf16.msra.mxu0 %v1961
        %2165 = vmatprep.subr.bf16.mxu0 0
        %2166 = vmatpush1.bf16.msra.mxu0 %v1962
        %2167 = vmatprep.subr.bf16.mxu0 0
        %2168 = vmatpush1.bf16.msra.mxu0 %v1963
        %2169 = vmatprep.subr.bf16.mxu0 0
        %2170 = vmatpush1.bf16.msra.mxu0 0
        %2171 = vmatprep.subr.bf16.mxu0 0
        %2172 = vmatpush1.bf16.msra.mxu0 0
        %2173 = vmatprep.subr.bf16.mxu0 0
        %2174 = vmatpush1.bf16.msra.mxu0 0
        %2175 = vmatprep.subr.bf16.mxu0 0
        %2176 = vmatpush1.bf16.msra.mxu0 0
        %2177 = vmatprep.subr.bf16.mxu0 0
        %2178 = vmatpush1.bf16.msra.mxu0 0
        %2179 = vmatprep.subr.bf16.mxu0 0
        %2180 = vmatpush1.bf16.msra.mxu0 0
        %2181 = vmatprep.subr.bf16.mxu0 0
        %2182 = vmatpush1.bf16.msra.mxu0 0
        %2183 = vmatprep.subr.bf16.mxu0 0
        %2184 = vmatpush1.bf16.msra.mxu0 0
        %2185 = vmatprep.subr.bf16.mxu0 0
        %2186 = vmatpush1.bf16.msra.mxu0 0
        %2187 = vmatprep.subr.bf16.mxu0 0
        %2188 = vmatpush1.bf16.msra.mxu0 0
        %2189 = vmatprep.subr.bf16.mxu0 0
        %2190 = vmatpush1.bf16.msra.mxu0 0
        %2191 = vmatprep.subr.bf16.mxu0 0
        %2192 = vmatpush1.bf16.msra.mxu0 0
        %2193 = vmatprep.mubr.bf16.mxu0 0
        %2194 = vmatmul.mubr.bf16.gmra.mrb[0].mxu0 %v1970
        %v2195 = vpop.f32.mrb[0].mxu0
        %v2196 = vadd.f32 %v1942, %v2195
        %v2197 = vpop.f32.mrb[0].mxu0
        %v2198 = vpop.f32.mrb[0].mxu0
        %v2199 = vadd.f32 %v1942, %v2198
        %v2200 = vpop.f32.mrb[0].mxu0
        %2201 = vmatprep.mubr.bf16.mxu0 0
        %2202 = vmatmul.mubr.bf16.gmra.mrb[0].mxu0 %v1973
        %v2203 = vpop.f32.mrb[0].mxu0
        %v2204 = vadd.f32 %v1942, %v2203
        %v2205 = vpop.f32.mrb[0].mxu0
        %v2206 = vpop.f32.mrb[0].mxu0
        %v2207 = vadd.f32 %v1942, %v2206
        %v2208 = vpop.f32.mrb[0].mxu0
        %2209 = vmatprep.mubr.bf16.mxu0 0
        %2210 = vmatmul.mubr.bf16.gmra.mrb[0].mxu0 %v1976
        %v2211 = vpop.f32.mrb[0].mxu0
        %v2212 = vadd.f32 %v1942, %v2211
        %v2213 = vpop.f32.mrb[0].mxu0
        %v2214 = vpop.f32.mrb[0].mxu0
        %v2215 = vadd.f32 %v1942, %v2214
        %v2216 = vpop.f32.mrb[0].mxu0
        %2217 = vmatprep.mubr.bf16.mxu0 0
        %2218 = vmatmul.mubr.bf16.gmra.mrb[0].mxu0 %v1979
        %v2219 = vpop.f32.mrb[0].mxu0
        %v2220 = vadd.f32 %v1942, %v2219
        %v2221 = vpop.f32.mrb[0].mxu0
        %v2222 = vpop.f32.mrb[0].mxu0
        %v2223 = vadd.f32 %v1942, %v2222
        %v2224 = vpop.f32.mrb[0].mxu0
        %2225 = vmatprep.mubr.bf16.mxu0 0
        %2226 = vmatmul.mubr.bf16.gmra.mrb[0].mxu0 %v1982
        %v2227 = vpop.f32.mrb[0].mxu0
        %v2228 = vadd.f32 %v1942, %v2227
        %v2229 = vpop.f32.mrb[0].mxu0
        %v2230 = vpop.f32.mrb[0].mxu0
        %v2231 = vadd.f32 %v1942, %v2230
        %v2232 = vpop.f32.mrb[0].mxu0
        %2233 = vmatprep.mubr.bf16.mxu0 0
        %2234 = vmatmul.mubr.bf16.gmra.mrb[0].mxu0 %v1985
        %v2235 = vpop.f32.mrb[0].mxu0
        %v2236 = vadd.f32 %v1942, %v2235
        %v2237 = vpop.f32.mrb[0].mxu0
        %v2238 = vpop.f32.mrb[0].mxu0
        %v2239 = vadd.f32 %v1942, %v2238
        %v2240 = vpop.f32.mrb[0].mxu0
        %2241 = vmatprep.mubr.bf16.mxu0 0
        %2242 = vmatmul.mubr.bf16.gmra.mrb[0].mxu0 %v1988
        %v2243 = vpop.f32.mrb[0].mxu0
        %v2244 = vadd.f32 %v1942, %v2243
        %v2245 = vpop.f32.mrb[0].mxu0
        %v2246 = vpop.f32.mrb[0].mxu0
        %v2247 = vadd.f32 %v1942, %v2246
        %v2248 = vpop.f32.mrb[0].mxu0
        %2249 = vmatprep.mubr.bf16.mxu0 0
        %2250 = vmatmul.mubr.bf16.gmra.mrb[0].mxu0 %v1991
        %v2251 = vpop.f32.mrb[0].mxu0
        %v2252 = vadd.f32 %v1942, %v2251
        %v2253 = vpop.f32.mrb[0].mxu0
        %v2254 = vpop.f32.mrb[0].mxu0
        %v2255 = vadd.f32 %v1942, %v2254
        %v2256 = vpop.f32.mrb[0].mxu0
        %2257 = vmatprep.mubr.bf16.mxu0 0
        %2258 = vmatmul.mubr.bf16.gmra.mrb[0].mxu0 %v1994
        %v2259 = vpop.f32.mrb[0].mxu0
        %v2260 = vadd.f32 %v1942, %v2259
        %v2261 = vpop.f32.mrb[0].mxu0
        %v2262 = vpop.f32.mrb[0].mxu0
        %v2263 = vadd.f32 %v1942, %v2262
        %v2264 = vpop.f32.mrb[0].mxu0
        %2265 = vmatprep.mubr.bf16.mxu0 0
        %2266 = vmatmul.mubr.bf16.gmra.mrb[0].mxu0 %v1997
        %v2267 = vpop.f32.mrb[0].mxu0
        %v2268 = vadd.f32 %v1942, %v2267
        %v2269 = vpop.f32.mrb[0].mxu0
        %v2270 = vpop.f32.mrb[0].mxu0
        %v2271 = vadd.f32 %v1942, %v2270
        %v2272 = vpop.f32.mrb[0].mxu0
        %2273 = vmatprep.mubr.bf16.mxu0 0
        %2274 = vmatmul.mubr.bf16.gmra.mrb[0].mxu0 %v2000
        %v2275 = vpop.f32.mrb[0].mxu0
        %v2276 = vadd.f32 %v1942, %v2275
        %v2277 = vpop.f32.mrb[0].mxu0
        %v2278 = vpop.f32.mrb[0].mxu0
        %v2279 = vadd.f32 %v1942, %v2278
        %v2280 = vpop.f32.mrb[0].mxu0
        %2281 = vmatprep.mubr.bf16.mxu0 0
        %2282 = vmatmul.mubr.bf16.gmra.mrb[0].mxu0 %v2003
        %v2283 = vpop.f32.mrb[0].mxu0
        %v2284 = vadd.f32 %v1942, %v2283
        %v2285 = vpop.f32.mrb[0].mxu0
        %v2286 = vpop.f32.mrb[0].mxu0
        %v2287 = vadd.f32 %v1942, %v2286
        %v2288 = vpop.f32.mrb[0].mxu0
        %2289 = vmatprep.mubr.bf16.mxu0 0
        %2290 = vmatmul.mubr.bf16.gmra.mrb[0].mxu0 %v2006
        %v2291 = vpop.f32.mrb[0].mxu0
        %v2292 = vadd.f32 %v1942, %v2291
        %v2293 = vpop.f32.mrb[0].mxu0
        %v2294 = vpop.f32.mrb[0].mxu0
        %v2295 = vadd.f32 %v1942, %v2294
        %v2296 = vpop.f32.mrb[0].mxu0
        %2297 = vmatprep.mubr.bf16.mxu0 0
        %2298 = vmatmul.mubr.bf16.gmra.mrb[0].mxu0 %v2009
        %v2299 = vpop.f32.mrb[0].mxu0
        %v2300 = vadd.f32 %v1942, %v2299
        %v2301 = vpop.f32.mrb[0].mxu0
        %v2302 = vpop.f32.mrb[0].mxu0
        %v2303 = vadd.f32 %v1942, %v2302
        %v2304 = vpop.f32.mrb[0].mxu0
        %2305 = vmatprep.mubr.bf16.mxu0 0
        %2306 = vmatmul.mubr.bf16.gmra.mrb[0].mxu0 %v2012
        %v2307 = vpop.f32.mrb[0].mxu0
        %v2308 = vadd.f32 %v1942, %v2307
        %v2309 = vpop.f32.mrb[0].mxu0
        %v2310 = vpop.f32.mrb[0].mxu0
        %v2311 = vadd.f32 %v1942, %v2310
        %v2312 = vpop.f32.mrb[0].mxu0
        %2313 = vmatprep.mubr.bf16.mxu0 0
        %2314 = vmatmul.mubr.bf16.gmra.mrb[0].mxu0 %v2015
        %v2315 = vpop.f32.mrb[0].mxu0
        %v2316 = vadd.f32 %v1942, %v2315
        %v2317 = vpop.f32.mrb[0].mxu0
        %v2318 = vpop.f32.mrb[0].mxu0
        %v2319 = vadd.f32 %v1942, %v2318
        %v2320 = vpop.f32.mrb[0].mxu0
        %2321 = vmatprep.mubr.bf16.mxu0 0
        %2322 = vmatmul.mubr.bf16.gmra.mrb[0].mxu0 %v2018
        %v2323 = vpop.f32.mrb[0].mxu0
        %v2324 = vadd.f32 %v1942, %v2323
        %v2325 = vpop.f32.mrb[0].mxu0
        %v2326 = vpop.f32.mrb[0].mxu0
        %v2327 = vadd.f32 %v1942, %v2326
        %v2328 = vpop.f32.mrb[0].mxu0
        %2329 = vmatprep.mubr.bf16.mxu0 0
        %2330 = vmatmul.mubr.bf16.gmra.mrb[0].mxu0 %v2021
        %v2331 = vpop.f32.mrb[0].mxu0
        %v2332 = vadd.f32 %v1942, %v2331
        %v2333 = vpop.f32.mrb[0].mxu0
        %v2334 = vpop.f32.mrb[0].mxu0
        %v2335 = vadd.f32 %v1942, %v2334
        %v2336 = vpop.f32.mrb[0].mxu0
        %2337 = vmatprep.mubr.bf16.mxu0 0
        %2338 = vmatmul.mubr.bf16.gmra.mrb[0].mxu0 %v2024
        %v2339 = vpop.f32.mrb[0].mxu0
        %v2340 = vadd.f32 %v1942, %v2339
        %v2341 = vpop.f32.mrb[0].mxu0
        %v2342 = vpop.f32.mrb[0].mxu0
        %v2343 = vadd.f32 %v1942, %v2342
        %v2344 = vpop.f32.mrb[0].mxu0
        %2345 = vmatprep.mubr.bf16.mxu0 0
        %2346 = vmatmul.mubr.bf16.gmra.mrb[0].mxu0 %v2027
        %v2347 = vpop.f32.mrb[0].mxu0
        %v2348 = vadd.f32 %v1942, %v2347
        %v2349 = vpop.f32.mrb[0].mxu0
        %v2350 = vpop.f32.mrb[0].mxu0
        %v2351 = vadd.f32 %v1942, %v2350
        %v2352 = vpop.f32.mrb[0].mxu0
        %2353 = vmatprep.mubr.bf16.mxu0 0
        %2354 = vmatmul.mubr.bf16.gmra.mrb[0].mxu0 %v2030
        %v2355 = vpop.f32.mrb[0].mxu0
        %v2356 = vadd.f32 %v1942, %v2355
        %v2357 = vpop.f32.mrb[0].mxu0
        %v2358 = vpop.f32.mrb[0].mxu0
        %v2359 = vadd.f32 %v1942, %v2358
        %v2360 = vpop.f32.mrb[0].mxu0
        %2361 = vmatprep.mubr.bf16.mxu0 0
        %2362 = vmatmul.mubr.bf16.gmra.mrb[0].mxu0 %v2033
        %v2363 = vpop.f32.mrb[0].mxu0
        %v2364 = vadd.f32 %v1942, %v2363
        %v2365 = vpop.f32.mrb[0].mxu0
        %v2366 = vpop.f32.mrb[0].mxu0
        %v2367 = vadd.f32 %v1942, %v2366
        %v2368 = vpop.f32.mrb[0].mxu0
        %2369 = vmatprep.mubr.bf16.mxu0 0
        %2370 = vmatmul.mubr.bf16.gmra.mrb[0].mxu0 %v2036
        %v2371 = vpop.f32.mrb[0].mxu0
        %v2372 = vadd.f32 %v1942, %v2371
        %v2373 = vpop.f32.mrb[0].mxu0
        %v2374 = vpop.f32.mrb[0].mxu0
        %v2375 = vadd.f32 %v1942, %v2374
        %v2376 = vpop.f32.mrb[0].mxu0
        %2377 = vmatprep.mubr.bf16.mxu0 0
        %2378 = vmatmul.mubr.bf16.gmra.mrb[0].mxu0 %v2039
        %v2379 = vpop.f32.mrb[0].mxu0
        %v2380 = vadd.f32 %v1942, %v2379
        %v2381 = vpop.f32.mrb[0].mxu0
        %v2382 = vpop.f32.mrb[0].mxu0
        %v2383 = vadd.f32 %v1942, %v2382
        %v2384 = vpop.f32.mrb[0].mxu0
        %2385 = vmatprep.mubr.bf16.mxu0 0
        %2386 = vmatmul.mubr.bf16.gmra.mrb[0].mxu0 %v2042
        %v2387 = vpop.f32.mrb[0].mxu0
        %v2388 = vadd.f32 %v1942, %v2387
        %v2389 = vpop.f32.mrb[0].mxu0
        %v2390 = vpop.f32.mrb[0].mxu0
        %v2391 = vadd.f32 %v1942, %v2390
        %v2392 = vpop.f32.mrb[0].mxu0
        %2393 = vmatprep.mubr.bf16.mxu0 0
        %2394 = vmatmul.mubr.bf16.gmra.mrb[0].mxu0 %v2045
        %v2395 = vpop.f32.mrb[0].mxu0
        %v2396 = vadd.f32 %v1942, %v2395
        %v2397 = vpop.f32.mrb[0].mxu0
        %v2398 = vpop.f32.mrb[0].mxu0
        %v2399 = vadd.f32 %v1942, %v2398
        %v2400 = vpop.f32.mrb[0].mxu0
        %2401 = vmatprep.mubr.bf16.mxu0 0
        %2402 = vmatmul.mubr.bf16.gmra.mrb[0].mxu0 %v2048
        %v2403 = vpop.f32.mrb[0].mxu0
        %v2404 = vadd.f32 %v1942, %v2403
        %v2405 = vpop.f32.mrb[0].mxu0
        %v2406 = vpop.f32.mrb[0].mxu0
        %v2407 = vadd.f32 %v1942, %v2406
        %v2408 = vpop.f32.mrb[0].mxu0
        %2409 = vmatprep.mubr.bf16.mxu0 0
        %2410 = vmatmul.mubr.bf16.gmra.mrb[0].mxu0 %v2051
        %v2411 = vpop.f32.mrb[0].mxu0
        %v2412 = vadd.f32 %v1942, %v2411
        %v2413 = vpop.f32.mrb[0].mxu0
        %v2414 = vpop.f32.mrb[0].mxu0
        %v2415 = vadd.f32 %v1942, %v2414
        %v2416 = vpop.f32.mrb[0].mxu0
        %2417 = vmatprep.mubr.bf16.mxu0 0
        %2418 = vmatmul.mubr.bf16.gmra.mrb[0].mxu0 %v2054
        %v2419 = vpop.f32.mrb[0].mxu0
        %v2420 = vadd.f32 %v1942, %v2419
        %v2421 = vpop.f32.mrb[0].mxu0
        %v2422 = vpop.f32.mrb[0].mxu0
        %v2423 = vadd.f32 %v1942, %v2422
        %v2424 = vpop.f32.mrb[0].mxu0
        %2425 = vmatprep.mubr.bf16.mxu0 0
        %2426 = vmatmul.mubr.bf16.gmra.mrb[0].mxu0 %v2057
        %v2427 = vpop.f32.mrb[0].mxu0
        %v2428 = vadd.f32 %v1942, %v2427
        %v2429 = vpop.f32.mrb[0].mxu0
        %v2430 = vpop.f32.mrb[0].mxu0
        %v2431 = vadd.f32 %v1942, %v2430
        %v2432 = vpop.f32.mrb[0].mxu0
        %2433 = vmatprep.mubr.bf16.mxu0 0
        %2434 = vmatmul.mubr.bf16.gmra.mrb[0].mxu0 %v2060
        %v2435 = vpop.f32.mrb[0].mxu0
        %v2436 = vadd.f32 %v1942, %v2435
        %v2437 = vpop.f32.mrb[0].mxu0
        %v2438 = vpop.f32.mrb[0].mxu0
        %v2439 = vadd.f32 %v1942, %v2438
        %v2440 = vpop.f32.mrb[0].mxu0
        %2441 = vmatprep.mubr.bf16.mxu0 0
        %2442 = vmatmul.mubr.bf16.gmra.mrb[0].mxu0 %v2063
        %v2443 = vpop.f32.mrb[0].mxu0
        %v2444 = vadd.f32 %v1942, %v2443
        %v2445 = vpop.f32.mrb[0].mxu0
        %v2446 = vpop.f32.mrb[0].mxu0
        %v2447 = vadd.f32 %v1942, %v2446
        %v2448 = vpop.f32.mrb[0].mxu0
        %2449 = vmatprep.mubr.bf16.mxu0 0
        %2450 = vmatmul.mubr.bf16.gmra.mrb[0].mxu0 %v2066
        %v2451 = vpop.f32.mrb[0].mxu0
        %v2452 = vadd.f32 %v1942, %v2451
        %v2453 = vpop.f32.mrb[0].mxu0
        %v2454 = vpop.f32.mrb[0].mxu0
        %v2455 = vadd.f32 %v1942, %v2454
        %v2456 = vpop.f32.mrb[0].mxu0
        %2457 = vmatprep.mubr.bf16.mxu0 0
        %2458 = vmatmul.mubr.bf16.gmra.mrb[0].mxu0 %v2069
        %v2459 = vpop.f32.mrb[0].mxu0
        %v2460 = vadd.f32 %v1942, %v2459
        %v2461 = vpop.f32.mrb[0].mxu0
        %v2462 = vpop.f32.mrb[0].mxu0
        %v2463 = vadd.f32 %v1942, %v2462
        %v2464 = vpop.f32.mrb[0].mxu0
        %2465 = vmatprep.mubr.bf16.mxu0 0
        %2466 = vmatmul.mubr.bf16.gmra.mrb[0].mxu0 %v2072
        %v2467 = vpop.f32.mrb[0].mxu0
        %v2468 = vadd.f32 %v1942, %v2467
        %v2469 = vpop.f32.mrb[0].mxu0
        %v2470 = vpop.f32.mrb[0].mxu0
        %v2471 = vadd.f32 %v1942, %v2470
        %v2472 = vpop.f32.mrb[0].mxu0
        %2473 = vmatprep.mubr.bf16.mxu0 0
        %2474 = vmatmul.mubr.bf16.gmra.mrb[0].mxu0 %v2075
        %v2475 = vpop.f32.mrb[0].mxu0
        %v2476 = vadd.f32 %v1942, %v2475
        %v2477 = vpop.f32.mrb[0].mxu0
        %v2478 = vpop.f32.mrb[0].mxu0
        %v2479 = vadd.f32 %v1942, %v2478
        %v2480 = vpop.f32.mrb[0].mxu0
        %2481 = vmatprep.mubr.bf16.mxu0 0
        %2482 = vmatmul.mubr.bf16.gmra.mrb[0].mxu0 %v2078
        %v2483 = vpop.f32.mrb[0].mxu0
        %v2484 = vadd.f32 %v1942, %v2483
        %v2485 = vpop.f32.mrb[0].mxu0
        %v2486 = vpop.f32.mrb[0].mxu0
        %v2487 = vadd.f32 %v1942, %v2486
        %v2488 = vpop.f32.mrb[0].mxu0
        %2489 = vmatprep.mubr.bf16.mxu0 0
        %2490 = vmatmul.mubr.bf16.gmra.mrb[0].mxu0 %v2081
        %v2491 = vpop.f32.mrb[0].mxu0
        %v2492 = vadd.f32 %v1942, %v2491
        %v2493 = vpop.f32.mrb[0].mxu0
        %v2494 = vpop.f32.mrb[0].mxu0
        %v2495 = vadd.f32 %v1942, %v2494
        %v2496 = vpop.f32.mrb[0].mxu0
        %2497 = vmatprep.mubr.bf16.mxu0 0
        %2498 = vmatmul.mubr.bf16.gmra.mrb[0].mxu0 %v2084
        %v2499 = vpop.f32.mrb[0].mxu0
        %v2500 = vadd.f32 %v1942, %v2499
        %v2501 = vpop.f32.mrb[0].mxu0
        %v2502 = vpop.f32.mrb[0].mxu0
        %v2503 = vadd.f32 %v1942, %v2502
        %v2504 = vpop.f32.mrb[0].mxu0
        %2505 = vmatprep.mubr.bf16.mxu0 0
        %2506 = vmatmul.mubr.bf16.gmra.mrb[0].mxu0 %v2087
        %v2507 = vpop.f32.mrb[0].mxu0
        %v2508 = vadd.f32 %v1942, %v2507
        %v2509 = vpop.f32.mrb[0].mxu0
        %v2510 = vpop.f32.mrb[0].mxu0
        %v2511 = vadd.f32 %v1942, %v2510
        %v2512 = vpop.f32.mrb[0].mxu0
        %2513 = vmatprep.mubr.bf16.mxu0 0
        %2514 = vmatmul.mubr.bf16.gmra.mrb[0].mxu0 %v2090
        %v2515 = vpop.f32.mrb[0].mxu0
        %v2516 = vadd.f32 %v1942, %v2515
        %v2517 = vpop.f32.mrb[0].mxu0
        %v2518 = vpop.f32.mrb[0].mxu0
        %v2519 = vadd.f32 %v1942, %v2518
        %v2520 = vpop.f32.mrb[0].mxu0
        %2521 = vmatprep.mubr.bf16.mxu0 0
        %2522 = vmatmul.mubr.bf16.gmra.mrb[0].mxu0 %v2093
        %v2523 = vpop.f32.mrb[0].mxu0
        %v2524 = vadd.f32 %v1942, %v2523
        %v2525 = vpop.f32.mrb[0].mxu0
        %v2526 = vpop.f32.mrb[0].mxu0
        %v2527 = vadd.f32 %v1942, %v2526
        %v2528 = vpop.f32.mrb[0].mxu0
        %2529 = vmatprep.mubr.bf16.mxu0 0
        %2530 = vmatmul.mubr.bf16.gmra.mrb[0].mxu0 %v2096
        %v2531 = vpop.f32.mrb[0].mxu0
        %v2532 = vadd.f32 %v1942, %v2531
        %v2533 = vpop.f32.mrb[0].mxu0
        %v2534 = vpop.f32.mrb[0].mxu0
        %v2535 = vadd.f32 %v1942, %v2534
        %v2536 = vpop.f32.mrb[0].mxu0
        %2537 = vmatprep.mubr.bf16.mxu0 0
        %2538 = vmatmul.mubr.bf16.gmra.mrb[0].mxu0 %v2099
        %v2539 = vpop.f32.mrb[0].mxu0
        %v2540 = vadd.f32 %v1942, %v2539
        %v2541 = vpop.f32.mrb[0].mxu0
        %v2542 = vpop.f32.mrb[0].mxu0
        %v2543 = vadd.f32 %v1942, %v2542
        %v2544 = vpop.f32.mrb[0].mxu0
        %2545 = vmatprep.mubr.bf16.mxu0 0
        %2546 = vmatmul.mubr.bf16.gmra.mrb[0].mxu0 %v2102
        %v2547 = vpop.f32.mrb[0].mxu0
        %v2548 = vadd.f32 %v1942, %v2547
        %v2549 = vpop.f32.mrb[0].mxu0
        %v2550 = vpop.f32.mrb[0].mxu0
        %v2551 = vadd.f32 %v1942, %v2550
        %v2552 = vpop.f32.mrb[0].mxu0
        %2553 = vmatprep.mubr.bf16.mxu0 0
        %2554 = vmatmul.mubr.bf16.gmra.mrb[0].mxu0 %v2105
        %v2555 = vpop.f32.mrb[0].mxu0
        %v2556 = vadd.f32 %v1942, %v2555
        %v2557 = vpop.f32.mrb[0].mxu0
        %v2558 = vpop.f32.mrb[0].mxu0
        %v2559 = vadd.f32 %v1942, %v2558
        %v2560 = vpop.f32.mrb[0].mxu0
        %2561 = vmatprep.mubr.bf16.mxu0 0
        %2562 = vmatmul.mubr.bf16.gmra.mrb[0].mxu0 %v2108
        %v2563 = vpop.f32.mrb[0].mxu0
        %v2564 = vadd.f32 %v1942, %v2563
        %v2565 = vpop.f32.mrb[0].mxu0
        %v2566 = vpop.f32.mrb[0].mxu0
        %v2567 = vadd.f32 %v1942, %v2566
        %v2568 = vpop.f32.mrb[0].mxu0
        %2569 = vmatprep.mubr.bf16.mxu0 0
        %2570 = vmatmul.mubr.bf16.gmra.mrb[0].mxu0 %v2111
        %v2571 = vpop.f32.mrb[0].mxu0
        %v2572 = vadd.f32 %v1942, %v2571
        %v2573 = vpop.f32.mrb[0].mxu0
        %v2574 = vpop.f32.mrb[0].mxu0
        %v2575 = vadd.f32 %v1942, %v2574
        %v2576 = vpop.f32.mrb[0].mxu0
        %2577 = vmatprep.mubr.bf16.mxu0 0
        %2578 = vmatmul.mubr.bf16.gmra.mrb[0].mxu0 %v2114
        %v2579 = vpop.f32.mrb[0].mxu0
        %v2580 = vadd.f32 %v1942, %v2579
        %v2581 = vpop.f32.mrb[0].mxu0
        %v2582 = vpop.f32.mrb[0].mxu0
        %v2583 = vadd.f32 %v1942, %v2582
        %v2584 = vpop.f32.mrb[0].mxu0
        %2585 = vmatprep.mubr.bf16.mxu0 0
        %2586 = vmatmul.mubr.bf16.gmra.mrb[0].mxu0 %v2117
        %v2587 = vpop.f32.mrb[0].mxu0
        %v2588 = vadd.f32 %v1942, %v2587
        %v2589 = vpop.f32.mrb[0].mxu0
        %v2590 = vpop.f32.mrb[0].mxu0
        %v2591 = vadd.f32 %v1942, %v2590
        %v2592 = vpop.f32.mrb[0].mxu0
        %2593 = vmatprep.mubr.bf16.mxu0 0
        %2594 = vmatmul.mubr.bf16.gmra.mrb[0].mxu0 %v2120
        %v2595 = vpop.f32.mrb[0].mxu0
        %v2596 = vadd.f32 %v1942, %v2595
        %v2597 = vpop.f32.mrb[0].mxu0
        %v2598 = vpop.f32.mrb[0].mxu0
        %v2599 = vadd.f32 %v1942, %v2598
        %v2600 = vpop.f32.mrb[0].mxu0
        %2601 = vmatprep.mubr.bf16.mxu0 0
        %2602 = vmatmul.mubr.bf16.gmra.mrb[0].mxu0 %v2123
        %v2603 = vpop.f32.mrb[0].mxu0
        %v2604 = vadd.f32 %v1942, %v2603
        %v2605 = vpop.f32.mrb[0].mxu0
        %v2606 = vpop.f32.mrb[0].mxu0
        %v2607 = vadd.f32 %v1942, %v2606
        %v2608 = vpop.f32.mrb[0].mxu0
        %2609 = vmatprep.mubr.bf16.mxu0 0
        %2610 = vmatmul.mubr.bf16.gmra.mrb[0].mxu0 %v2126
        %v2611 = vpop.f32.mrb[0].mxu0
        %v2612 = vadd.f32 %v1942, %v2611
        %v2613 = vpop.f32.mrb[0].mxu0
        %v2614 = vpop.f32.mrb[0].mxu0
        %v2615 = vadd.f32 %v1942, %v2614
        %v2616 = vpop.f32.mrb[0].mxu0
        %2617 = vmatprep.mubr.bf16.mxu0 0
        %2618 = vmatmul.mubr.bf16.gmra.mrb[0].mxu0 %v2129
        %v2619 = vpop.f32.mrb[0].mxu0
        %v2620 = vadd.f32 %v1942, %v2619
        %v2621 = vpop.f32.mrb[0].mxu0
        %v2622 = vpop.f32.mrb[0].mxu0
        %v2623 = vadd.f32 %v1942, %v2622
        %v2624 = vpop.f32.mrb[0].mxu0
        %2625 = vmatprep.mubr.bf16.mxu0 0
        %2626 = vmatmul.mubr.bf16.gmra.mrb[0].mxu0 %v2132
        %v2627 = vpop.f32.mrb[0].mxu0
        %v2628 = vadd.f32 %v1942, %v2627
        %v2629 = vpop.f32.mrb[0].mxu0
        %v2630 = vpop.f32.mrb[0].mxu0
        %v2631 = vadd.f32 %v1942, %v2630
        %v2632 = vpop.f32.mrb[0].mxu0
        %2633 = vmatprep.mubr.bf16.mxu0 0
        %2634 = vmatmul.mubr.bf16.gmra.mrb[0].mxu0 %v2135
        %v2635 = vpop.f32.mrb[0].mxu0
        %v2636 = vadd.f32 %v1942, %v2635
        %v2637 = vpop.f32.mrb[0].mxu0
        %v2638 = vpop.f32.mrb[0].mxu0
        %v2639 = vadd.f32 %v1942, %v2638
        %v2640 = vpop.f32.mrb[0].mxu0
        %2641 = vmatprep.mubr.bf16.mxu0 0
        %2642 = vmatmul.mubr.bf16.gmra.mrb[0].mxu0 %v2138
        %v2643 = vpop.f32.mrb[0].mxu0
        %v2644 = vadd.f32 %v1942, %v2643
        %v2645 = vpop.f32.mrb[0].mxu0
        %v2646 = vpop.f32.mrb[0].mxu0
        %v2647 = vadd.f32 %v1942, %v2646
        %v2648 = vpop.f32.mrb[0].mxu0
        %2649 = vmatprep.mubr.bf16.mxu0 0
        %2650 = vmatmul.mubr.bf16.gmra.mrb[0].mxu0 %v2141
        %v2651 = vpop.f32.mrb[0].mxu0
        %v2652 = vadd.f32 %v1942, %v2651
        %v2653 = vpop.f32.mrb[0].mxu0
        %v2654 = vpop.f32.mrb[0].mxu0
        %v2655 = vadd.f32 %v1942, %v2654
        %v2656 = vpop.f32.mrb[0].mxu0
        %2657 = vmatprep.mubr.bf16.mxu0 0
        %2658 = vmatmul.mubr.bf16.gmra.mrb[0].mxu0 %v2144
        %v2659 = vpop.f32.mrb[0].mxu0
        %v2660 = vadd.f32 %v1942, %v2659
        %v2661 = vpop.f32.mrb[0].mxu0
        %v2662 = vpop.f32.mrb[0].mxu0
        %v2663 = vadd.f32 %v1942, %v2662
        %v2664 = vpop.f32.mrb[0].mxu0
        %2665 = vmatprep.mubr.bf16.mxu0 0
        %2666 = vmatmul.mubr.bf16.gmra.mrb[0].mxu0 %v2147
        %v2667 = vpop.f32.mrb[0].mxu0
        %v2668 = vadd.f32 %v1942, %v2667
        %v2669 = vpop.f32.mrb[0].mxu0
        %v2670 = vpop.f32.mrb[0].mxu0
        %v2671 = vadd.f32 %v1942, %v2670
        %v2672 = vpop.f32.mrb[0].mxu0
        %2673 = vmatprep.mubr.bf16.mxu0 0
        %2674 = vmatmul.mubr.bf16.gmra.mrb[0].mxu0 %v2150
        %v2675 = vpop.f32.mrb[0].mxu0
        %v2676 = vadd.f32 %v1942, %v2675
        %v2677 = vpop.f32.mrb[0].mxu0
        %v2678 = vpop.f32.mrb[0].mxu0
        %v2679 = vadd.f32 %v1942, %v2678
        %v2680 = vpop.f32.mrb[0].mxu0
        %2681 = vmatprep.mubr.bf16.mxu0 0
        %2682 = vmatmul.mubr.bf16.gmra.mrb[0].mxu0 %v2153
        %v2683 = vpop.f32.mrb[0].mxu0
        %v2684 = vadd.f32 %v1942, %v2683
        %v2685 = vpop.f32.mrb[0].mxu0
        %v2686 = vpop.f32.mrb[0].mxu0
        %v2687 = vadd.f32 %v1942, %v2686
        %v2688 = vpop.f32.mrb[0].mxu0
        %2689 = vmatprep.mubr.bf16.mxu0 0
        %2690 = vmatmul.mubr.bf16.gmra.mrb[0].mxu0 %v2156
        %v2691 = vpop.f32.mrb[0].mxu0
        %v2692 = vadd.f32 %v1942, %v2691
        %v2693 = vpop.f32.mrb[0].mxu0
        %v2694 = vpop.f32.mrb[0].mxu0
        %v2695 = vadd.f32 %v1942, %v2694
        %v2696 = vpop.f32.mrb[0].mxu0
        %2697 = vmatprep.mubr.bf16.mxu0 0
        %2698 = vmatmul.mubr.bf16.gmra.mrb[0].mxu0 %v2159
        %v2699 = vpop.f32.mrb[0].mxu0
        %v2700 = vadd.f32 %v1942, %v2699
        %v2701 = vpop.f32.mrb[0].mxu0
        %v2702 = vpop.f32.mrb[0].mxu0
        %v2703 = vadd.f32 %v1942, %v2702
        %v2704 = vpop.f32.mrb[0].mxu0
        %2705 = vdwg.mxu0
        %v2706 = vmul.f32 %v2196, 0.1
        %v2707 = vmul.f32 %v2199, 0.1
        %v2708 = vmul.f32 %v2204, 0.1
        %v2709 = vmul.f32 %v2207, 0.1
        %v2710 = vmul.f32 %v2212, 0.1
        %v2711 = vmul.f32 %v2215, 0.1
        %v2712 = vmul.f32 %v2220, 0.1
        %v2713 = vmul.f32 %v2223, 0.1
        %v2714 = vmul.f32 %v2228, 0.1
        %v2715 = vmul.f32 %v2231, 0.1
        %v2716 = vmul.f32 %v2236, 0.1
        %v2717 = vmul.f32 %v2239, 0.1
        %v2718 = vmul.f32 %v2244, 0.1
        %v2719 = vmul.f32 %v2247, 0.1
        %v2720 = vmul.f32 %v2252, 0.1
        %v2721 = vmul.f32 %v2255, 0.1
        %v2722 = vmul.f32 %v2260, 0.1
        %v2723 = vmul.f32 %v2263, 0.1
        %v2724 = vmul.f32 %v2268, 0.1
        %v2725 = vmul.f32 %v2271, 0.1
        %v2726 = vmul.f32 %v2276, 0.1
        %v2727 = vmul.f32 %v2279, 0.1
        %v2728 = vmul.f32 %v2284, 0.1
        %v2729 = vmul.f32 %v2287, 0.1
        %v2730 = vmul.f32 %v2292, 0.1
        %v2731 = vmul.f32 %v2295, 0.1
        %v2732 = vmul.f32 %v2300, 0.1
        %v2733 = vmul.f32 %v2303, 0.1
        %v2734 = vmul.f32 %v2308, 0.1
        %v2735 = vmul.f32 %v2311, 0.1
        %v2736 = vmul.f32 %v2316, 0.1
        %v2737 = vmul.f32 %v2319, 0.1
        %v2738 = vmul.f32 %v2324, 0.1
        %v2739 = vmul.f32 %v2327, 0.1
        %v2740 = vmul.f32 %v2332, 0.1
        %v2741 = vmul.f32 %v2335, 0.1
        %v2742 = vmul.f32 %v2340, 0.1
        %v2743 = vmul.f32 %v2343, 0.1
        %v2744 = vmul.f32 %v2348, 0.1
        %v2745 = vmul.f32 %v2351, 0.1
        %v2746 = vmul.f32 %v2356, 0.1
        %v2747 = vmul.f32 %v2359, 0.1
        %v2748 = vmul.f32 %v2364, 0.1
        %v2749 = vmul.f32 %v2367, 0.1
        %v2750 = vmul.f32 %v2372, 0.1
        %v2751 = vmul.f32 %v2375, 0.1
        %v2752 = vmul.f32 %v2380, 0.1
        %v2753 = vmul.f32 %v2383, 0.1
        %v2754 = vmul.f32 %v2388, 0.1
        %v2755 = vmul.f32 %v2391, 0.1
        %v2756 = vmul.f32 %v2396, 0.1
        %v2757 = vmul.f32 %v2399, 0.1
        %v2758 = vmul.f32 %v2404, 0.1
        %v2759 = vmul.f32 %v2407, 0.1
        %v2760 = vmul.f32 %v2412, 0.1
        %v2761 = vmul.f32 %v2415, 0.1
        %v2762 = vmul.f32 %v2420, 0.1
        %v2763 = vmul.f32 %v2423, 0.1
        %v2764 = vmul.f32 %v2428, 0.1
        %v2765 = vmul.f32 %v2431, 0.1
        %v2766 = vmul.f32 %v2436, 0.1
        %v2767 = vmul.f32 %v2439, 0.1
        %v2768 = vmul.f32 %v2444, 0.1
        %v2769 = vmul.f32 %v2447, 0.1
        %v2770 = vmul.f32 %v2452, 0.1
        %v2771 = vmul.f32 %v2455, 0.1
        %v2772 = vmul.f32 %v2460, 0.1
        %v2773 = vmul.f32 %v2463, 0.1
        %v2774 = vmul.f32 %v2468, 0.1
        %v2775 = vmul.f32 %v2471, 0.1
        %v2776 = vmul.f32 %v2476, 0.1
        %v2777 = vmul.f32 %v2479, 0.1
        %v2778 = vmul.f32 %v2484, 0.1
        %v2779 = vmul.f32 %v2487, 0.1
        %v2780 = vmul.f32 %v2492, 0.1
        %v2781 = vmul.f32 %v2495, 0.1
        %v2782 = vmul.f32 %v2500, 0.1
        %v2783 = vmul.f32 %v2503, 0.1
        %v2784 = vmul.f32 %v2508, 0.1
        %v2785 = vmul.f32 %v2511, 0.1
        %v2786 = vmul.f32 %v2516, 0.1
        %v2787 = vmul.f32 %v2519, 0.1
        %v2788 = vmul.f32 %v2524, 0.1
        %v2789 = vmul.f32 %v2527, 0.1
        %v2790 = vmul.f32 %v2532, 0.1
        %v2791 = vmul.f32 %v2535, 0.1
        %v2792 = vmul.f32 %v2540, 0.1
        %v2793 = vmul.f32 %v2543, 0.1
        %v2794 = vmul.f32 %v2548, 0.1
        %v2795 = vmul.f32 %v2551, 0.1
        %v2796 = vmul.f32 %v2556, 0.1
        %v2797 = vmul.f32 %v2559, 0.1
        %v2798 = vmul.f32 %v2564, 0.1
        %v2799 = vmul.f32 %v2567, 0.1
        %v2800 = vmul.f32 %v2572, 0.1
        %v2801 = vmul.f32 %v2575, 0.1
        %v2802 = vmul.f32 %v2580, 0.1
        %v2803 = vmul.f32 %v2583, 0.1
        %v2804 = vmul.f32 %v2588, 0.1
        %v2805 = vmul.f32 %v2591, 0.1
        %v2806 = vmul.f32 %v2596, 0.1
        %v2807 = vmul.f32 %v2599, 0.1
        %v2808 = vmul.f32 %v2604, 0.1
        %v2809 = vmul.f32 %v2607, 0.1
        %v2810 = vmul.f32 %v2612, 0.1
        %v2811 = vmul.f32 %v2615, 0.1
        %v2812 = vmul.f32 %v2620, 0.1
        %v2813 = vmul.f32 %v2623, 0.1
        %v2814 = vmul.f32 %v2628, 0.1
        %v2815 = vmul.f32 %v2631, 0.1
        %v2816 = vmul.f32 %v2636, 0.1
        %v2817 = vmul.f32 %v2639, 0.1
        %v2818 = vmul.f32 %v2644, 0.1
        %v2819 = vmul.f32 %v2647, 0.1
        %v2820 = vmul.f32 %v2652, 0.1
        %v2821 = vmul.f32 %v2655, 0.1
        %v2822 = vmul.f32 %v2660, 0.1
        %v2823 = vmul.f32 %v2663, 0.1
        %v2824 = vmul.f32 %v2668, 0.1
        %v2825 = vmul.f32 %v2671, 0.1
        %v2826 = vmul.f32 %v2676, 0.1
        %v2827 = vmul.f32 %v2679, 0.1
        %v2828 = vmul.f32 %v2684, 0.1
        %v2829 = vmul.f32 %v2687, 0.1
        %v2830 = vmul.f32 %v2692, 0.1
        %v2831 = vmul.f32 %v2695, 0.1
        %v2832 = vmul.f32 %v2700, 0.1
        %v2833 = vmul.f32 %v2703, 0.1
        %v2834 = vmax.f32 %v2196, %v2706
        %v2835 = vmax.f32 %v2199, %v2707
        %v2836 = vmax.f32 %v2204, %v2708
        %v2837 = vmax.f32 %v2207, %v2709
        %v2838 = vmax.f32 %v2212, %v2710
        %v2839 = vmax.f32 %v2215, %v2711
        %v2840 = vmax.f32 %v2220, %v2712
        %v2841 = vmax.f32 %v2223, %v2713
        %v2842 = vmax.f32 %v2228, %v2714
        %v2843 = vmax.f32 %v2231, %v2715
        %v2844 = vmax.f32 %v2236, %v2716
        %v2845 = vmax.f32 %v2239, %v2717
        %v2846 = vmax.f32 %v2244, %v2718
        %v2847 = vmax.f32 %v2247, %v2719
        %v2848 = vmax.f32 %v2252, %v2720
        %v2849 = vmax.f32 %v2255, %v2721
        %v2850 = vmax.f32 %v2260, %v2722
        %v2851 = vmax.f32 %v2263, %v2723
        %v2852 = vmax.f32 %v2268, %v2724
        %v2853 = vmax.f32 %v2271, %v2725
        %v2854 = vmax.f32 %v2276, %v2726
        %v2855 = vmax.f32 %v2279, %v2727
        %v2856 = vmax.f32 %v2284, %v2728
        %v2857 = vmax.f32 %v2287, %v2729
        %v2858 = vmax.f32 %v2292, %v2730
        %v2859 = vmax.f32 %v2295, %v2731
        %v2860 = vmax.f32 %v2300, %v2732
        %v2861 = vmax.f32 %v2303, %v2733
        %v2862 = vmax.f32 %v2308, %v2734
        %v2863 = vmax.f32 %v2311, %v2735
        %v2864 = vmax.f32 %v2316, %v2736
        %v2865 = vmax.f32 %v2319, %v2737
        %v2866 = vmax.f32 %v2324, %v2738
        %v2867 = vmax.f32 %v2327, %v2739
        %v2868 = vmax.f32 %v2332, %v2740
        %v2869 = vmax.f32 %v2335, %v2741
        %v2870 = vmax.f32 %v2340, %v2742
        %v2871 = vmax.f32 %v2343, %v2743
        %v2872 = vmax.f32 %v2348, %v2744
        %v2873 = vmax.f32 %v2351, %v2745
        %v2874 = vmax.f32 %v2356, %v2746
        %v2875 = vmax.f32 %v2359, %v2747
        %v2876 = vmax.f32 %v2364, %v2748
        %v2877 = vmax.f32 %v2367, %v2749
        %v2878 = vmax.f32 %v2372, %v2750
        %v2879 = vmax.f32 %v2375, %v2751
        %v2880 = vmax.f32 %v2380, %v2752
        %v2881 = vmax.f32 %v2383, %v2753
        %v2882 = vmax.f32 %v2388, %v2754
        %v2883 = vmax.f32 %v2391, %v2755
        %v2884 = vmax.f32 %v2396, %v2756
        %v2885 = vmax.f32 %v2399, %v2757
        %v2886 = vmax.f32 %v2404, %v2758
        %v2887 = vmax.f32 %v2407, %v2759
        %v2888 = vmax.f32 %v2412, %v2760
        %v2889 = vmax.f32 %v2415, %v2761
        %v2890 = vmax.f32 %v2420, %v2762
        %v2891 = vmax.f32 %v2423, %v2763
        %v2892 = vmax.f32 %v2428, %v2764
        %v2893 = vmax.f32 %v2431, %v2765
        %v2894 = vmax.f32 %v2436, %v2766
        %v2895 = vmax.f32 %v2439, %v2767
        %v2896 = vmax.f32 %v2444, %v2768
        %v2897 = vmax.f32 %v2447, %v2769
        %v2898 = vmax.f32 %v2452, %v2770
        %v2899 = vmax.f32 %v2455, %v2771
        %v2900 = vmax.f32 %v2460, %v2772
        %v2901 = vmax.f32 %v2463, %v2773
        %v2902 = vmax.f32 %v2468, %v2774
        %v2903 = vmax.f32 %v2471, %v2775
        %v2904 = vmax.f32 %v2476, %v2776
        %v2905 = vmax.f32 %v2479, %v2777
        %v2906 = vmax.f32 %v2484, %v2778
        %v2907 = vmax.f32 %v2487, %v2779
        %v2908 = vmax.f32 %v2492, %v2780
        %v2909 = vmax.f32 %v2495, %v2781
        %v2910 = vmax.f32 %v2500, %v2782
        %v2911 = vmax.f32 %v2503, %v2783
        %v2912 = vmax.f32 %v2508, %v2784
        %v2913 = vmax.f32 %v2511, %v2785
        %v2914 = vmax.f32 %v2516, %v2786
        %v2915 = vmax.f32 %v2519, %v2787
        %v2916 = vmax.f32 %v2524, %v2788
        %v2917 = vmax.f32 %v2527, %v2789
        %v2918 = vmax.f32 %v2532, %v2790
        %v2919 = vmax.f32 %v2535, %v2791
        %v2920 = vmax.f32 %v2540, %v2792
        %v2921 = vmax.f32 %v2543, %v2793
        %v2922 = vmax.f32 %v2548, %v2794
        %v2923 = vmax.f32 %v2551, %v2795
        %v2924 = vmax.f32 %v2556, %v2796
        %v2925 = vmax.f32 %v2559, %v2797
        %v2926 = vmax.f32 %v2564, %v2798
        %v2927 = vmax.f32 %v2567, %v2799
        %v2928 = vmax.f32 %v2572, %v2800
        %v2929 = vmax.f32 %v2575, %v2801
        %v2930 = vmax.f32 %v2580, %v2802
        %v2931 = vmax.f32 %v2583, %v2803
        %v2932 = vmax.f32 %v2588, %v2804
        %v2933 = vmax.f32 %v2591, %v2805
        %v2934 = vmax.f32 %v2596, %v2806
        %v2935 = vmax.f32 %v2599, %v2807
        %v2936 = vmax.f32 %v2604, %v2808
        %v2937 = vmax.f32 %v2607, %v2809
        %v2938 = vmax.f32 %v2612, %v2810
        %v2939 = vmax.f32 %v2615, %v2811
        %v2940 = vmax.f32 %v2620, %v2812
        %v2941 = vmax.f32 %v2623, %v2813
        %v2942 = vmax.f32 %v2628, %v2814
        %v2943 = vmax.f32 %v2631, %v2815
        %v2944 = vmax.f32 %v2636, %v2816
        %v2945 = vmax.f32 %v2639, %v2817
        %v2946 = vmax.f32 %v2644, %v2818
        %v2947 = vmax.f32 %v2647, %v2819
        %v2948 = vmax.f32 %v2652, %v2820
        %v2949 = vmax.f32 %v2655, %v2821
        %v2950 = vmax.f32 %v2660, %v2822
        %v2951 = vmax.f32 %v2663, %v2823
        %v2952 = vmax.f32 %v2668, %v2824
        %v2953 = vmax.f32 %v2671, %v2825
        %v2954 = vmax.f32 %v2676, %v2826
        %v2955 = vmax.f32 %v2679, %v2827
        %v2956 = vmax.f32 %v2684, %v2828
        %v2957 = vmax.f32 %v2687, %v2829
        %v2958 = vmax.f32 %v2692, %v2830
        %v2959 = vmax.f32 %v2695, %v2831
        %v2960 = vmax.f32 %v2700, %v2832
        %v2961 = vmax.f32 %v2703, %v2833
        %v2962 = vpack.c.bf16 %v2835, %v2834
        %v2963 = vpack.c.bf16 %v2837, %v2836
        %v2964 = vpack.c.bf16 %v2839, %v2838
        %v2965 = vpack.c.bf16 %v2841, %v2840
        %v2966 = vpack.c.bf16 %v2843, %v2842
        %v2967 = vpack.c.bf16 %v2845, %v2844
        %v2968 = vpack.c.bf16 %v2847, %v2846
        %v2969 = vpack.c.bf16 %v2849, %v2848
        %v2970 = vpack.c.bf16 %v2851, %v2850
        %v2971 = vpack.c.bf16 %v2853, %v2852
        %v2972 = vpack.c.bf16 %v2855, %v2854
        %v2973 = vpack.c.bf16 %v2857, %v2856
        %v2974 = vpack.c.bf16 %v2859, %v2858
        %v2975 = vpack.c.bf16 %v2861, %v2860
        %v2976 = vpack.c.bf16 %v2863, %v2862
        %v2977 = vpack.c.bf16 %v2865, %v2864
        %v2978 = vpack.c.bf16 %v2867, %v2866
        %v2979 = vpack.c.bf16 %v2869, %v2868
        %v2980 = vpack.c.bf16 %v2871, %v2870
        %v2981 = vpack.c.bf16 %v2873, %v2872
        %v2982 = vpack.c.bf16 %v2875, %v2874
        %v2983 = vpack.c.bf16 %v2877, %v2876
        %v2984 = vpack.c.bf16 %v2879, %v2878
        %v2985 = vpack.c.bf16 %v2881, %v2880
        %v2986 = vpack.c.bf16 %v2883, %v2882
        %v2987 = vpack.c.bf16 %v2885, %v2884
        %v2988 = vpack.c.bf16 %v2887, %v2886
        %v2989 = vpack.c.bf16 %v2889, %v2888
        %v2990 = vpack.c.bf16 %v2891, %v2890
        %v2991 = vpack.c.bf16 %v2893, %v2892
        %v2992 = vpack.c.bf16 %v2895, %v2894
        %v2993 = vpack.c.bf16 %v2897, %v2896
        %v2994 = vpack.c.bf16 %v2899, %v2898
        %v2995 = vpack.c.bf16 %v2901, %v2900
        %v2996 = vpack.c.bf16 %v2903, %v2902
        %v2997 = vpack.c.bf16 %v2905, %v2904
        %v2998 = vpack.c.bf16 %v2907, %v2906
        %v2999 = vpack.c.bf16 %v2909, %v2908
        %v3000 = vpack.c.bf16 %v2911, %v2910
        %v3001 = vpack.c.bf16 %v2913, %v2912
        %v3002 = vpack.c.bf16 %v2915, %v2914
        %v3003 = vpack.c.bf16 %v2917, %v2916
        %v3004 = vpack.c.bf16 %v2919, %v2918
        %v3005 = vpack.c.bf16 %v2921, %v2920
        %v3006 = vpack.c.bf16 %v2923, %v2922
        %v3007 = vpack.c.bf16 %v2925, %v2924
        %v3008 = vpack.c.bf16 %v2927, %v2926
        %v3009 = vpack.c.bf16 %v2929, %v2928
        %v3010 = vpack.c.bf16 %v2931, %v2930
        %v3011 = vpack.c.bf16 %v2933, %v2932
        %v3012 = vpack.c.bf16 %v2935, %v2934
        %v3013 = vpack.c.bf16 %v2937, %v2936
        %v3014 = vpack.c.bf16 %v2939, %v2938
        %v3015 = vpack.c.bf16 %v2941, %v2940
        %v3016 = vpack.c.bf16 %v2943, %v2942
        %v3017 = vpack.c.bf16 %v2945, %v2944
        %v3018 = vpack.c.bf16 %v2947, %v2946
        %v3019 = vpack.c.bf16 %v2949, %v2948
        %v3020 = vpack.c.bf16 %v2951, %v2950
        %v3021 = vpack.c.bf16 %v2953, %v2952
        %v3022 = vpack.c.bf16 %v2955, %v2954
        %v3023 = vpack.c.bf16 %v2957, %v2956
        %v3024 = vpack.c.bf16 %v2959, %v2958
        %v3025 = vpack.c.bf16 %v2961, %v2960
        %v3026 = vld [vmem:[%s5] sm:$0xf]
        %v3027 = vld [vmem:[%s5 + $0x4] sm:$0xf]
        %v3028 = vld [vmem:[%s5 + $0x8] sm:$0xf]
        %v3029 = vld [vmem:[%s5 + $0xc] sm:$0xf]
        %v3030 = vld [vmem:[%s6] sm:$0x1]
        %v3032 = vlaneseq
        %v3033 = vshrl.u32 %v3032, 7
        %v3034 = vsub.s32 0, %v3033
        %v3035 = vrot.slane %v3030, %v3034
        %v3041 = vunpack.c.l.b16 %v3026
        %v3042 = vunpack.c.l.b16 %v3027
        %v3043 = vunpack.c.l.b16 %v3028
        %v3044 = vunpack.c.l.b16 %v3029
        %v3045 = vpack.c.b16 %v3042, %v3041
        %v3046 = vpack.c.b16 %v3044, %v3043
        %vm3049 = vcmask 261120
        %v3051 = vsel %vm3049, %v2962, 0
        %v3054 = vsel %vm3049, %v2963, 0
        %v3057 = vsel %vm3049, %v2964, 0
        %v3060 = vsel %vm3049, %v2965, 0
        %v3063 = vsel %vm3049, %v2966, 0
        %v3066 = vsel %vm3049, %v2967, 0
        %v3069 = vsel %vm3049, %v2968, 0
        %v3072 = vsel %vm3049, %v2969, 0
        %v3075 = vsel %vm3049, %v2970, 0
        %v3078 = vsel %vm3049, %v2971, 0
        %v3081 = vsel %vm3049, %v2972, 0
        %v3084 = vsel %vm3049, %v2973, 0
        %v3087 = vsel %vm3049, %v2974, 0
        %v3090 = vsel %vm3049, %v2975, 0
        %v3093 = vsel %vm3049, %v2976, 0
        %v3096 = vsel %vm3049, %v2977, 0
        %v3099 = vsel %vm3049, %v2978, 0
        %v3102 = vsel %vm3049, %v2979, 0
        %v3105 = vsel %vm3049, %v2980, 0
        %v3108 = vsel %vm3049, %v2981, 0
        %v3111 = vsel %vm3049, %v2982, 0
        %v3114 = vsel %vm3049, %v2983, 0
        %v3117 = vsel %vm3049, %v2984, 0
        %v3120 = vsel %vm3049, %v2985, 0
        %v3123 = vsel %vm3049, %v2986, 0
        %v3126 = vsel %vm3049, %v2987, 0
        %v3129 = vsel %vm3049, %v2988, 0
        %v3132 = vsel %vm3049, %v2989, 0
        %v3135 = vsel %vm3049, %v2990, 0
        %v3138 = vsel %vm3049, %v2991, 0
        %v3141 = vsel %vm3049, %v2992, 0
        %v3144 = vsel %vm3049, %v2993, 0
        %v3147 = vsel %vm3049, %v2994, 0
        %v3150 = vsel %vm3049, %v2995, 0
        %v3153 = vsel %vm3049, %v2996, 0
        %v3156 = vsel %vm3049, %v2997, 0
        %v3159 = vsel %vm3049, %v2998, 0
        %v3162 = vsel %vm3049, %v2999, 0
        %v3165 = vsel %vm3049, %v3000, 0
        %v3168 = vsel %vm3049, %v3001, 0
        %v3171 = vsel %vm3049, %v3002, 0
        %v3174 = vsel %vm3049, %v3003, 0
        %v3177 = vsel %vm3049, %v3004, 0
        %v3180 = vsel %vm3049, %v3005, 0
        %v3183 = vsel %vm3049, %v3006, 0
        %v3186 = vsel %vm3049, %v3007, 0
        %v3189 = vsel %vm3049, %v3008, 0
        %v3192 = vsel %vm3049, %v3009, 0
        %v3195 = vsel %vm3049, %v3010, 0
        %v3198 = vsel %vm3049, %v3011, 0
        %v3201 = vsel %vm3049, %v3012, 0
        %v3204 = vsel %vm3049, %v3013, 0
        %v3207 = vsel %vm3049, %v3014, 0
        %v3210 = vsel %vm3049, %v3015, 0
        %v3213 = vsel %vm3049, %v3016, 0
        %v3216 = vsel %vm3049, %v3017, 0
        %v3219 = vsel %vm3049, %v3018, 0
        %v3222 = vsel %vm3049, %v3019, 0
        %v3225 = vsel %vm3049, %v3020, 0
        %v3228 = vsel %vm3049, %v3021, 0
        %v3231 = vsel %vm3049, %v3022, 0
        %v3234 = vsel %vm3049, %v3023, 0
        %v3237 = vsel %vm3049, %v3024, 0
        %v3240 = vsel %vm3049, %v3025, 0
        %3242 = vmatprep.subr.bf16.mxu0 0
        %3243 = vmatpush1.bf16.msra.mxu0 %v3045
        %3244 = vmatprep.subr.bf16.mxu0 0
        %3245 = vmatpush1.bf16.msra.mxu0 %v3046
        %3246 = vmatprep.subr.bf16.mxu0 0
        %3247 = vmatpush1.bf16.msra.mxu0 0
        %3248 = vmatprep.subr.bf16.mxu0 0
        %3249 = vmatpush1.bf16.msra.mxu0 0
        %3250 = vmatprep.subr.bf16.mxu0 0
        %3251 = vmatpush1.bf16.msra.mxu0 0
        %3252 = vmatprep.subr.bf16.mxu0 0
        %3253 = vmatpush1.bf16.msra.mxu0 0
        %3254 = vmatprep.subr.bf16.mxu0 0
        %3255 = vmatpush1.bf16.msra.mxu0 0
        %3256 = vmatprep.subr.bf16.mxu0 0
        %3257 = vmatpush1.bf16.msra.mxu0 0
        %3258 = vmatprep.subr.bf16.mxu0 0
        %3259 = vmatpush1.bf16.msra.mxu0 0
        %3260 = vmatprep.subr.bf16.mxu0 0
        %3261 = vmatpush1.bf16.msra.mxu0 0
        %3262 = vmatprep.subr.bf16.mxu0 0
        %3263 = vmatpush1.bf16.msra.mxu0 0
        %3264 = vmatprep.subr.bf16.mxu0 0
        %3265 = vmatpush1.bf16.msra.mxu0 0
        %3266 = vmatprep.subr.bf16.mxu0 0
        %3267 = vmatpush1.bf16.msra.mxu0 0
        %3268 = vmatprep.subr.bf16.mxu0 0
        %3269 = vmatpush1.bf16.msra.mxu0 0
        %3270 = vmatprep.subr.bf16.mxu0 0
        %3271 = vmatpush1.bf16.msra.mxu0 0
        %3272 = vmatprep.subr.bf16.mxu0 0
        %3273 = vmatpush1.bf16.msra.mxu0 0
        %3274 = vmatprep.mubr.bf16.mxu0 0
        %3275 = vmatmul.mubr.bf16.gmra.mrb[0].mxu0 %v3051
        %v3276 = vpop.f32.mrb[0].mxu0
        %v3277 = vadd.f32 %v3035, %v3276
        %v3278 = vpop.f32.mrb[0].mxu0
        %v3279 = vpop.f32.mrb[0].mxu0
        %v3280 = vadd.f32 %v3035, %v3279
        %v3281 = vpop.f32.mrb[0].mxu0
        %3282 = vmatprep.mubr.bf16.mxu0 0
        %3283 = vmatmul.mubr.bf16.gmra.mrb[0].mxu0 %v3054
        %v3284 = vpop.f32.mrb[0].mxu0
        %v3285 = vadd.f32 %v3035, %v3284
        %v3286 = vpop.f32.mrb[0].mxu0
        %v3287 = vpop.f32.mrb[0].mxu0
        %v3288 = vadd.f32 %v3035, %v3287
        %v3289 = vpop.f32.mrb[0].mxu0
        %3290 = vmatprep.mubr.bf16.mxu0 0
        %3291 = vmatmul.mubr.bf16.gmra.mrb[0].mxu0 %v3057
        %v3292 = vpop.f32.mrb[0].mxu0
        %v3293 = vadd.f32 %v3035, %v3292
        %v3294 = vpop.f32.mrb[0].mxu0
        %v3295 = vpop.f32.mrb[0].mxu0
        %v3296 = vadd.f32 %v3035, %v3295
        %v3297 = vpop.f32.mrb[0].mxu0
        %3298 = vmatprep.mubr.bf16.mxu0 0
        %3299 = vmatmul.mubr.bf16.gmra.mrb[0].mxu0 %v3060
        %v3300 = vpop.f32.mrb[0].mxu0
        %v3301 = vadd.f32 %v3035, %v3300
        %v3302 = vpop.f32.mrb[0].mxu0
        %v3303 = vpop.f32.mrb[0].mxu0
        %v3304 = vadd.f32 %v3035, %v3303
        %v3305 = vpop.f32.mrb[0].mxu0
        %3306 = vmatprep.mubr.bf16.mxu0 0
        %3307 = vmatmul.mubr.bf16.gmra.mrb[0].mxu0 %v3063
        %v3308 = vpop.f32.mrb[0].mxu0
        %v3309 = vadd.f32 %v3035, %v3308
        %v3310 = vpop.f32.mrb[0].mxu0
        %v3311 = vpop.f32.mrb[0].mxu0
        %v3312 = vadd.f32 %v3035, %v3311
        %v3313 = vpop.f32.mrb[0].mxu0
        %3314 = vmatprep.mubr.bf16.mxu0 0
        %3315 = vmatmul.mubr.bf16.gmra.mrb[0].mxu0 %v3066
        %v3316 = vpop.f32.mrb[0].mxu0
        %v3317 = vadd.f32 %v3035, %v3316
        %v3318 = vpop.f32.mrb[0].mxu0
        %v3319 = vpop.f32.mrb[0].mxu0
        %v3320 = vadd.f32 %v3035, %v3319
        %v3321 = vpop.f32.mrb[0].mxu0
        %3322 = vmatprep.mubr.bf16.mxu0 0
        %3323 = vmatmul.mubr.bf16.gmra.mrb[0].mxu0 %v3069
        %v3324 = vpop.f32.mrb[0].mxu0
        %v3325 = vadd.f32 %v3035, %v3324
        %v3326 = vpop.f32.mrb[0].mxu0
        %v3327 = vpop.f32.mrb[0].mxu0
        %v3328 = vadd.f32 %v3035, %v3327
        %v3329 = vpop.f32.mrb[0].mxu0
        %3330 = vmatprep.mubr.bf16.mxu0 0
        %3331 = vmatmul.mubr.bf16.gmra.mrb[0].mxu0 %v3072
        %v3332 = vpop.f32.mrb[0].mxu0
        %v3333 = vadd.f32 %v3035, %v3332
        %v3334 = vpop.f32.mrb[0].mxu0
        %v3335 = vpop.f32.mrb[0].mxu0
        %v3336 = vadd.f32 %v3035, %v3335
        %v3337 = vpop.f32.mrb[0].mxu0
        %3338 = vmatprep.mubr.bf16.mxu0 0
        %3339 = vmatmul.mubr.bf16.gmra.mrb[0].mxu0 %v3075
        %v3340 = vpop.f32.mrb[0].mxu0
        %v3341 = vadd.f32 %v3035, %v3340
        %v3342 = vpop.f32.mrb[0].mxu0
        %v3343 = vpop.f32.mrb[0].mxu0
        %v3344 = vadd.f32 %v3035, %v3343
        %v3345 = vpop.f32.mrb[0].mxu0
        %3346 = vmatprep.mubr.bf16.mxu0 0
        %3347 = vmatmul.mubr.bf16.gmra.mrb[0].mxu0 %v3078
        %v3348 = vpop.f32.mrb[0].mxu0
        %v3349 = vadd.f32 %v3035, %v3348
        %v3350 = vpop.f32.mrb[0].mxu0
        %v3351 = vpop.f32.mrb[0].mxu0
        %v3352 = vadd.f32 %v3035, %v3351
        %v3353 = vpop.f32.mrb[0].mxu0
        %3354 = vmatprep.mubr.bf16.mxu0 0
        %3355 = vmatmul.mubr.bf16.gmra.mrb[0].mxu0 %v3081
        %v3356 = vpop.f32.mrb[0].mxu0
        %v3357 = vadd.f32 %v3035, %v3356
        %v3358 = vpop.f32.mrb[0].mxu0
        %v3359 = vpop.f32.mrb[0].mxu0
        %v3360 = vadd.f32 %v3035, %v3359
        %v3361 = vpop.f32.mrb[0].mxu0
        %3362 = vmatprep.mubr.bf16.mxu0 0
        %3363 = vmatmul.mubr.bf16.gmra.mrb[0].mxu0 %v3084
        %v3364 = vpop.f32.mrb[0].mxu0
        %v3365 = vadd.f32 %v3035, %v3364
        %v3366 = vpop.f32.mrb[0].mxu0
        %v3367 = vpop.f32.mrb[0].mxu0
        %v3368 = vadd.f32 %v3035, %v3367
        %v3369 = vpop.f32.mrb[0].mxu0
        %3370 = vmatprep.mubr.bf16.mxu0 0
        %3371 = vmatmul.mubr.bf16.gmra.mrb[0].mxu0 %v3087
        %v3372 = vpop.f32.mrb[0].mxu0
        %v3373 = vadd.f32 %v3035, %v3372
        %v3374 = vpop.f32.mrb[0].mxu0
        %v3375 = vpop.f32.mrb[0].mxu0
        %v3376 = vadd.f32 %v3035, %v3375
        %v3377 = vpop.f32.mrb[0].mxu0
        %3378 = vmatprep.mubr.bf16.mxu0 0
        %3379 = vmatmul.mubr.bf16.gmra.mrb[0].mxu0 %v3090
        %v3380 = vpop.f32.mrb[0].mxu0
        %v3381 = vadd.f32 %v3035, %v3380
        %v3382 = vpop.f32.mrb[0].mxu0
        %v3383 = vpop.f32.mrb[0].mxu0
        %v3384 = vadd.f32 %v3035, %v3383
        %v3385 = vpop.f32.mrb[0].mxu0
        %3386 = vmatprep.mubr.bf16.mxu0 0
        %3387 = vmatmul.mubr.bf16.gmra.mrb[0].mxu0 %v3093
        %v3388 = vpop.f32.mrb[0].mxu0
        %v3389 = vadd.f32 %v3035, %v3388
        %v3390 = vpop.f32.mrb[0].mxu0
        %v3391 = vpop.f32.mrb[0].mxu0
        %v3392 = vadd.f32 %v3035, %v3391
        %v3393 = vpop.f32.mrb[0].mxu0
        %3394 = vmatprep.mubr.bf16.mxu0 0
        %3395 = vmatmul.mubr.bf16.gmra.mrb[0].mxu0 %v3096
        %v3396 = vpop.f32.mrb[0].mxu0
        %v3397 = vadd.f32 %v3035, %v3396
        %v3398 = vpop.f32.mrb[0].mxu0
        %v3399 = vpop.f32.mrb[0].mxu0
        %v3400 = vadd.f32 %v3035, %v3399
        %v3401 = vpop.f32.mrb[0].mxu0
        %3402 = vmatprep.mubr.bf16.mxu0 0
        %3403 = vmatmul.mubr.bf16.gmra.mrb[0].mxu0 %v3099
        %v3404 = vpop.f32.mrb[0].mxu0
        %v3405 = vadd.f32 %v3035, %v3404
        %v3406 = vpop.f32.mrb[0].mxu0
        %v3407 = vpop.f32.mrb[0].mxu0
        %v3408 = vadd.f32 %v3035, %v3407
        %v3409 = vpop.f32.mrb[0].mxu0
        %3410 = vmatprep.mubr.bf16.mxu0 0
        %3411 = vmatmul.mubr.bf16.gmra.mrb[0].mxu0 %v3102
        %v3412 = vpop.f32.mrb[0].mxu0
        %v3413 = vadd.f32 %v3035, %v3412
        %v3414 = vpop.f32.mrb[0].mxu0
        %v3415 = vpop.f32.mrb[0].mxu0
        %v3416 = vadd.f32 %v3035, %v3415
        %v3417 = vpop.f32.mrb[0].mxu0
        %3418 = vmatprep.mubr.bf16.mxu0 0
        %3419 = vmatmul.mubr.bf16.gmra.mrb[0].mxu0 %v3105
        %v3420 = vpop.f32.mrb[0].mxu0
        %v3421 = vadd.f32 %v3035, %v3420
        %v3422 = vpop.f32.mrb[0].mxu0
        %v3423 = vpop.f32.mrb[0].mxu0
        %v3424 = vadd.f32 %v3035, %v3423
        %v3425 = vpop.f32.mrb[0].mxu0
        %3426 = vmatprep.mubr.bf16.mxu0 0
        %3427 = vmatmul.mubr.bf16.gmra.mrb[0].mxu0 %v3108
        %v3428 = vpop.f32.mrb[0].mxu0
        %v3429 = vadd.f32 %v3035, %v3428
        %v3430 = vpop.f32.mrb[0].mxu0
        %v3431 = vpop.f32.mrb[0].mxu0
        %v3432 = vadd.f32 %v3035, %v3431
        %v3433 = vpop.f32.mrb[0].mxu0
        %3434 = vmatprep.mubr.bf16.mxu0 0
        %3435 = vmatmul.mubr.bf16.gmra.mrb[0].mxu0 %v3111
        %v3436 = vpop.f32.mrb[0].mxu0
        %v3437 = vadd.f32 %v3035, %v3436
        %v3438 = vpop.f32.mrb[0].mxu0
        %v3439 = vpop.f32.mrb[0].mxu0
        %v3440 = vadd.f32 %v3035, %v3439
        %v3441 = vpop.f32.mrb[0].mxu0
        %3442 = vmatprep.mubr.bf16.mxu0 0
        %3443 = vmatmul.mubr.bf16.gmra.mrb[0].mxu0 %v3114
        %v3444 = vpop.f32.mrb[0].mxu0
        %v3445 = vadd.f32 %v3035, %v3444
        %v3446 = vpop.f32.mrb[0].mxu0
        %v3447 = vpop.f32.mrb[0].mxu0
        %v3448 = vadd.f32 %v3035, %v3447
        %v3449 = vpop.f32.mrb[0].mxu0
        %3450 = vmatprep.mubr.bf16.mxu0 0
        %3451 = vmatmul.mubr.bf16.gmra.mrb[0].mxu0 %v3117
        %v3452 = vpop.f32.mrb[0].mxu0
        %v3453 = vadd.f32 %v3035, %v3452
        %v3454 = vpop.f32.mrb[0].mxu0
        %v3455 = vpop.f32.mrb[0].mxu0
        %v3456 = vadd.f32 %v3035, %v3455
        %v3457 = vpop.f32.mrb[0].mxu0
        %3458 = vmatprep.mubr.bf16.mxu0 0
        %3459 = vmatmul.mubr.bf16.gmra.mrb[0].mxu0 %v3120
        %v3460 = vpop.f32.mrb[0].mxu0
        %v3461 = vadd.f32 %v3035, %v3460
        %v3462 = vpop.f32.mrb[0].mxu0
        %v3463 = vpop.f32.mrb[0].mxu0
        %v3464 = vadd.f32 %v3035, %v3463
        %v3465 = vpop.f32.mrb[0].mxu0
        %3466 = vmatprep.mubr.bf16.mxu0 0
        %3467 = vmatmul.mubr.bf16.gmra.mrb[0].mxu0 %v3123
        %v3468 = vpop.f32.mrb[0].mxu0
        %v3469 = vadd.f32 %v3035, %v3468
        %v3470 = vpop.f32.mrb[0].mxu0
        %v3471 = vpop.f32.mrb[0].mxu0
        %v3472 = vadd.f32 %v3035, %v3471
        %v3473 = vpop.f32.mrb[0].mxu0
        %3474 = vmatprep.mubr.bf16.mxu0 0
        %3475 = vmatmul.mubr.bf16.gmra.mrb[0].mxu0 %v3126
        %v3476 = vpop.f32.mrb[0].mxu0
        %v3477 = vadd.f32 %v3035, %v3476
        %v3478 = vpop.f32.mrb[0].mxu0
        %v3479 = vpop.f32.mrb[0].mxu0
        %v3480 = vadd.f32 %v3035, %v3479
        %v3481 = vpop.f32.mrb[0].mxu0
        %3482 = vmatprep.mubr.bf16.mxu0 0
        %3483 = vmatmul.mubr.bf16.gmra.mrb[0].mxu0 %v3129
        %v3484 = vpop.f32.mrb[0].mxu0
        %v3485 = vadd.f32 %v3035, %v3484
        %v3486 = vpop.f32.mrb[0].mxu0
        %v3487 = vpop.f32.mrb[0].mxu0
        %v3488 = vadd.f32 %v3035, %v3487
        %v3489 = vpop.f32.mrb[0].mxu0
        %3490 = vmatprep.mubr.bf16.mxu0 0
        %3491 = vmatmul.mubr.bf16.gmra.mrb[0].mxu0 %v3132
        %v3492 = vpop.f32.mrb[0].mxu0
        %v3493 = vadd.f32 %v3035, %v3492
        %v3494 = vpop.f32.mrb[0].mxu0
        %v3495 = vpop.f32.mrb[0].mxu0
        %v3496 = vadd.f32 %v3035, %v3495
        %v3497 = vpop.f32.mrb[0].mxu0
        %3498 = vmatprep.mubr.bf16.mxu0 0
        %3499 = vmatmul.mubr.bf16.gmra.mrb[0].mxu0 %v3135
        %v3500 = vpop.f32.mrb[0].mxu0
        %v3501 = vadd.f32 %v3035, %v3500
        %v3502 = vpop.f32.mrb[0].mxu0
        %v3503 = vpop.f32.mrb[0].mxu0
        %v3504 = vadd.f32 %v3035, %v3503
        %v3505 = vpop.f32.mrb[0].mxu0
        %3506 = vmatprep.mubr.bf16.mxu0 0
        %3507 = vmatmul.mubr.bf16.gmra.mrb[0].mxu0 %v3138
        %v3508 = vpop.f32.mrb[0].mxu0
        %v3509 = vadd.f32 %v3035, %v3508
        %v3510 = vpop.f32.mrb[0].mxu0
        %v3511 = vpop.f32.mrb[0].mxu0
        %v3512 = vadd.f32 %v3035, %v3511
        %v3513 = vpop.f32.mrb[0].mxu0
        %3514 = vmatprep.mubr.bf16.mxu0 0
        %3515 = vmatmul.mubr.bf16.gmra.mrb[0].mxu0 %v3141
        %v3516 = vpop.f32.mrb[0].mxu0
        %v3517 = vadd.f32 %v3035, %v3516
        %v3518 = vpop.f32.mrb[0].mxu0
        %v3519 = vpop.f32.mrb[0].mxu0
        %v3520 = vadd.f32 %v3035, %v3519
        %v3521 = vpop.f32.mrb[0].mxu0
        %3522 = vmatprep.mubr.bf16.mxu0 0
        %3523 = vmatmul.mubr.bf16.gmra.mrb[0].mxu0 %v3144
        %v3524 = vpop.f32.mrb[0].mxu0
        %v3525 = vadd.f32 %v3035, %v3524
        %v3526 = vpop.f32.mrb[0].mxu0
        %v3527 = vpop.f32.mrb[0].mxu0
        %v3528 = vadd.f32 %v3035, %v3527
        %v3529 = vpop.f32.mrb[0].mxu0
        %3530 = vmatprep.mubr.bf16.mxu0 0
        %3531 = vmatmul.mubr.bf16.gmra.mrb[0].mxu0 %v3147
        %v3532 = vpop.f32.mrb[0].mxu0
        %v3533 = vadd.f32 %v3035, %v3532
        %v3534 = vpop.f32.mrb[0].mxu0
        %v3535 = vpop.f32.mrb[0].mxu0
        %v3536 = vadd.f32 %v3035, %v3535
        %v3537 = vpop.f32.mrb[0].mxu0
        %3538 = vmatprep.mubr.bf16.mxu0 0
        %3539 = vmatmul.mubr.bf16.gmra.mrb[0].mxu0 %v3150
        %v3540 = vpop.f32.mrb[0].mxu0
        %v3541 = vadd.f32 %v3035, %v3540
        %v3542 = vpop.f32.mrb[0].mxu0
        %v3543 = vpop.f32.mrb[0].mxu0
        %v3544 = vadd.f32 %v3035, %v3543
        %v3545 = vpop.f32.mrb[0].mxu0
        %3546 = vmatprep.mubr.bf16.mxu0 0
        %3547 = vmatmul.mubr.bf16.gmra.mrb[0].mxu0 %v3153
        %v3548 = vpop.f32.mrb[0].mxu0
        %v3549 = vadd.f32 %v3035, %v3548
        %v3550 = vpop.f32.mrb[0].mxu0
        %v3551 = vpop.f32.mrb[0].mxu0
        %v3552 = vadd.f32 %v3035, %v3551
        %v3553 = vpop.f32.mrb[0].mxu0
        %3554 = vmatprep.mubr.bf16.mxu0 0
        %3555 = vmatmul.mubr.bf16.gmra.mrb[0].mxu0 %v3156
        %v3556 = vpop.f32.mrb[0].mxu0
        %v3557 = vadd.f32 %v3035, %v3556
        %v3558 = vpop.f32.mrb[0].mxu0
        %v3559 = vpop.f32.mrb[0].mxu0
        %v3560 = vadd.f32 %v3035, %v3559
        %v3561 = vpop.f32.mrb[0].mxu0
        %3562 = vmatprep.mubr.bf16.mxu0 0
        %3563 = vmatmul.mubr.bf16.gmra.mrb[0].mxu0 %v3159
        %v3564 = vpop.f32.mrb[0].mxu0
        %v3565 = vadd.f32 %v3035, %v3564
        %v3566 = vpop.f32.mrb[0].mxu0
        %v3567 = vpop.f32.mrb[0].mxu0
        %v3568 = vadd.f32 %v3035, %v3567
        %v3569 = vpop.f32.mrb[0].mxu0
        %3570 = vmatprep.mubr.bf16.mxu0 0
        %3571 = vmatmul.mubr.bf16.gmra.mrb[0].mxu0 %v3162
        %v3572 = vpop.f32.mrb[0].mxu0
        %v3573 = vadd.f32 %v3035, %v3572
        %v3574 = vpop.f32.mrb[0].mxu0
        %v3575 = vpop.f32.mrb[0].mxu0
        %v3576 = vadd.f32 %v3035, %v3575
        %v3577 = vpop.f32.mrb[0].mxu0
        %3578 = vmatprep.mubr.bf16.mxu0 0
        %3579 = vmatmul.mubr.bf16.gmra.mrb[0].mxu0 %v3165
        %v3580 = vpop.f32.mrb[0].mxu0
        %v3581 = vadd.f32 %v3035, %v3580
        %v3582 = vpop.f32.mrb[0].mxu0
        %v3583 = vpop.f32.mrb[0].mxu0
        %v3584 = vadd.f32 %v3035, %v3583
        %v3585 = vpop.f32.mrb[0].mxu0
        %3586 = vmatprep.mubr.bf16.mxu0 0
        %3587 = vmatmul.mubr.bf16.gmra.mrb[0].mxu0 %v3168
        %v3588 = vpop.f32.mrb[0].mxu0
        %v3589 = vadd.f32 %v3035, %v3588
        %v3590 = vpop.f32.mrb[0].mxu0
        %v3591 = vpop.f32.mrb[0].mxu0
        %v3592 = vadd.f32 %v3035, %v3591
        %v3593 = vpop.f32.mrb[0].mxu0
        %3594 = vmatprep.mubr.bf16.mxu0 0
        %3595 = vmatmul.mubr.bf16.gmra.mrb[0].mxu0 %v3171
        %v3596 = vpop.f32.mrb[0].mxu0
        %v3597 = vadd.f32 %v3035, %v3596
        %v3598 = vpop.f32.mrb[0].mxu0
        %v3599 = vpop.f32.mrb[0].mxu0
        %v3600 = vadd.f32 %v3035, %v3599
        %v3601 = vpop.f32.mrb[0].mxu0
        %3602 = vmatprep.mubr.bf16.mxu0 0
        %3603 = vmatmul.mubr.bf16.gmra.mrb[0].mxu0 %v3174
        %v3604 = vpop.f32.mrb[0].mxu0
        %v3605 = vadd.f32 %v3035, %v3604
        %v3606 = vpop.f32.mrb[0].mxu0
        %v3607 = vpop.f32.mrb[0].mxu0
        %v3608 = vadd.f32 %v3035, %v3607
        %v3609 = vpop.f32.mrb[0].mxu0
        %3610 = vmatprep.mubr.bf16.mxu0 0
        %3611 = vmatmul.mubr.bf16.gmra.mrb[0].mxu0 %v3177
        %v3612 = vpop.f32.mrb[0].mxu0
        %v3613 = vadd.f32 %v3035, %v3612
        %v3614 = vpop.f32.mrb[0].mxu0
        %v3615 = vpop.f32.mrb[0].mxu0
        %v3616 = vadd.f32 %v3035, %v3615
        %v3617 = vpop.f32.mrb[0].mxu0
        %3618 = vmatprep.mubr.bf16.mxu0 0
        %3619 = vmatmul.mubr.bf16.gmra.mrb[0].mxu0 %v3180
        %v3620 = vpop.f32.mrb[0].mxu0
        %v3621 = vadd.f32 %v3035, %v3620
        %v3622 = vpop.f32.mrb[0].mxu0
        %v3623 = vpop.f32.mrb[0].mxu0
        %v3624 = vadd.f32 %v3035, %v3623
        %v3625 = vpop.f32.mrb[0].mxu0
        %3626 = vmatprep.mubr.bf16.mxu0 0
        %3627 = vmatmul.mubr.bf16.gmra.mrb[0].mxu0 %v3183
        %v3628 = vpop.f32.mrb[0].mxu0
        %v3629 = vadd.f32 %v3035, %v3628
        %v3630 = vpop.f32.mrb[0].mxu0
        %v3631 = vpop.f32.mrb[0].mxu0
        %v3632 = vadd.f32 %v3035, %v3631
        %v3633 = vpop.f32.mrb[0].mxu0
        %3634 = vmatprep.mubr.bf16.mxu0 0
        %3635 = vmatmul.mubr.bf16.gmra.mrb[0].mxu0 %v3186
        %v3636 = vpop.f32.mrb[0].mxu0
        %v3637 = vadd.f32 %v3035, %v3636
        %v3638 = vpop.f32.mrb[0].mxu0
        %v3639 = vpop.f32.mrb[0].mxu0
        %v3640 = vadd.f32 %v3035, %v3639
        %v3641 = vpop.f32.mrb[0].mxu0
        %3642 = vmatprep.mubr.bf16.mxu0 0
        %3643 = vmatmul.mubr.bf16.gmra.mrb[0].mxu0 %v3189
        %v3644 = vpop.f32.mrb[0].mxu0
        %v3645 = vadd.f32 %v3035, %v3644
        %v3646 = vpop.f32.mrb[0].mxu0
        %v3647 = vpop.f32.mrb[0].mxu0
        %v3648 = vadd.f32 %v3035, %v3647
        %v3649 = vpop.f32.mrb[0].mxu0
        %3650 = vmatprep.mubr.bf16.mxu0 0
        %3651 = vmatmul.mubr.bf16.gmra.mrb[0].mxu0 %v3192
        %v3652 = vpop.f32.mrb[0].mxu0
        %v3653 = vadd.f32 %v3035, %v3652
        %v3654 = vpop.f32.mrb[0].mxu0
        %v3655 = vpop.f32.mrb[0].mxu0
        %v3656 = vadd.f32 %v3035, %v3655
        %v3657 = vpop.f32.mrb[0].mxu0
        %3658 = vmatprep.mubr.bf16.mxu0 0
        %3659 = vmatmul.mubr.bf16.gmra.mrb[0].mxu0 %v3195
        %v3660 = vpop.f32.mrb[0].mxu0
        %v3661 = vadd.f32 %v3035, %v3660
        %v3662 = vpop.f32.mrb[0].mxu0
        %v3663 = vpop.f32.mrb[0].mxu0
        %v3664 = vadd.f32 %v3035, %v3663
        %v3665 = vpop.f32.mrb[0].mxu0
        %3666 = vmatprep.mubr.bf16.mxu0 0
        %3667 = vmatmul.mubr.bf16.gmra.mrb[0].mxu0 %v3198
        %v3668 = vpop.f32.mrb[0].mxu0
        %v3669 = vadd.f32 %v3035, %v3668
        %v3670 = vpop.f32.mrb[0].mxu0
        %v3671 = vpop.f32.mrb[0].mxu0
        %v3672 = vadd.f32 %v3035, %v3671
        %v3673 = vpop.f32.mrb[0].mxu0
        %3674 = vmatprep.mubr.bf16.mxu0 0
        %3675 = vmatmul.mubr.bf16.gmra.mrb[0].mxu0 %v3201
        %v3676 = vpop.f32.mrb[0].mxu0
        %v3677 = vadd.f32 %v3035, %v3676
        %v3678 = vpop.f32.mrb[0].mxu0
        %v3679 = vpop.f32.mrb[0].mxu0
        %v3680 = vadd.f32 %v3035, %v3679
        %v3681 = vpop.f32.mrb[0].mxu0
        %3682 = vmatprep.mubr.bf16.mxu0 0
        %3683 = vmatmul.mubr.bf16.gmra.mrb[0].mxu0 %v3204
        %v3684 = vpop.f32.mrb[0].mxu0
        %v3685 = vadd.f32 %v3035, %v3684
        %v3686 = vpop.f32.mrb[0].mxu0
        %v3687 = vpop.f32.mrb[0].mxu0
        %v3688 = vadd.f32 %v3035, %v3687
        %v3689 = vpop.f32.mrb[0].mxu0
        %3690 = vmatprep.mubr.bf16.mxu0 0
        %3691 = vmatmul.mubr.bf16.gmra.mrb[0].mxu0 %v3207
        %v3692 = vpop.f32.mrb[0].mxu0
        %v3693 = vadd.f32 %v3035, %v3692
        %v3694 = vpop.f32.mrb[0].mxu0
        %v3695 = vpop.f32.mrb[0].mxu0
        %v3696 = vadd.f32 %v3035, %v3695
        %v3697 = vpop.f32.mrb[0].mxu0
        %3698 = vmatprep.mubr.bf16.mxu0 0
        %3699 = vmatmul.mubr.bf16.gmra.mrb[0].mxu0 %v3210
        %v3700 = vpop.f32.mrb[0].mxu0
        %v3701 = vadd.f32 %v3035, %v3700
        %v3702 = vpop.f32.mrb[0].mxu0
        %v3703 = vpop.f32.mrb[0].mxu0
        %v3704 = vadd.f32 %v3035, %v3703
        %v3705 = vpop.f32.mrb[0].mxu0
        %3706 = vmatprep.mubr.bf16.mxu0 0
        %3707 = vmatmul.mubr.bf16.gmra.mrb[0].mxu0 %v3213
        %v3708 = vpop.f32.mrb[0].mxu0
        %v3709 = vadd.f32 %v3035, %v3708
        %v3710 = vpop.f32.mrb[0].mxu0
        %v3711 = vpop.f32.mrb[0].mxu0
        %v3712 = vadd.f32 %v3035, %v3711
        %v3713 = vpop.f32.mrb[0].mxu0
        %3714 = vmatprep.mubr.bf16.mxu0 0
        %3715 = vmatmul.mubr.bf16.gmra.mrb[0].mxu0 %v3216
        %v3716 = vpop.f32.mrb[0].mxu0
        %v3717 = vadd.f32 %v3035, %v3716
        %v3718 = vpop.f32.mrb[0].mxu0
        %v3719 = vpop.f32.mrb[0].mxu0
        %v3720 = vadd.f32 %v3035, %v3719
        %v3721 = vpop.f32.mrb[0].mxu0
        %3722 = vmatprep.mubr.bf16.mxu0 0
        %3723 = vmatmul.mubr.bf16.gmra.mrb[0].mxu0 %v3219
        %v3724 = vpop.f32.mrb[0].mxu0
        %v3725 = vadd.f32 %v3035, %v3724
        %v3726 = vpop.f32.mrb[0].mxu0
        %v3727 = vpop.f32.mrb[0].mxu0
        %v3728 = vadd.f32 %v3035, %v3727
        %v3729 = vpop.f32.mrb[0].mxu0
        %3730 = vmatprep.mubr.bf16.mxu0 0
        %3731 = vmatmul.mubr.bf16.gmra.mrb[0].mxu0 %v3222
        %v3732 = vpop.f32.mrb[0].mxu0
        %v3733 = vadd.f32 %v3035, %v3732
        %v3734 = vpop.f32.mrb[0].mxu0
        %v3735 = vpop.f32.mrb[0].mxu0
        %v3736 = vadd.f32 %v3035, %v3735
        %v3737 = vpop.f32.mrb[0].mxu0
        %3738 = vmatprep.mubr.bf16.mxu0 0
        %3739 = vmatmul.mubr.bf16.gmra.mrb[0].mxu0 %v3225
        %v3740 = vpop.f32.mrb[0].mxu0
        %v3741 = vadd.f32 %v3035, %v3740
        %v3742 = vpop.f32.mrb[0].mxu0
        %v3743 = vpop.f32.mrb[0].mxu0
        %v3744 = vadd.f32 %v3035, %v3743
        %v3745 = vpop.f32.mrb[0].mxu0
        %3746 = vmatprep.mubr.bf16.mxu0 0
        %3747 = vmatmul.mubr.bf16.gmra.mrb[0].mxu0 %v3228
        %v3748 = vpop.f32.mrb[0].mxu0
        %v3749 = vadd.f32 %v3035, %v3748
        %v3750 = vpop.f32.mrb[0].mxu0
        %v3751 = vpop.f32.mrb[0].mxu0
        %v3752 = vadd.f32 %v3035, %v3751
        %v3753 = vpop.f32.mrb[0].mxu0
        %3754 = vmatprep.mubr.bf16.mxu0 0
        %3755 = vmatmul.mubr.bf16.gmra.mrb[0].mxu0 %v3231
        %v3756 = vpop.f32.mrb[0].mxu0
        %v3757 = vadd.f32 %v3035, %v3756
        %v3758 = vpop.f32.mrb[0].mxu0
        %v3759 = vpop.f32.mrb[0].mxu0
        %v3760 = vadd.f32 %v3035, %v3759
        %v3761 = vpop.f32.mrb[0].mxu0
        %3762 = vmatprep.mubr.bf16.mxu0 0
        %3763 = vmatmul.mubr.bf16.gmra.mrb[0].mxu0 %v3234
        %v3764 = vpop.f32.mrb[0].mxu0
        %v3765 = vadd.f32 %v3035, %v3764
        %v3766 = vpop.f32.mrb[0].mxu0
        %v3767 = vpop.f32.mrb[0].mxu0
        %v3768 = vadd.f32 %v3035, %v3767
        %v3769 = vpop.f32.mrb[0].mxu0
        %3770 = vmatprep.mubr.bf16.mxu0 0
        %3771 = vmatmul.mubr.bf16.gmra.mrb[0].mxu0 %v3237
        %v3772 = vpop.f32.mrb[0].mxu0
        %v3773 = vadd.f32 %v3035, %v3772
        %v3774 = vpop.f32.mrb[0].mxu0
        %v3775 = vpop.f32.mrb[0].mxu0
        %v3776 = vadd.f32 %v3035, %v3775
        %v3777 = vpop.f32.mrb[0].mxu0
        %3778 = vmatprep.mubr.bf16.mxu0 0
        %3779 = vmatmul.mubr.bf16.gmra.mrb[0].mxu0 %v3240
        %v3780 = vpop.f32.mrb[0].mxu0
        %v3781 = vadd.f32 %v3035, %v3780
        %v3782 = vpop.f32.mrb[0].mxu0
        %v3783 = vpop.f32.mrb[0].mxu0
        %v3784 = vadd.f32 %v3035, %v3783
        %v3785 = vpop.f32.mrb[0].mxu0
        %3786 = vdwg.mxu0
        %v3787 = vmul.f32 %v3277, 0.1
        %v3788 = vmul.f32 %v3280, 0.1
        %v3789 = vmul.f32 %v3285, 0.1
        %v3790 = vmul.f32 %v3288, 0.1
        %v3791 = vmul.f32 %v3293, 0.1
        %v3792 = vmul.f32 %v3296, 0.1
        %v3793 = vmul.f32 %v3301, 0.1
        %v3794 = vmul.f32 %v3304, 0.1
        %v3795 = vmul.f32 %v3309, 0.1
        %v3796 = vmul.f32 %v3312, 0.1
        %v3797 = vmul.f32 %v3317, 0.1
        %v3798 = vmul.f32 %v3320, 0.1
        %v3799 = vmul.f32 %v3325, 0.1
        %v3800 = vmul.f32 %v3328, 0.1
        %v3801 = vmul.f32 %v3333, 0.1
        %v3802 = vmul.f32 %v3336, 0.1
        %v3803 = vmul.f32 %v3341, 0.1
        %v3804 = vmul.f32 %v3344, 0.1
        %v3805 = vmul.f32 %v3349, 0.1
        %v3806 = vmul.f32 %v3352, 0.1
        %v3807 = vmul.f32 %v3357, 0.1
        %v3808 = vmul.f32 %v3360, 0.1
        %v3809 = vmul.f32 %v3365, 0.1
        %v3810 = vmul.f32 %v3368, 0.1
        %v3811 = vmul.f32 %v3373, 0.1
        %v3812 = vmul.f32 %v3376, 0.1
        %v3813 = vmul.f32 %v3381, 0.1
        %v3814 = vmul.f32 %v3384, 0.1
        %v3815 = vmul.f32 %v3389, 0.1
        %v3816 = vmul.f32 %v3392, 0.1
        %v3817 = vmul.f32 %v3397, 0.1
        %v3818 = vmul.f32 %v3400, 0.1
        %v3819 = vmul.f32 %v3405, 0.1
        %v3820 = vmul.f32 %v3408, 0.1
        %v3821 = vmul.f32 %v3413, 0.1
        %v3822 = vmul.f32 %v3416, 0.1
        %v3823 = vmul.f32 %v3421, 0.1
        %v3824 = vmul.f32 %v3424, 0.1
        %v3825 = vmul.f32 %v3429, 0.1
        %v3826 = vmul.f32 %v3432, 0.1
        %v3827 = vmul.f32 %v3437, 0.1
        %v3828 = vmul.f32 %v3440, 0.1
        %v3829 = vmul.f32 %v3445, 0.1
        %v3830 = vmul.f32 %v3448, 0.1
        %v3831 = vmul.f32 %v3453, 0.1
        %v3832 = vmul.f32 %v3456, 0.1
        %v3833 = vmul.f32 %v3461, 0.1
        %v3834 = vmul.f32 %v3464, 0.1
        %v3835 = vmul.f32 %v3469, 0.1
        %v3836 = vmul.f32 %v3472, 0.1
        %v3837 = vmul.f32 %v3477, 0.1
        %v3838 = vmul.f32 %v3480, 0.1
        %v3839 = vmul.f32 %v3485, 0.1
        %v3840 = vmul.f32 %v3488, 0.1
        %v3841 = vmul.f32 %v3493, 0.1
        %v3842 = vmul.f32 %v3496, 0.1
        %v3843 = vmul.f32 %v3501, 0.1
        %v3844 = vmul.f32 %v3504, 0.1
        %v3845 = vmul.f32 %v3509, 0.1
        %v3846 = vmul.f32 %v3512, 0.1
        %v3847 = vmul.f32 %v3517, 0.1
        %v3848 = vmul.f32 %v3520, 0.1
        %v3849 = vmul.f32 %v3525, 0.1
        %v3850 = vmul.f32 %v3528, 0.1
        %v3851 = vmul.f32 %v3533, 0.1
        %v3852 = vmul.f32 %v3536, 0.1
        %v3853 = vmul.f32 %v3541, 0.1
        %v3854 = vmul.f32 %v3544, 0.1
        %v3855 = vmul.f32 %v3549, 0.1
        %v3856 = vmul.f32 %v3552, 0.1
        %v3857 = vmul.f32 %v3557, 0.1
        %v3858 = vmul.f32 %v3560, 0.1
        %v3859 = vmul.f32 %v3565, 0.1
        %v3860 = vmul.f32 %v3568, 0.1
        %v3861 = vmul.f32 %v3573, 0.1
        %v3862 = vmul.f32 %v3576, 0.1
        %v3863 = vmul.f32 %v3581, 0.1
        %v3864 = vmul.f32 %v3584, 0.1
        %v3865 = vmul.f32 %v3589, 0.1
        %v3866 = vmul.f32 %v3592, 0.1
        %v3867 = vmul.f32 %v3597, 0.1
        %v3868 = vmul.f32 %v3600, 0.1
        %v3869 = vmul.f32 %v3605, 0.1
        %v3870 = vmul.f32 %v3608, 0.1
        %v3871 = vmul.f32 %v3613, 0.1
        %v3872 = vmul.f32 %v3616, 0.1
        %v3873 = vmul.f32 %v3621, 0.1
        %v3874 = vmul.f32 %v3624, 0.1
        %v3875 = vmul.f32 %v3629, 0.1
        %v3876 = vmul.f32 %v3632, 0.1
        %v3877 = vmul.f32 %v3637, 0.1
        %v3878 = vmul.f32 %v3640, 0.1
        %v3879 = vmul.f32 %v3645, 0.1
        %v3880 = vmul.f32 %v3648, 0.1
        %v3881 = vmul.f32 %v3653, 0.1
        %v3882 = vmul.f32 %v3656, 0.1
        %v3883 = vmul.f32 %v3661, 0.1
        %v3884 = vmul.f32 %v3664, 0.1
        %v3885 = vmul.f32 %v3669, 0.1
        %v3886 = vmul.f32 %v3672, 0.1
        %v3887 = vmul.f32 %v3677, 0.1
        %v3888 = vmul.f32 %v3680, 0.1
        %v3889 = vmul.f32 %v3685, 0.1
        %v3890 = vmul.f32 %v3688, 0.1
        %v3891 = vmul.f32 %v3693, 0.1
        %v3892 = vmul.f32 %v3696, 0.1
        %v3893 = vmul.f32 %v3701, 0.1
        %v3894 = vmul.f32 %v3704, 0.1
        %v3895 = vmul.f32 %v3709, 0.1
        %v3896 = vmul.f32 %v3712, 0.1
        %v3897 = vmul.f32 %v3717, 0.1
        %v3898 = vmul.f32 %v3720, 0.1
        %v3899 = vmul.f32 %v3725, 0.1
        %v3900 = vmul.f32 %v3728, 0.1
        %v3901 = vmul.f32 %v3733, 0.1
        %v3902 = vmul.f32 %v3736, 0.1
        %v3903 = vmul.f32 %v3741, 0.1
        %v3904 = vmul.f32 %v3744, 0.1
        %v3905 = vmul.f32 %v3749, 0.1
        %v3906 = vmul.f32 %v3752, 0.1
        %v3907 = vmul.f32 %v3757, 0.1
        %v3908 = vmul.f32 %v3760, 0.1
        %v3909 = vmul.f32 %v3765, 0.1
        %v3910 = vmul.f32 %v3768, 0.1
        %v3911 = vmul.f32 %v3773, 0.1
        %v3912 = vmul.f32 %v3776, 0.1
        %v3913 = vmul.f32 %v3781, 0.1
        %v3914 = vmul.f32 %v3784, 0.1
        %v3915 = vmax.f32 %v3277, %v3787
        %v3916 = vmax.f32 %v3280, %v3788
        %v3917 = vmax.f32 %v3285, %v3789
        %v3918 = vmax.f32 %v3288, %v3790
        %v3919 = vmax.f32 %v3293, %v3791
        %v3920 = vmax.f32 %v3296, %v3792
        %v3921 = vmax.f32 %v3301, %v3793
        %v3922 = vmax.f32 %v3304, %v3794
        %v3923 = vmax.f32 %v3309, %v3795
        %v3924 = vmax.f32 %v3312, %v3796
        %v3925 = vmax.f32 %v3317, %v3797
        %v3926 = vmax.f32 %v3320, %v3798
        %v3927 = vmax.f32 %v3325, %v3799
        %v3928 = vmax.f32 %v3328, %v3800
        %v3929 = vmax.f32 %v3333, %v3801
        %v3930 = vmax.f32 %v3336, %v3802
        %v3931 = vmax.f32 %v3341, %v3803
        %v3932 = vmax.f32 %v3344, %v3804
        %v3933 = vmax.f32 %v3349, %v3805
        %v3934 = vmax.f32 %v3352, %v3806
        %v3935 = vmax.f32 %v3357, %v3807
        %v3936 = vmax.f32 %v3360, %v3808
        %v3937 = vmax.f32 %v3365, %v3809
        %v3938 = vmax.f32 %v3368, %v3810
        %v3939 = vmax.f32 %v3373, %v3811
        %v3940 = vmax.f32 %v3376, %v3812
        %v3941 = vmax.f32 %v3381, %v3813
        %v3942 = vmax.f32 %v3384, %v3814
        %v3943 = vmax.f32 %v3389, %v3815
        %v3944 = vmax.f32 %v3392, %v3816
        %v3945 = vmax.f32 %v3397, %v3817
        %v3946 = vmax.f32 %v3400, %v3818
        %v3947 = vmax.f32 %v3405, %v3819
        %v3948 = vmax.f32 %v3408, %v3820
        %v3949 = vmax.f32 %v3413, %v3821
        %v3950 = vmax.f32 %v3416, %v3822
        %v3951 = vmax.f32 %v3421, %v3823
        %v3952 = vmax.f32 %v3424, %v3824
        %v3953 = vmax.f32 %v3429, %v3825
        %v3954 = vmax.f32 %v3432, %v3826
        %v3955 = vmax.f32 %v3437, %v3827
        %v3956 = vmax.f32 %v3440, %v3828
        %v3957 = vmax.f32 %v3445, %v3829
        %v3958 = vmax.f32 %v3448, %v3830
        %v3959 = vmax.f32 %v3453, %v3831
        %v3960 = vmax.f32 %v3456, %v3832
        %v3961 = vmax.f32 %v3461, %v3833
        %v3962 = vmax.f32 %v3464, %v3834
        %v3963 = vmax.f32 %v3469, %v3835
        %v3964 = vmax.f32 %v3472, %v3836
        %v3965 = vmax.f32 %v3477, %v3837
        %v3966 = vmax.f32 %v3480, %v3838
        %v3967 = vmax.f32 %v3485, %v3839
        %v3968 = vmax.f32 %v3488, %v3840
        %v3969 = vmax.f32 %v3493, %v3841
        %v3970 = vmax.f32 %v3496, %v3842
        %v3971 = vmax.f32 %v3501, %v3843
        %v3972 = vmax.f32 %v3504, %v3844
        %v3973 = vmax.f32 %v3509, %v3845
        %v3974 = vmax.f32 %v3512, %v3846
        %v3975 = vmax.f32 %v3517, %v3847
        %v3976 = vmax.f32 %v3520, %v3848
        %v3977 = vmax.f32 %v3525, %v3849
        %v3978 = vmax.f32 %v3528, %v3850
        %v3979 = vmax.f32 %v3533, %v3851
        %v3980 = vmax.f32 %v3536, %v3852
        %v3981 = vmax.f32 %v3541, %v3853
        %v3982 = vmax.f32 %v3544, %v3854
        %v3983 = vmax.f32 %v3549, %v3855
        %v3984 = vmax.f32 %v3552, %v3856
        %v3985 = vmax.f32 %v3557, %v3857
        %v3986 = vmax.f32 %v3560, %v3858
        %v3987 = vmax.f32 %v3565, %v3859
        %v3988 = vmax.f32 %v3568, %v3860
        %v3989 = vmax.f32 %v3573, %v3861
        %v3990 = vmax.f32 %v3576, %v3862
        %v3991 = vmax.f32 %v3581, %v3863
        %v3992 = vmax.f32 %v3584, %v3864
        %v3993 = vmax.f32 %v3589, %v3865
        %v3994 = vmax.f32 %v3592, %v3866
        %v3995 = vmax.f32 %v3597, %v3867
        %v3996 = vmax.f32 %v3600, %v3868
        %v3997 = vmax.f32 %v3605, %v3869
        %v3998 = vmax.f32 %v3608, %v3870
        %v3999 = vmax.f32 %v3613, %v3871
        %v4000 = vmax.f32 %v3616, %v3872
        %v4001 = vmax.f32 %v3621, %v3873
        %v4002 = vmax.f32 %v3624, %v3874
        %v4003 = vmax.f32 %v3629, %v3875
        %v4004 = vmax.f32 %v3632, %v3876
        %v4005 = vmax.f32 %v3637, %v3877
        %v4006 = vmax.f32 %v3640, %v3878
        %v4007 = vmax.f32 %v3645, %v3879
        %v4008 = vmax.f32 %v3648, %v3880
        %v4009 = vmax.f32 %v3653, %v3881
        %v4010 = vmax.f32 %v3656, %v3882
        %v4011 = vmax.f32 %v3661, %v3883
        %v4012 = vmax.f32 %v3664, %v3884
        %v4013 = vmax.f32 %v3669, %v3885
        %v4014 = vmax.f32 %v3672, %v3886
        %v4015 = vmax.f32 %v3677, %v3887
        %v4016 = vmax.f32 %v3680, %v3888
        %v4017 = vmax.f32 %v3685, %v3889
        %v4018 = vmax.f32 %v3688, %v3890
        %v4019 = vmax.f32 %v3693, %v3891
        %v4020 = vmax.f32 %v3696, %v3892
        %v4021 = vmax.f32 %v3701, %v3893
        %v4022 = vmax.f32 %v3704, %v3894
        %v4023 = vmax.f32 %v3709, %v3895
        %v4024 = vmax.f32 %v3712, %v3896
        %v4025 = vmax.f32 %v3717, %v3897
        %v4026 = vmax.f32 %v3720, %v3898
        %v4027 = vmax.f32 %v3725, %v3899
        %v4028 = vmax.f32 %v3728, %v3900
        %v4029 = vmax.f32 %v3733, %v3901
        %v4030 = vmax.f32 %v3736, %v3902
        %v4031 = vmax.f32 %v3741, %v3903
        %v4032 = vmax.f32 %v3744, %v3904
        %v4033 = vmax.f32 %v3749, %v3905
        %v4034 = vmax.f32 %v3752, %v3906
        %v4035 = vmax.f32 %v3757, %v3907
        %v4036 = vmax.f32 %v3760, %v3908
        %v4037 = vmax.f32 %v3765, %v3909
        %v4038 = vmax.f32 %v3768, %v3910
        %v4039 = vmax.f32 %v3773, %v3911
        %v4040 = vmax.f32 %v3776, %v3912
        %v4041 = vmax.f32 %v3781, %v3913
        %v4042 = vmax.f32 %v3784, %v3914
        %v4043 = vpack.c.bf16 %v3916, %v3915
        %v4044 = vpack.c.bf16 %v3918, %v3917
        %v4045 = vpack.c.bf16 %v3920, %v3919
        %v4046 = vpack.c.bf16 %v3922, %v3921
        %v4047 = vpack.c.bf16 %v3924, %v3923
        %v4048 = vpack.c.bf16 %v3926, %v3925
        %v4049 = vpack.c.bf16 %v3928, %v3927
        %v4050 = vpack.c.bf16 %v3930, %v3929
        %v4051 = vpack.c.bf16 %v3932, %v3931
        %v4052 = vpack.c.bf16 %v3934, %v3933
        %v4053 = vpack.c.bf16 %v3936, %v3935
        %v4054 = vpack.c.bf16 %v3938, %v3937
        %v4055 = vpack.c.bf16 %v3940, %v3939
        %v4056 = vpack.c.bf16 %v3942, %v3941
        %v4057 = vpack.c.bf16 %v3944, %v3943
        %v4058 = vpack.c.bf16 %v3946, %v3945
        %v4059 = vpack.c.bf16 %v3948, %v3947
        %v4060 = vpack.c.bf16 %v3950, %v3949
        %v4061 = vpack.c.bf16 %v3952, %v3951
        %v4062 = vpack.c.bf16 %v3954, %v3953
        %v4063 = vpack.c.bf16 %v3956, %v3955
        %v4064 = vpack.c.bf16 %v3958, %v3957
        %v4065 = vpack.c.bf16 %v3960, %v3959
        %v4066 = vpack.c.bf16 %v3962, %v3961
        %v4067 = vpack.c.bf16 %v3964, %v3963
        %v4068 = vpack.c.bf16 %v3966, %v3965
        %v4069 = vpack.c.bf16 %v3968, %v3967
        %v4070 = vpack.c.bf16 %v3970, %v3969
        %v4071 = vpack.c.bf16 %v3972, %v3971
        %v4072 = vpack.c.bf16 %v3974, %v3973
        %v4073 = vpack.c.bf16 %v3976, %v3975
        %v4074 = vpack.c.bf16 %v3978, %v3977
        %v4075 = vpack.c.bf16 %v3980, %v3979
        %v4076 = vpack.c.bf16 %v3982, %v3981
        %v4077 = vpack.c.bf16 %v3984, %v3983
        %v4078 = vpack.c.bf16 %v3986, %v3985
        %v4079 = vpack.c.bf16 %v3988, %v3987
        %v4080 = vpack.c.bf16 %v3990, %v3989
        %v4081 = vpack.c.bf16 %v3992, %v3991
        %v4082 = vpack.c.bf16 %v3994, %v3993
        %v4083 = vpack.c.bf16 %v3996, %v3995
        %v4084 = vpack.c.bf16 %v3998, %v3997
        %v4085 = vpack.c.bf16 %v4000, %v3999
        %v4086 = vpack.c.bf16 %v4002, %v4001
        %v4087 = vpack.c.bf16 %v4004, %v4003
        %v4088 = vpack.c.bf16 %v4006, %v4005
        %v4089 = vpack.c.bf16 %v4008, %v4007
        %v4090 = vpack.c.bf16 %v4010, %v4009
        %v4091 = vpack.c.bf16 %v4012, %v4011
        %v4092 = vpack.c.bf16 %v4014, %v4013
        %v4093 = vpack.c.bf16 %v4016, %v4015
        %v4094 = vpack.c.bf16 %v4018, %v4017
        %v4095 = vpack.c.bf16 %v4020, %v4019
        %v4096 = vpack.c.bf16 %v4022, %v4021
        %v4097 = vpack.c.bf16 %v4024, %v4023
        %v4098 = vpack.c.bf16 %v4026, %v4025
        %v4099 = vpack.c.bf16 %v4028, %v4027
        %v4100 = vpack.c.bf16 %v4030, %v4029
        %v4101 = vpack.c.bf16 %v4032, %v4031
        %v4102 = vpack.c.bf16 %v4034, %v4033
        %v4103 = vpack.c.bf16 %v4036, %v4035
        %v4104 = vpack.c.bf16 %v4038, %v4037
        %v4105 = vpack.c.bf16 %v4040, %v4039
        %v4106 = vpack.c.bf16 %v4042, %v4041
        %v4107 = vld [vmem:[%s7] sm:$0xf]
        %v4108 = vld [vmem:[%s7 + $0x4] sm:$0xf]
        %v4109 = vld [vmem:[%s8] sm:$0x1]
        %v4111 = vlaneseq
        %v4112 = vshrl.u32 %v4111, 7
        %v4113 = vsub.s32 0, %v4112
        %v4114 = vrot.slane %v4109, %v4113
        %v4118 = vunpack.c.l.b16 %v4107
        %v4119 = vunpack.c.l.b16 %v4108
        %v4120 = vpack.c.b16 %v4119, %v4118
        %vm4122 = vcmask 130048
        %v4124 = vsel %vm4122, %v4043, 0
        %v4127 = vsel %vm4122, %v4044, 0
        %v4130 = vsel %vm4122, %v4045, 0
        %v4133 = vsel %vm4122, %v4046, 0
        %v4136 = vsel %vm4122, %v4047, 0
        %v4139 = vsel %vm4122, %v4048, 0
        %v4142 = vsel %vm4122, %v4049, 0
        %v4145 = vsel %vm4122, %v4050, 0
        %v4148 = vsel %vm4122, %v4051, 0
        %v4151 = vsel %vm4122, %v4052, 0
        %v4154 = vsel %vm4122, %v4053, 0
        %v4157 = vsel %vm4122, %v4054, 0
        %v4160 = vsel %vm4122, %v4055, 0
        %v4163 = vsel %vm4122, %v4056, 0
        %v4166 = vsel %vm4122, %v4057, 0
        %v4169 = vsel %vm4122, %v4058, 0
        %v4172 = vsel %vm4122, %v4059, 0
        %v4175 = vsel %vm4122, %v4060, 0
        %v4178 = vsel %vm4122, %v4061, 0
        %v4181 = vsel %vm4122, %v4062, 0
        %v4184 = vsel %vm4122, %v4063, 0
        %v4187 = vsel %vm4122, %v4064, 0
        %v4190 = vsel %vm4122, %v4065, 0
        %v4193 = vsel %vm4122, %v4066, 0
        %v4196 = vsel %vm4122, %v4067, 0
        %v4199 = vsel %vm4122, %v4068, 0
        %v4202 = vsel %vm4122, %v4069, 0
        %v4205 = vsel %vm4122, %v4070, 0
        %v4208 = vsel %vm4122, %v4071, 0
        %v4211 = vsel %vm4122, %v4072, 0
        %v4214 = vsel %vm4122, %v4073, 0
        %v4217 = vsel %vm4122, %v4074, 0
        %v4220 = vsel %vm4122, %v4075, 0
        %v4223 = vsel %vm4122, %v4076, 0
        %v4226 = vsel %vm4122, %v4077, 0
        %v4229 = vsel %vm4122, %v4078, 0
        %v4232 = vsel %vm4122, %v4079, 0
        %v4235 = vsel %vm4122, %v4080, 0
        %v4238 = vsel %vm4122, %v4081, 0
        %v4241 = vsel %vm4122, %v4082, 0
        %v4244 = vsel %vm4122, %v4083, 0
        %v4247 = vsel %vm4122, %v4084, 0
        %v4250 = vsel %vm4122, %v4085, 0
        %v4253 = vsel %vm4122, %v4086, 0
        %v4256 = vsel %vm4122, %v4087, 0
        %v4259 = vsel %vm4122, %v4088, 0
        %v4262 = vsel %vm4122, %v4089, 0
        %v4265 = vsel %vm4122, %v4090, 0
        %v4268 = vsel %vm4122, %v4091, 0
        %v4271 = vsel %vm4122, %v4092, 0
        %v4274 = vsel %vm4122, %v4093, 0
        %v4277 = vsel %vm4122, %v4094, 0
        %v4280 = vsel %vm4122, %v4095, 0
        %v4283 = vsel %vm4122, %v4096, 0
        %v4286 = vsel %vm4122, %v4097, 0
        %v4289 = vsel %vm4122, %v4098, 0
        %v4292 = vsel %vm4122, %v4099, 0
        %v4295 = vsel %vm4122, %v4100, 0
        %v4298 = vsel %vm4122, %v4101, 0
        %v4301 = vsel %vm4122, %v4102, 0
        %v4304 = vsel %vm4122, %v4103, 0
        %v4307 = vsel %vm4122, %v4104, 0
        %v4310 = vsel %vm4122, %v4105, 0
        %v4313 = vsel %vm4122, %v4106, 0
        %4315 = vmatprep.subr.bf16.mxu0 0
        %4316 = vmatpush1.bf16.msra.mxu0 %v4120
        %4317 = vmatprep.subr.bf16.mxu0 0
        %4318 = vmatpush1.bf16.msra.mxu0 0
        %4319 = vmatprep.subr.bf16.mxu0 0
        %4320 = vmatpush1.bf16.msra.mxu0 0
        %4321 = vmatprep.subr.bf16.mxu0 0
        %4322 = vmatpush1.bf16.msra.mxu0 0
        %4323 = vmatprep.subr.bf16.mxu0 0
        %4324 = vmatpush1.bf16.msra.mxu0 0
        %4325 = vmatprep.subr.bf16.mxu0 0
        %4326 = vmatpush1.bf16.msra.mxu0 0
        %4327 = vmatprep.subr.bf16.mxu0 0
        %4328 = vmatpush1.bf16.msra.mxu0 0
        %4329 = vmatprep.subr.bf16.mxu0 0
        %4330 = vmatpush1.bf16.msra.mxu0 0
        %4331 = vmatprep.subr.bf16.mxu0 0
        %4332 = vmatpush1.bf16.msra.mxu0 0
        %4333 = vmatprep.subr.bf16.mxu0 0
        %4334 = vmatpush1.bf16.msra.mxu0 0
        %4335 = vmatprep.subr.bf16.mxu0 0
        %4336 = vmatpush1.bf16.msra.mxu0 0
        %4337 = vmatprep.subr.bf16.mxu0 0
        %4338 = vmatpush1.bf16.msra.mxu0 0
        %4339 = vmatprep.subr.bf16.mxu0 0
        %4340 = vmatpush1.bf16.msra.mxu0 0
        %4341 = vmatprep.subr.bf16.mxu0 0
        %4342 = vmatpush1.bf16.msra.mxu0 0
        %4343 = vmatprep.subr.bf16.mxu0 0
        %4344 = vmatpush1.bf16.msra.mxu0 0
        %4345 = vmatprep.subr.bf16.mxu0 0
        %4346 = vmatpush1.bf16.msra.mxu0 0
        %4347 = vmatprep.mubr.bf16.mxu0 0
        %4348 = vmatmul.mubr.bf16.gmra.mrb[0].mxu0 %v4124
        %v4349 = vpop.f32.mrb[0].mxu0
        %v4350 = vadd.f32 %v4114, %v4349
        %v4351 = vpop.f32.mrb[0].mxu0
        %v4352 = vpop.f32.mrb[0].mxu0
        %v4353 = vadd.f32 %v4114, %v4352
        %v4354 = vpop.f32.mrb[0].mxu0
        %4355 = vmatprep.mubr.bf16.mxu0 0
        %4356 = vmatmul.mubr.bf16.gmra.mrb[0].mxu0 %v4127
        %v4357 = vpop.f32.mrb[0].mxu0
        %v4358 = vadd.f32 %v4114, %v4357
        %v4359 = vpop.f32.mrb[0].mxu0
        %v4360 = vpop.f32.mrb[0].mxu0
        %v4361 = vadd.f32 %v4114, %v4360
        %v4362 = vpop.f32.mrb[0].mxu0
        %4363 = vmatprep.mubr.bf16.mxu0 0
        %4364 = vmatmul.mubr.bf16.gmra.mrb[0].mxu0 %v4130
        %v4365 = vpop.f32.mrb[0].mxu0
        %v4366 = vadd.f32 %v4114, %v4365
        %v4367 = vpop.f32.mrb[0].mxu0
        %v4368 = vpop.f32.mrb[0].mxu0
        %v4369 = vadd.f32 %v4114, %v4368
        %v4370 = vpop.f32.mrb[0].mxu0
        %4371 = vmatprep.mubr.bf16.mxu0 0
        %4372 = vmatmul.mubr.bf16.gmra.mrb[0].mxu0 %v4133
        %v4373 = vpop.f32.mrb[0].mxu0
        %v4374 = vadd.f32 %v4114, %v4373
        %v4375 = vpop.f32.mrb[0].mxu0
        %v4376 = vpop.f32.mrb[0].mxu0
        %v4377 = vadd.f32 %v4114, %v4376
        %v4378 = vpop.f32.mrb[0].mxu0
        %4379 = vmatprep.mubr.bf16.mxu0 0
        %4380 = vmatmul.mubr.bf16.gmra.mrb[0].mxu0 %v4136
        %v4381 = vpop.f32.mrb[0].mxu0
        %v4382 = vadd.f32 %v4114, %v4381
        %v4383 = vpop.f32.mrb[0].mxu0
        %v4384 = vpop.f32.mrb[0].mxu0
        %v4385 = vadd.f32 %v4114, %v4384
        %v4386 = vpop.f32.mrb[0].mxu0
        %4387 = vmatprep.mubr.bf16.mxu0 0
        %4388 = vmatmul.mubr.bf16.gmra.mrb[0].mxu0 %v4139
        %v4389 = vpop.f32.mrb[0].mxu0
        %v4390 = vadd.f32 %v4114, %v4389
        %v4391 = vpop.f32.mrb[0].mxu0
        %v4392 = vpop.f32.mrb[0].mxu0
        %v4393 = vadd.f32 %v4114, %v4392
        %v4394 = vpop.f32.mrb[0].mxu0
        %4395 = vmatprep.mubr.bf16.mxu0 0
        %4396 = vmatmul.mubr.bf16.gmra.mrb[0].mxu0 %v4142
        %v4397 = vpop.f32.mrb[0].mxu0
        %v4398 = vadd.f32 %v4114, %v4397
        %v4399 = vpop.f32.mrb[0].mxu0
        %v4400 = vpop.f32.mrb[0].mxu0
        %v4401 = vadd.f32 %v4114, %v4400
        %v4402 = vpop.f32.mrb[0].mxu0
        %4403 = vmatprep.mubr.bf16.mxu0 0
        %4404 = vmatmul.mubr.bf16.gmra.mrb[0].mxu0 %v4145
        %v4405 = vpop.f32.mrb[0].mxu0
        %v4406 = vadd.f32 %v4114, %v4405
        %v4407 = vpop.f32.mrb[0].mxu0
        %v4408 = vpop.f32.mrb[0].mxu0
        %v4409 = vadd.f32 %v4114, %v4408
        %v4410 = vpop.f32.mrb[0].mxu0
        %4411 = vmatprep.mubr.bf16.mxu0 0
        %4412 = vmatmul.mubr.bf16.gmra.mrb[0].mxu0 %v4148
        %v4413 = vpop.f32.mrb[0].mxu0
        %v4414 = vadd.f32 %v4114, %v4413
        %v4415 = vpop.f32.mrb[0].mxu0
        %v4416 = vpop.f32.mrb[0].mxu0
        %v4417 = vadd.f32 %v4114, %v4416
        %v4418 = vpop.f32.mrb[0].mxu0
        %4419 = vmatprep.mubr.bf16.mxu0 0
        %4420 = vmatmul.mubr.bf16.gmra.mrb[0].mxu0 %v4151
        %v4421 = vpop.f32.mrb[0].mxu0
        %v4422 = vadd.f32 %v4114, %v4421
        %v4423 = vpop.f32.mrb[0].mxu0
        %v4424 = vpop.f32.mrb[0].mxu0
        %v4425 = vadd.f32 %v4114, %v4424
        %v4426 = vpop.f32.mrb[0].mxu0
        %4427 = vmatprep.mubr.bf16.mxu0 0
        %4428 = vmatmul.mubr.bf16.gmra.mrb[0].mxu0 %v4154
        %v4429 = vpop.f32.mrb[0].mxu0
        %v4430 = vadd.f32 %v4114, %v4429
        %v4431 = vpop.f32.mrb[0].mxu0
        %v4432 = vpop.f32.mrb[0].mxu0
        %v4433 = vadd.f32 %v4114, %v4432
        %v4434 = vpop.f32.mrb[0].mxu0
        %4435 = vmatprep.mubr.bf16.mxu0 0
        %4436 = vmatmul.mubr.bf16.gmra.mrb[0].mxu0 %v4157
        %v4437 = vpop.f32.mrb[0].mxu0
        %v4438 = vadd.f32 %v4114, %v4437
        %v4439 = vpop.f32.mrb[0].mxu0
        %v4440 = vpop.f32.mrb[0].mxu0
        %v4441 = vadd.f32 %v4114, %v4440
        %v4442 = vpop.f32.mrb[0].mxu0
        %4443 = vmatprep.mubr.bf16.mxu0 0
        %4444 = vmatmul.mubr.bf16.gmra.mrb[0].mxu0 %v4160
        %v4445 = vpop.f32.mrb[0].mxu0
        %v4446 = vadd.f32 %v4114, %v4445
        %v4447 = vpop.f32.mrb[0].mxu0
        %v4448 = vpop.f32.mrb[0].mxu0
        %v4449 = vadd.f32 %v4114, %v4448
        %v4450 = vpop.f32.mrb[0].mxu0
        %4451 = vmatprep.mubr.bf16.mxu0 0
        %4452 = vmatmul.mubr.bf16.gmra.mrb[0].mxu0 %v4163
        %v4453 = vpop.f32.mrb[0].mxu0
        %v4454 = vadd.f32 %v4114, %v4453
        %v4455 = vpop.f32.mrb[0].mxu0
        %v4456 = vpop.f32.mrb[0].mxu0
        %v4457 = vadd.f32 %v4114, %v4456
        %v4458 = vpop.f32.mrb[0].mxu0
        %4459 = vmatprep.mubr.bf16.mxu0 0
        %4460 = vmatmul.mubr.bf16.gmra.mrb[0].mxu0 %v4166
        %v4461 = vpop.f32.mrb[0].mxu0
        %v4462 = vadd.f32 %v4114, %v4461
        %v4463 = vpop.f32.mrb[0].mxu0
        %v4464 = vpop.f32.mrb[0].mxu0
        %v4465 = vadd.f32 %v4114, %v4464
        %v4466 = vpop.f32.mrb[0].mxu0
        %4467 = vmatprep.mubr.bf16.mxu0 0
        %4468 = vmatmul.mubr.bf16.gmra.mrb[0].mxu0 %v4169
        %v4469 = vpop.f32.mrb[0].mxu0
        %v4470 = vadd.f32 %v4114, %v4469
        %v4471 = vpop.f32.mrb[0].mxu0
        %v4472 = vpop.f32.mrb[0].mxu0
        %v4473 = vadd.f32 %v4114, %v4472
        %v4474 = vpop.f32.mrb[0].mxu0
        %4475 = vmatprep.mubr.bf16.mxu0 0
        %4476 = vmatmul.mubr.bf16.gmra.mrb[0].mxu0 %v4172
        %v4477 = vpop.f32.mrb[0].mxu0
        %v4478 = vadd.f32 %v4114, %v4477
        %v4479 = vpop.f32.mrb[0].mxu0
        %v4480 = vpop.f32.mrb[0].mxu0
        %v4481 = vadd.f32 %v4114, %v4480
        %v4482 = vpop.f32.mrb[0].mxu0
        %4483 = vmatprep.mubr.bf16.mxu0 0
        %4484 = vmatmul.mubr.bf16.gmra.mrb[0].mxu0 %v4175
        %v4485 = vpop.f32.mrb[0].mxu0
        %v4486 = vadd.f32 %v4114, %v4485
        %v4487 = vpop.f32.mrb[0].mxu0
        %v4488 = vpop.f32.mrb[0].mxu0
        %v4489 = vadd.f32 %v4114, %v4488
        %v4490 = vpop.f32.mrb[0].mxu0
        %4491 = vmatprep.mubr.bf16.mxu0 0
        %4492 = vmatmul.mubr.bf16.gmra.mrb[0].mxu0 %v4178
        %v4493 = vpop.f32.mrb[0].mxu0
        %v4494 = vadd.f32 %v4114, %v4493
        %v4495 = vpop.f32.mrb[0].mxu0
        %v4496 = vpop.f32.mrb[0].mxu0
        %v4497 = vadd.f32 %v4114, %v4496
        %v4498 = vpop.f32.mrb[0].mxu0
        %4499 = vmatprep.mubr.bf16.mxu0 0
        %4500 = vmatmul.mubr.bf16.gmra.mrb[0].mxu0 %v4181
        %v4501 = vpop.f32.mrb[0].mxu0
        %v4502 = vadd.f32 %v4114, %v4501
        %v4503 = vpop.f32.mrb[0].mxu0
        %v4504 = vpop.f32.mrb[0].mxu0
        %v4505 = vadd.f32 %v4114, %v4504
        %v4506 = vpop.f32.mrb[0].mxu0
        %4507 = vmatprep.mubr.bf16.mxu0 0
        %4508 = vmatmul.mubr.bf16.gmra.mrb[0].mxu0 %v4184
        %v4509 = vpop.f32.mrb[0].mxu0
        %v4510 = vadd.f32 %v4114, %v4509
        %v4511 = vpop.f32.mrb[0].mxu0
        %v4512 = vpop.f32.mrb[0].mxu0
        %v4513 = vadd.f32 %v4114, %v4512
        %v4514 = vpop.f32.mrb[0].mxu0
        %4515 = vmatprep.mubr.bf16.mxu0 0
        %4516 = vmatmul.mubr.bf16.gmra.mrb[0].mxu0 %v4187
        %v4517 = vpop.f32.mrb[0].mxu0
        %v4518 = vadd.f32 %v4114, %v4517
        %v4519 = vpop.f32.mrb[0].mxu0
        %v4520 = vpop.f32.mrb[0].mxu0
        %v4521 = vadd.f32 %v4114, %v4520
        %v4522 = vpop.f32.mrb[0].mxu0
        %4523 = vmatprep.mubr.bf16.mxu0 0
        %4524 = vmatmul.mubr.bf16.gmra.mrb[0].mxu0 %v4190
        %v4525 = vpop.f32.mrb[0].mxu0
        %v4526 = vadd.f32 %v4114, %v4525
        %v4527 = vpop.f32.mrb[0].mxu0
        %v4528 = vpop.f32.mrb[0].mxu0
        %v4529 = vadd.f32 %v4114, %v4528
        %v4530 = vpop.f32.mrb[0].mxu0
        %4531 = vmatprep.mubr.bf16.mxu0 0
        %4532 = vmatmul.mubr.bf16.gmra.mrb[0].mxu0 %v4193
        %v4533 = vpop.f32.mrb[0].mxu0
        %v4534 = vadd.f32 %v4114, %v4533
        %v4535 = vpop.f32.mrb[0].mxu0
        %v4536 = vpop.f32.mrb[0].mxu0
        %v4537 = vadd.f32 %v4114, %v4536
        %v4538 = vpop.f32.mrb[0].mxu0
        %4539 = vmatprep.mubr.bf16.mxu0 0
        %4540 = vmatmul.mubr.bf16.gmra.mrb[0].mxu0 %v4196
        %v4541 = vpop.f32.mrb[0].mxu0
        %v4542 = vadd.f32 %v4114, %v4541
        %v4543 = vpop.f32.mrb[0].mxu0
        %v4544 = vpop.f32.mrb[0].mxu0
        %v4545 = vadd.f32 %v4114, %v4544
        %v4546 = vpop.f32.mrb[0].mxu0
        %4547 = vmatprep.mubr.bf16.mxu0 0
        %4548 = vmatmul.mubr.bf16.gmra.mrb[0].mxu0 %v4199
        %v4549 = vpop.f32.mrb[0].mxu0
        %v4550 = vadd.f32 %v4114, %v4549
        %v4551 = vpop.f32.mrb[0].mxu0
        %v4552 = vpop.f32.mrb[0].mxu0
        %v4553 = vadd.f32 %v4114, %v4552
        %v4554 = vpop.f32.mrb[0].mxu0
        %4555 = vmatprep.mubr.bf16.mxu0 0
        %4556 = vmatmul.mubr.bf16.gmra.mrb[0].mxu0 %v4202
        %v4557 = vpop.f32.mrb[0].mxu0
        %v4558 = vadd.f32 %v4114, %v4557
        %v4559 = vpop.f32.mrb[0].mxu0
        %v4560 = vpop.f32.mrb[0].mxu0
        %v4561 = vadd.f32 %v4114, %v4560
        %v4562 = vpop.f32.mrb[0].mxu0
        %4563 = vmatprep.mubr.bf16.mxu0 0
        %4564 = vmatmul.mubr.bf16.gmra.mrb[0].mxu0 %v4205
        %v4565 = vpop.f32.mrb[0].mxu0
        %v4566 = vadd.f32 %v4114, %v4565
        %v4567 = vpop.f32.mrb[0].mxu0
        %v4568 = vpop.f32.mrb[0].mxu0
        %v4569 = vadd.f32 %v4114, %v4568
        %v4570 = vpop.f32.mrb[0].mxu0
        %4571 = vmatprep.mubr.bf16.mxu0 0
        %4572 = vmatmul.mubr.bf16.gmra.mrb[0].mxu0 %v4208
        %v4573 = vpop.f32.mrb[0].mxu0
        %v4574 = vadd.f32 %v4114, %v4573
        %v4575 = vpop.f32.mrb[0].mxu0
        %v4576 = vpop.f32.mrb[0].mxu0
        %v4577 = vadd.f32 %v4114, %v4576
        %v4578 = vpop.f32.mrb[0].mxu0
        %4579 = vmatprep.mubr.bf16.mxu0 0
        %4580 = vmatmul.mubr.bf16.gmra.mrb[0].mxu0 %v4211
        %v4581 = vpop.f32.mrb[0].mxu0
        %v4582 = vadd.f32 %v4114, %v4581
        %v4583 = vpop.f32.mrb[0].mxu0
        %v4584 = vpop.f32.mrb[0].mxu0
        %v4585 = vadd.f32 %v4114, %v4584
        %v4586 = vpop.f32.mrb[0].mxu0
        %4587 = vmatprep.mubr.bf16.mxu0 0
        %4588 = vmatmul.mubr.bf16.gmra.mrb[0].mxu0 %v4214
        %v4589 = vpop.f32.mrb[0].mxu0
        %v4590 = vadd.f32 %v4114, %v4589
        %v4591 = vpop.f32.mrb[0].mxu0
        %v4592 = vpop.f32.mrb[0].mxu0
        %v4593 = vadd.f32 %v4114, %v4592
        %v4594 = vpop.f32.mrb[0].mxu0
        %4595 = vmatprep.mubr.bf16.mxu0 0
        %4596 = vmatmul.mubr.bf16.gmra.mrb[0].mxu0 %v4217
        %v4597 = vpop.f32.mrb[0].mxu0
        %v4598 = vadd.f32 %v4114, %v4597
        %v4599 = vpop.f32.mrb[0].mxu0
        %v4600 = vpop.f32.mrb[0].mxu0
        %v4601 = vadd.f32 %v4114, %v4600
        %v4602 = vpop.f32.mrb[0].mxu0
        %4603 = vmatprep.mubr.bf16.mxu0 0
        %4604 = vmatmul.mubr.bf16.gmra.mrb[0].mxu0 %v4220
        %v4605 = vpop.f32.mrb[0].mxu0
        %v4606 = vadd.f32 %v4114, %v4605
        %v4607 = vpop.f32.mrb[0].mxu0
        %v4608 = vpop.f32.mrb[0].mxu0
        %v4609 = vadd.f32 %v4114, %v4608
        %v4610 = vpop.f32.mrb[0].mxu0
        %4611 = vmatprep.mubr.bf16.mxu0 0
        %4612 = vmatmul.mubr.bf16.gmra.mrb[0].mxu0 %v4223
        %v4613 = vpop.f32.mrb[0].mxu0
        %v4614 = vadd.f32 %v4114, %v4613
        %v4615 = vpop.f32.mrb[0].mxu0
        %v4616 = vpop.f32.mrb[0].mxu0
        %v4617 = vadd.f32 %v4114, %v4616
        %v4618 = vpop.f32.mrb[0].mxu0
        %4619 = vmatprep.mubr.bf16.mxu0 0
        %4620 = vmatmul.mubr.bf16.gmra.mrb[0].mxu0 %v4226
        %v4621 = vpop.f32.mrb[0].mxu0
        %v4622 = vadd.f32 %v4114, %v4621
        %v4623 = vpop.f32.mrb[0].mxu0
        %v4624 = vpop.f32.mrb[0].mxu0
        %v4625 = vadd.f32 %v4114, %v4624
        %v4626 = vpop.f32.mrb[0].mxu0
        %4627 = vmatprep.mubr.bf16.mxu0 0
        %4628 = vmatmul.mubr.bf16.gmra.mrb[0].mxu0 %v4229
        %v4629 = vpop.f32.mrb[0].mxu0
        %v4630 = vadd.f32 %v4114, %v4629
        %v4631 = vpop.f32.mrb[0].mxu0
        %v4632 = vpop.f32.mrb[0].mxu0
        %v4633 = vadd.f32 %v4114, %v4632
        %v4634 = vpop.f32.mrb[0].mxu0
        %4635 = vmatprep.mubr.bf16.mxu0 0
        %4636 = vmatmul.mubr.bf16.gmra.mrb[0].mxu0 %v4232
        %v4637 = vpop.f32.mrb[0].mxu0
        %v4638 = vadd.f32 %v4114, %v4637
        %v4639 = vpop.f32.mrb[0].mxu0
        %v4640 = vpop.f32.mrb[0].mxu0
        %v4641 = vadd.f32 %v4114, %v4640
        %v4642 = vpop.f32.mrb[0].mxu0
        %4643 = vmatprep.mubr.bf16.mxu0 0
        %4644 = vmatmul.mubr.bf16.gmra.mrb[0].mxu0 %v4235
        %v4645 = vpop.f32.mrb[0].mxu0
        %v4646 = vadd.f32 %v4114, %v4645
        %v4647 = vpop.f32.mrb[0].mxu0
        %v4648 = vpop.f32.mrb[0].mxu0
        %v4649 = vadd.f32 %v4114, %v4648
        %v4650 = vpop.f32.mrb[0].mxu0
        %4651 = vmatprep.mubr.bf16.mxu0 0
        %4652 = vmatmul.mubr.bf16.gmra.mrb[0].mxu0 %v4238
        %v4653 = vpop.f32.mrb[0].mxu0
        %v4654 = vadd.f32 %v4114, %v4653
        %v4655 = vpop.f32.mrb[0].mxu0
        %v4656 = vpop.f32.mrb[0].mxu0
        %v4657 = vadd.f32 %v4114, %v4656
        %v4658 = vpop.f32.mrb[0].mxu0
        %4659 = vmatprep.mubr.bf16.mxu0 0
        %4660 = vmatmul.mubr.bf16.gmra.mrb[0].mxu0 %v4241
        %v4661 = vpop.f32.mrb[0].mxu0
        %v4662 = vadd.f32 %v4114, %v4661
        %v4663 = vpop.f32.mrb[0].mxu0
        %v4664 = vpop.f32.mrb[0].mxu0
        %v4665 = vadd.f32 %v4114, %v4664
        %v4666 = vpop.f32.mrb[0].mxu0
        %4667 = vmatprep.mubr.bf16.mxu0 0
        %4668 = vmatmul.mubr.bf16.gmra.mrb[0].mxu0 %v4244
        %v4669 = vpop.f32.mrb[0].mxu0
        %v4670 = vadd.f32 %v4114, %v4669
        %v4671 = vpop.f32.mrb[0].mxu0
        %v4672 = vpop.f32.mrb[0].mxu0
        %v4673 = vadd.f32 %v4114, %v4672
        %v4674 = vpop.f32.mrb[0].mxu0
        %4675 = vmatprep.mubr.bf16.mxu0 0
        %4676 = vmatmul.mubr.bf16.gmra.mrb[0].mxu0 %v4247
        %v4677 = vpop.f32.mrb[0].mxu0
        %v4678 = vadd.f32 %v4114, %v4677
        %v4679 = vpop.f32.mrb[0].mxu0
        %v4680 = vpop.f32.mrb[0].mxu0
        %v4681 = vadd.f32 %v4114, %v4680
        %v4682 = vpop.f32.mrb[0].mxu0
        %4683 = vmatprep.mubr.bf16.mxu0 0
        %4684 = vmatmul.mubr.bf16.gmra.mrb[0].mxu0 %v4250
        %v4685 = vpop.f32.mrb[0].mxu0
        %v4686 = vadd.f32 %v4114, %v4685
        %v4687 = vpop.f32.mrb[0].mxu0
        %v4688 = vpop.f32.mrb[0].mxu0
        %v4689 = vadd.f32 %v4114, %v4688
        %v4690 = vpop.f32.mrb[0].mxu0
        %4691 = vmatprep.mubr.bf16.mxu0 0
        %4692 = vmatmul.mubr.bf16.gmra.mrb[0].mxu0 %v4253
        %v4693 = vpop.f32.mrb[0].mxu0
        %v4694 = vadd.f32 %v4114, %v4693
        %v4695 = vpop.f32.mrb[0].mxu0
        %v4696 = vpop.f32.mrb[0].mxu0
        %v4697 = vadd.f32 %v4114, %v4696
        %v4698 = vpop.f32.mrb[0].mxu0
        %4699 = vmatprep.mubr.bf16.mxu0 0
        %4700 = vmatmul.mubr.bf16.gmra.mrb[0].mxu0 %v4256
        %v4701 = vpop.f32.mrb[0].mxu0
        %v4702 = vadd.f32 %v4114, %v4701
        %v4703 = vpop.f32.mrb[0].mxu0
        %v4704 = vpop.f32.mrb[0].mxu0
        %v4705 = vadd.f32 %v4114, %v4704
        %v4706 = vpop.f32.mrb[0].mxu0
        %4707 = vmatprep.mubr.bf16.mxu0 0
        %4708 = vmatmul.mubr.bf16.gmra.mrb[0].mxu0 %v4259
        %v4709 = vpop.f32.mrb[0].mxu0
        %v4710 = vadd.f32 %v4114, %v4709
        %v4711 = vpop.f32.mrb[0].mxu0
        %v4712 = vpop.f32.mrb[0].mxu0
        %v4713 = vadd.f32 %v4114, %v4712
        %v4714 = vpop.f32.mrb[0].mxu0
        %4715 = vmatprep.mubr.bf16.mxu0 0
        %4716 = vmatmul.mubr.bf16.gmra.mrb[0].mxu0 %v4262
        %v4717 = vpop.f32.mrb[0].mxu0
        %v4718 = vadd.f32 %v4114, %v4717
        %v4719 = vpop.f32.mrb[0].mxu0
        %v4720 = vpop.f32.mrb[0].mxu0
        %v4721 = vadd.f32 %v4114, %v4720
        %v4722 = vpop.f32.mrb[0].mxu0
        %4723 = vmatprep.mubr.bf16.mxu0 0
        %4724 = vmatmul.mubr.bf16.gmra.mrb[0].mxu0 %v4265
        %v4725 = vpop.f32.mrb[0].mxu0
        %v4726 = vadd.f32 %v4114, %v4725
        %v4727 = vpop.f32.mrb[0].mxu0
        %v4728 = vpop.f32.mrb[0].mxu0
        %v4729 = vadd.f32 %v4114, %v4728
        %v4730 = vpop.f32.mrb[0].mxu0
        %4731 = vmatprep.mubr.bf16.mxu0 0
        %4732 = vmatmul.mubr.bf16.gmra.mrb[0].mxu0 %v4268
        %v4733 = vpop.f32.mrb[0].mxu0
        %v4734 = vadd.f32 %v4114, %v4733
        %v4735 = vpop.f32.mrb[0].mxu0
        %v4736 = vpop.f32.mrb[0].mxu0
        %v4737 = vadd.f32 %v4114, %v4736
        %v4738 = vpop.f32.mrb[0].mxu0
        %4739 = vmatprep.mubr.bf16.mxu0 0
        %4740 = vmatmul.mubr.bf16.gmra.mrb[0].mxu0 %v4271
        %v4741 = vpop.f32.mrb[0].mxu0
        %v4742 = vadd.f32 %v4114, %v4741
        %v4743 = vpop.f32.mrb[0].mxu0
        %v4744 = vpop.f32.mrb[0].mxu0
        %v4745 = vadd.f32 %v4114, %v4744
        %v4746 = vpop.f32.mrb[0].mxu0
        %4747 = vmatprep.mubr.bf16.mxu0 0
        %4748 = vmatmul.mubr.bf16.gmra.mrb[0].mxu0 %v4274
        %v4749 = vpop.f32.mrb[0].mxu0
        %v4750 = vadd.f32 %v4114, %v4749
        %v4751 = vpop.f32.mrb[0].mxu0
        %v4752 = vpop.f32.mrb[0].mxu0
        %v4753 = vadd.f32 %v4114, %v4752
        %v4754 = vpop.f32.mrb[0].mxu0
        %4755 = vmatprep.mubr.bf16.mxu0 0
        %4756 = vmatmul.mubr.bf16.gmra.mrb[0].mxu0 %v4277
        %v4757 = vpop.f32.mrb[0].mxu0
        %v4758 = vadd.f32 %v4114, %v4757
        %v4759 = vpop.f32.mrb[0].mxu0
        %v4760 = vpop.f32.mrb[0].mxu0
        %v4761 = vadd.f32 %v4114, %v4760
        %v4762 = vpop.f32.mrb[0].mxu0
        %4763 = vmatprep.mubr.bf16.mxu0 0
        %4764 = vmatmul.mubr.bf16.gmra.mrb[0].mxu0 %v4280
        %v4765 = vpop.f32.mrb[0].mxu0
        %v4766 = vadd.f32 %v4114, %v4765
        %v4767 = vpop.f32.mrb[0].mxu0
        %v4768 = vpop.f32.mrb[0].mxu0
        %v4769 = vadd.f32 %v4114, %v4768
        %v4770 = vpop.f32.mrb[0].mxu0
        %4771 = vmatprep.mubr.bf16.mxu0 0
        %4772 = vmatmul.mubr.bf16.gmra.mrb[0].mxu0 %v4283
        %v4773 = vpop.f32.mrb[0].mxu0
        %v4774 = vadd.f32 %v4114, %v4773
        %v4775 = vpop.f32.mrb[0].mxu0
        %v4776 = vpop.f32.mrb[0].mxu0
        %v4777 = vadd.f32 %v4114, %v4776
        %v4778 = vpop.f32.mrb[0].mxu0
        %4779 = vmatprep.mubr.bf16.mxu0 0
        %4780 = vmatmul.mubr.bf16.gmra.mrb[0].mxu0 %v4286
        %v4781 = vpop.f32.mrb[0].mxu0
        %v4782 = vadd.f32 %v4114, %v4781
        %v4783 = vpop.f32.mrb[0].mxu0
        %v4784 = vpop.f32.mrb[0].mxu0
        %v4785 = vadd.f32 %v4114, %v4784
        %v4786 = vpop.f32.mrb[0].mxu0
        %4787 = vmatprep.mubr.bf16.mxu0 0
        %4788 = vmatmul.mubr.bf16.gmra.mrb[0].mxu0 %v4289
        %v4789 = vpop.f32.mrb[0].mxu0
        %v4790 = vadd.f32 %v4114, %v4789
        %v4791 = vpop.f32.mrb[0].mxu0
        %v4792 = vpop.f32.mrb[0].mxu0
        %v4793 = vadd.f32 %v4114, %v4792
        %v4794 = vpop.f32.mrb[0].mxu0
        %4795 = vmatprep.mubr.bf16.mxu0 0
        %4796 = vmatmul.mubr.bf16.gmra.mrb[0].mxu0 %v4292
        %v4797 = vpop.f32.mrb[0].mxu0
        %v4798 = vadd.f32 %v4114, %v4797
        %v4799 = vpop.f32.mrb[0].mxu0
        %v4800 = vpop.f32.mrb[0].mxu0
        %v4801 = vadd.f32 %v4114, %v4800
        %v4802 = vpop.f32.mrb[0].mxu0
        %4803 = vmatprep.mubr.bf16.mxu0 0
        %4804 = vmatmul.mubr.bf16.gmra.mrb[0].mxu0 %v4295
        %v4805 = vpop.f32.mrb[0].mxu0
        %v4806 = vadd.f32 %v4114, %v4805
        %v4807 = vpop.f32.mrb[0].mxu0
        %v4808 = vpop.f32.mrb[0].mxu0
        %v4809 = vadd.f32 %v4114, %v4808
        %v4810 = vpop.f32.mrb[0].mxu0
        %4811 = vmatprep.mubr.bf16.mxu0 0
        %4812 = vmatmul.mubr.bf16.gmra.mrb[0].mxu0 %v4298
        %v4813 = vpop.f32.mrb[0].mxu0
        %v4814 = vadd.f32 %v4114, %v4813
        %v4815 = vpop.f32.mrb[0].mxu0
        %v4816 = vpop.f32.mrb[0].mxu0
        %v4817 = vadd.f32 %v4114, %v4816
        %v4818 = vpop.f32.mrb[0].mxu0
        %4819 = vmatprep.mubr.bf16.mxu0 0
        %4820 = vmatmul.mubr.bf16.gmra.mrb[0].mxu0 %v4301
        %v4821 = vpop.f32.mrb[0].mxu0
        %v4822 = vadd.f32 %v4114, %v4821
        %v4823 = vpop.f32.mrb[0].mxu0
        %v4824 = vpop.f32.mrb[0].mxu0
        %v4825 = vadd.f32 %v4114, %v4824
        %v4826 = vpop.f32.mrb[0].mxu0
        %4827 = vmatprep.mubr.bf16.mxu0 0
        %4828 = vmatmul.mubr.bf16.gmra.mrb[0].mxu0 %v4304
        %v4829 = vpop.f32.mrb[0].mxu0
        %v4830 = vadd.f32 %v4114, %v4829
        %v4831 = vpop.f32.mrb[0].mxu0
        %v4832 = vpop.f32.mrb[0].mxu0
        %v4833 = vadd.f32 %v4114, %v4832
        %v4834 = vpop.f32.mrb[0].mxu0
        %4835 = vmatprep.mubr.bf16.mxu0 0
        %4836 = vmatmul.mubr.bf16.gmra.mrb[0].mxu0 %v4307
        %v4837 = vpop.f32.mrb[0].mxu0
        %v4838 = vadd.f32 %v4114, %v4837
        %v4839 = vpop.f32.mrb[0].mxu0
        %v4840 = vpop.f32.mrb[0].mxu0
        %v4841 = vadd.f32 %v4114, %v4840
        %v4842 = vpop.f32.mrb[0].mxu0
        %4843 = vmatprep.mubr.bf16.mxu0 0
        %4844 = vmatmul.mubr.bf16.gmra.mrb[0].mxu0 %v4310
        %v4845 = vpop.f32.mrb[0].mxu0
        %v4846 = vadd.f32 %v4114, %v4845
        %v4847 = vpop.f32.mrb[0].mxu0
        %v4848 = vpop.f32.mrb[0].mxu0
        %v4849 = vadd.f32 %v4114, %v4848
        %v4850 = vpop.f32.mrb[0].mxu0
        %4851 = vmatprep.mubr.bf16.mxu0 0
        %4852 = vmatmul.mubr.bf16.gmra.mrb[0].mxu0 %v4313
        %v4853 = vpop.f32.mrb[0].mxu0
        %v4854 = vadd.f32 %v4114, %v4853
        %v4855 = vpop.f32.mrb[0].mxu0
        %v4856 = vpop.f32.mrb[0].mxu0
        %v4857 = vadd.f32 %v4114, %v4856
        %v4858 = vpop.f32.mrb[0].mxu0
        %4859 = vdwg.mxu0
        %v4860 = vmul.f32 %v4350, 0.1
        %v4861 = vmul.f32 %v4353, 0.1
        %v4862 = vmul.f32 %v4358, 0.1
        %v4863 = vmul.f32 %v4361, 0.1
        %v4864 = vmul.f32 %v4366, 0.1
        %v4865 = vmul.f32 %v4369, 0.1
        %v4866 = vmul.f32 %v4374, 0.1
        %v4867 = vmul.f32 %v4377, 0.1
        %v4868 = vmul.f32 %v4382, 0.1
        %v4869 = vmul.f32 %v4385, 0.1
        %v4870 = vmul.f32 %v4390, 0.1
        %v4871 = vmul.f32 %v4393, 0.1
        %v4872 = vmul.f32 %v4398, 0.1
        %v4873 = vmul.f32 %v4401, 0.1
        %v4874 = vmul.f32 %v4406, 0.1
        %v4875 = vmul.f32 %v4409, 0.1
        %v4876 = vmul.f32 %v4414, 0.1
        %v4877 = vmul.f32 %v4417, 0.1
        %v4878 = vmul.f32 %v4422, 0.1
        %v4879 = vmul.f32 %v4425, 0.1
        %v4880 = vmul.f32 %v4430, 0.1
        %v4881 = vmul.f32 %v4433, 0.1
        %v4882 = vmul.f32 %v4438, 0.1
        %v4883 = vmul.f32 %v4441, 0.1
        %v4884 = vmul.f32 %v4446, 0.1
        %v4885 = vmul.f32 %v4449, 0.1
        %v4886 = vmul.f32 %v4454, 0.1
        %v4887 = vmul.f32 %v4457, 0.1
        %v4888 = vmul.f32 %v4462, 0.1
        %v4889 = vmul.f32 %v4465, 0.1
        %v4890 = vmul.f32 %v4470, 0.1
        %v4891 = vmul.f32 %v4473, 0.1
        %v4892 = vmul.f32 %v4478, 0.1
        %v4893 = vmul.f32 %v4481, 0.1
        %v4894 = vmul.f32 %v4486, 0.1
        %v4895 = vmul.f32 %v4489, 0.1
        %v4896 = vmul.f32 %v4494, 0.1
        %v4897 = vmul.f32 %v4497, 0.1
        %v4898 = vmul.f32 %v4502, 0.1
        %v4899 = vmul.f32 %v4505, 0.1
        %v4900 = vmul.f32 %v4510, 0.1
        %v4901 = vmul.f32 %v4513, 0.1
        %v4902 = vmul.f32 %v4518, 0.1
        %v4903 = vmul.f32 %v4521, 0.1
        %v4904 = vmul.f32 %v4526, 0.1
        %v4905 = vmul.f32 %v4529, 0.1
        %v4906 = vmul.f32 %v4534, 0.1
        %v4907 = vmul.f32 %v4537, 0.1
        %v4908 = vmul.f32 %v4542, 0.1
        %v4909 = vmul.f32 %v4545, 0.1
        %v4910 = vmul.f32 %v4550, 0.1
        %v4911 = vmul.f32 %v4553, 0.1
        %v4912 = vmul.f32 %v4558, 0.1
        %v4913 = vmul.f32 %v4561, 0.1
        %v4914 = vmul.f32 %v4566, 0.1
        %v4915 = vmul.f32 %v4569, 0.1
        %v4916 = vmul.f32 %v4574, 0.1
        %v4917 = vmul.f32 %v4577, 0.1
        %v4918 = vmul.f32 %v4582, 0.1
        %v4919 = vmul.f32 %v4585, 0.1
        %v4920 = vmul.f32 %v4590, 0.1
        %v4921 = vmul.f32 %v4593, 0.1
        %v4922 = vmul.f32 %v4598, 0.1
        %v4923 = vmul.f32 %v4601, 0.1
        %v4924 = vmul.f32 %v4606, 0.1
        %v4925 = vmul.f32 %v4609, 0.1
        %v4926 = vmul.f32 %v4614, 0.1
        %v4927 = vmul.f32 %v4617, 0.1
        %v4928 = vmul.f32 %v4622, 0.1
        %v4929 = vmul.f32 %v4625, 0.1
        %v4930 = vmul.f32 %v4630, 0.1
        %v4931 = vmul.f32 %v4633, 0.1
        %v4932 = vmul.f32 %v4638, 0.1
        %v4933 = vmul.f32 %v4641, 0.1
        %v4934 = vmul.f32 %v4646, 0.1
        %v4935 = vmul.f32 %v4649, 0.1
        %v4936 = vmul.f32 %v4654, 0.1
        %v4937 = vmul.f32 %v4657, 0.1
        %v4938 = vmul.f32 %v4662, 0.1
        %v4939 = vmul.f32 %v4665, 0.1
        %v4940 = vmul.f32 %v4670, 0.1
        %v4941 = vmul.f32 %v4673, 0.1
        %v4942 = vmul.f32 %v4678, 0.1
        %v4943 = vmul.f32 %v4681, 0.1
        %v4944 = vmul.f32 %v4686, 0.1
        %v4945 = vmul.f32 %v4689, 0.1
        %v4946 = vmul.f32 %v4694, 0.1
        %v4947 = vmul.f32 %v4697, 0.1
        %v4948 = vmul.f32 %v4702, 0.1
        %v4949 = vmul.f32 %v4705, 0.1
        %v4950 = vmul.f32 %v4710, 0.1
        %v4951 = vmul.f32 %v4713, 0.1
        %v4952 = vmul.f32 %v4718, 0.1
        %v4953 = vmul.f32 %v4721, 0.1
        %v4954 = vmul.f32 %v4726, 0.1
        %v4955 = vmul.f32 %v4729, 0.1
        %v4956 = vmul.f32 %v4734, 0.1
        %v4957 = vmul.f32 %v4737, 0.1
        %v4958 = vmul.f32 %v4742, 0.1
        %v4959 = vmul.f32 %v4745, 0.1
        %v4960 = vmul.f32 %v4750, 0.1
        %v4961 = vmul.f32 %v4753, 0.1
        %v4962 = vmul.f32 %v4758, 0.1
        %v4963 = vmul.f32 %v4761, 0.1
        %v4964 = vmul.f32 %v4766, 0.1
        %v4965 = vmul.f32 %v4769, 0.1
        %v4966 = vmul.f32 %v4774, 0.1
        %v4967 = vmul.f32 %v4777, 0.1
        %v4968 = vmul.f32 %v4782, 0.1
        %v4969 = vmul.f32 %v4785, 0.1
        %v4970 = vmul.f32 %v4790, 0.1
        %v4971 = vmul.f32 %v4793, 0.1
        %v4972 = vmul.f32 %v4798, 0.1
        %v4973 = vmul.f32 %v4801, 0.1
        %v4974 = vmul.f32 %v4806, 0.1
        %v4975 = vmul.f32 %v4809, 0.1
        %v4976 = vmul.f32 %v4814, 0.1
        %v4977 = vmul.f32 %v4817, 0.1
        %v4978 = vmul.f32 %v4822, 0.1
        %v4979 = vmul.f32 %v4825, 0.1
        %v4980 = vmul.f32 %v4830, 0.1
        %v4981 = vmul.f32 %v4833, 0.1
        %v4982 = vmul.f32 %v4838, 0.1
        %v4983 = vmul.f32 %v4841, 0.1
        %v4984 = vmul.f32 %v4846, 0.1
        %v4985 = vmul.f32 %v4849, 0.1
        %v4986 = vmul.f32 %v4854, 0.1
        %v4987 = vmul.f32 %v4857, 0.1
        %v4988 = vmax.f32 %v4350, %v4860
        %v4989 = vmax.f32 %v4353, %v4861
        %v4990 = vmax.f32 %v4358, %v4862
        %v4991 = vmax.f32 %v4361, %v4863
        %v4992 = vmax.f32 %v4366, %v4864
        %v4993 = vmax.f32 %v4369, %v4865
        %v4994 = vmax.f32 %v4374, %v4866
        %v4995 = vmax.f32 %v4377, %v4867
        %v4996 = vmax.f32 %v4382, %v4868
        %v4997 = vmax.f32 %v4385, %v4869
        %v4998 = vmax.f32 %v4390, %v4870
        %v4999 = vmax.f32 %v4393, %v4871
        %v5000 = vmax.f32 %v4398, %v4872
        %v5001 = vmax.f32 %v4401, %v4873
        %v5002 = vmax.f32 %v4406, %v4874
        %v5003 = vmax.f32 %v4409, %v4875
        %v5004 = vmax.f32 %v4414, %v4876
        %v5005 = vmax.f32 %v4417, %v4877
        %v5006 = vmax.f32 %v4422, %v4878
        %v5007 = vmax.f32 %v4425, %v4879
        %v5008 = vmax.f32 %v4430, %v4880
        %v5009 = vmax.f32 %v4433, %v4881
        %v5010 = vmax.f32 %v4438, %v4882
        %v5011 = vmax.f32 %v4441, %v4883
        %v5012 = vmax.f32 %v4446, %v4884
        %v5013 = vmax.f32 %v4449, %v4885
        %v5014 = vmax.f32 %v4454, %v4886
        %v5015 = vmax.f32 %v4457, %v4887
        %v5016 = vmax.f32 %v4462, %v4888
        %v5017 = vmax.f32 %v4465, %v4889
        %v5018 = vmax.f32 %v4470, %v4890
        %v5019 = vmax.f32 %v4473, %v4891
        %v5020 = vmax.f32 %v4478, %v4892
        %v5021 = vmax.f32 %v4481, %v4893
        %v5022 = vmax.f32 %v4486, %v4894
        %v5023 = vmax.f32 %v4489, %v4895
        %v5024 = vmax.f32 %v4494, %v4896
        %v5025 = vmax.f32 %v4497, %v4897
        %v5026 = vmax.f32 %v4502, %v4898
        %v5027 = vmax.f32 %v4505, %v4899
        %v5028 = vmax.f32 %v4510, %v4900
        %v5029 = vmax.f32 %v4513, %v4901
        %v5030 = vmax.f32 %v4518, %v4902
        %v5031 = vmax.f32 %v4521, %v4903
        %v5032 = vmax.f32 %v4526, %v4904
        %v5033 = vmax.f32 %v4529, %v4905
        %v5034 = vmax.f32 %v4534, %v4906
        %v5035 = vmax.f32 %v4537, %v4907
        %v5036 = vmax.f32 %v4542, %v4908
        %v5037 = vmax.f32 %v4545, %v4909
        %v5038 = vmax.f32 %v4550, %v4910
        %v5039 = vmax.f32 %v4553, %v4911
        %v5040 = vmax.f32 %v4558, %v4912
        %v5041 = vmax.f32 %v4561, %v4913
        %v5042 = vmax.f32 %v4566, %v4914
        %v5043 = vmax.f32 %v4569, %v4915
        %v5044 = vmax.f32 %v4574, %v4916
        %v5045 = vmax.f32 %v4577, %v4917
        %v5046 = vmax.f32 %v4582, %v4918
        %v5047 = vmax.f32 %v4585, %v4919
        %v5048 = vmax.f32 %v4590, %v4920
        %v5049 = vmax.f32 %v4593, %v4921
        %v5050 = vmax.f32 %v4598, %v4922
        %v5051 = vmax.f32 %v4601, %v4923
        %v5052 = vmax.f32 %v4606, %v4924
        %v5053 = vmax.f32 %v4609, %v4925
        %v5054 = vmax.f32 %v4614, %v4926
        %v5055 = vmax.f32 %v4617, %v4927
        %v5056 = vmax.f32 %v4622, %v4928
        %v5057 = vmax.f32 %v4625, %v4929
        %v5058 = vmax.f32 %v4630, %v4930
        %v5059 = vmax.f32 %v4633, %v4931
        %v5060 = vmax.f32 %v4638, %v4932
        %v5061 = vmax.f32 %v4641, %v4933
        %v5062 = vmax.f32 %v4646, %v4934
        %v5063 = vmax.f32 %v4649, %v4935
        %v5064 = vmax.f32 %v4654, %v4936
        %v5065 = vmax.f32 %v4657, %v4937
        %v5066 = vmax.f32 %v4662, %v4938
        %v5067 = vmax.f32 %v4665, %v4939
        %v5068 = vmax.f32 %v4670, %v4940
        %v5069 = vmax.f32 %v4673, %v4941
        %v5070 = vmax.f32 %v4678, %v4942
        %v5071 = vmax.f32 %v4681, %v4943
        %v5072 = vmax.f32 %v4686, %v4944
        %v5073 = vmax.f32 %v4689, %v4945
        %v5074 = vmax.f32 %v4694, %v4946
        %v5075 = vmax.f32 %v4697, %v4947
        %v5076 = vmax.f32 %v4702, %v4948
        %v5077 = vmax.f32 %v4705, %v4949
        %v5078 = vmax.f32 %v4710, %v4950
        %v5079 = vmax.f32 %v4713, %v4951
        %v5080 = vmax.f32 %v4718, %v4952
        %v5081 = vmax.f32 %v4721, %v4953
        %v5082 = vmax.f32 %v4726, %v4954
        %v5083 = vmax.f32 %v4729, %v4955
        %v5084 = vmax.f32 %v4734, %v4956
        %v5085 = vmax.f32 %v4737, %v4957
        %v5086 = vmax.f32 %v4742, %v4958
        %v5087 = vmax.f32 %v4745, %v4959
        %v5088 = vmax.f32 %v4750, %v4960
        %v5089 = vmax.f32 %v4753, %v4961
        %v5090 = vmax.f32 %v4758, %v4962
        %v5091 = vmax.f32 %v4761, %v4963
        %v5092 = vmax.f32 %v4766, %v4964
        %v5093 = vmax.f32 %v4769, %v4965
        %v5094 = vmax.f32 %v4774, %v4966
        %v5095 = vmax.f32 %v4777, %v4967
        %v5096 = vmax.f32 %v4782, %v4968
        %v5097 = vmax.f32 %v4785, %v4969
        %v5098 = vmax.f32 %v4790, %v4970
        %v5099 = vmax.f32 %v4793, %v4971
        %v5100 = vmax.f32 %v4798, %v4972
        %v5101 = vmax.f32 %v4801, %v4973
        %v5102 = vmax.f32 %v4806, %v4974
        %v5103 = vmax.f32 %v4809, %v4975
        %v5104 = vmax.f32 %v4814, %v4976
        %v5105 = vmax.f32 %v4817, %v4977
        %v5106 = vmax.f32 %v4822, %v4978
        %v5107 = vmax.f32 %v4825, %v4979
        %v5108 = vmax.f32 %v4830, %v4980
        %v5109 = vmax.f32 %v4833, %v4981
        %v5110 = vmax.f32 %v4838, %v4982
        %v5111 = vmax.f32 %v4841, %v4983
        %v5112 = vmax.f32 %v4846, %v4984
        %v5113 = vmax.f32 %v4849, %v4985
        %v5114 = vmax.f32 %v4854, %v4986
        %v5115 = vmax.f32 %v4857, %v4987
        %v5116 = vld [vmem:[%s9] sm:$0x3]
        %v5117 = vld [vmem:[%s10] sm:$0x3]
        %5119 = vset.pattern.permute.xlu0 0
        %5120 = vperm.xlu0 %5119, %v5117
        %v5121 = vpop.permute.xlu0 %5120
        %vm5123 = vcmask 64512
        %v5125 = vsel %vm5123, %v5116, 0
        %v5128 = vsel %vm5123, %v4988, 0
        %v5131 = vsel %vm5123, %v4989, 0
        %v5134 = vsel %vm5123, %v4990, 0
        %v5137 = vsel %vm5123, %v4991, 0
        %v5140 = vsel %vm5123, %v4992, 0
        %v5143 = vsel %vm5123, %v4993, 0
        %v5146 = vsel %vm5123, %v4994, 0
        %v5149 = vsel %vm5123, %v4995, 0
        %v5152 = vsel %vm5123, %v4996, 0
        %v5155 = vsel %vm5123, %v4997, 0
        %v5158 = vsel %vm5123, %v4998, 0
        %v5161 = vsel %vm5123, %v4999, 0
        %v5164 = vsel %vm5123, %v5000, 0
        %v5167 = vsel %vm5123, %v5001, 0
        %v5170 = vsel %vm5123, %v5002, 0
        %v5173 = vsel %vm5123, %v5003, 0
        %v5176 = vsel %vm5123, %v5004, 0
        %v5179 = vsel %vm5123, %v5005, 0
        %v5182 = vsel %vm5123, %v5006, 0
        %v5185 = vsel %vm5123, %v5007, 0
        %v5188 = vsel %vm5123, %v5008, 0
        %v5191 = vsel %vm5123, %v5009, 0
        %v5194 = vsel %vm5123, %v5010, 0
        %v5197 = vsel %vm5123, %v5011, 0
        %v5200 = vsel %vm5123, %v5012, 0
        %v5203 = vsel %vm5123, %v5013, 0
        %v5206 = vsel %vm5123, %v5014, 0
        %v5209 = vsel %vm5123, %v5015, 0
        %v5212 = vsel %vm5123, %v5016, 0
        %v5215 = vsel %vm5123, %v5017, 0
        %v5218 = vsel %vm5123, %v5018, 0
        %v5221 = vsel %vm5123, %v5019, 0
        %v5224 = vsel %vm5123, %v5020, 0
        %v5227 = vsel %vm5123, %v5021, 0
        %v5230 = vsel %vm5123, %v5022, 0
        %v5233 = vsel %vm5123, %v5023, 0
        %v5236 = vsel %vm5123, %v5024, 0
        %v5239 = vsel %vm5123, %v5025, 0
        %v5242 = vsel %vm5123, %v5026, 0
        %v5245 = vsel %vm5123, %v5027, 0
        %v5248 = vsel %vm5123, %v5028, 0
        %v5251 = vsel %vm5123, %v5029, 0
        %v5254 = vsel %vm5123, %v5030, 0
        %v5257 = vsel %vm5123, %v5031, 0
        %v5260 = vsel %vm5123, %v5032, 0
        %v5263 = vsel %vm5123, %v5033, 0
        %v5266 = vsel %vm5123, %v5034, 0
        %v5269 = vsel %vm5123, %v5035, 0
        %v5272 = vsel %vm5123, %v5036, 0
        %v5275 = vsel %vm5123, %v5037, 0
        %v5278 = vsel %vm5123, %v5038, 0
        %v5281 = vsel %vm5123, %v5039, 0
        %v5284 = vsel %vm5123, %v5040, 0
        %v5287 = vsel %vm5123, %v5041, 0
        %v5290 = vsel %vm5123, %v5042, 0
        %v5293 = vsel %vm5123, %v5043, 0
        %v5296 = vsel %vm5123, %v5044, 0
        %v5299 = vsel %vm5123, %v5045, 0
        %v5302 = vsel %vm5123, %v5046, 0
        %v5305 = vsel %vm5123, %v5047, 0
        %v5308 = vsel %vm5123, %v5048, 0
        %v5311 = vsel %vm5123, %v5049, 0
        %v5314 = vsel %vm5123, %v5050, 0
        %v5317 = vsel %vm5123, %v5051, 0
        %v5320 = vsel %vm5123, %v5052, 0
        %v5323 = vsel %vm5123, %v5053, 0
        %v5326 = vsel %vm5123, %v5054, 0
        %v5329 = vsel %vm5123, %v5055, 0
        %v5332 = vsel %vm5123, %v5056, 0
        %v5335 = vsel %vm5123, %v5057, 0
        %v5338 = vsel %vm5123, %v5058, 0
        %v5341 = vsel %vm5123, %v5059, 0
        %v5344 = vsel %vm5123, %v5060, 0
        %v5347 = vsel %vm5123, %v5061, 0
        %v5350 = vsel %vm5123, %v5062, 0
        %v5353 = vsel %vm5123, %v5063, 0
        %v5356 = vsel %vm5123, %v5064, 0
        %v5359 = vsel %vm5123, %v5065, 0
        %v5362 = vsel %vm5123, %v5066, 0
        %v5365 = vsel %vm5123, %v5067, 0
        %v5368 = vsel %vm5123, %v5068, 0
        %v5371 = vsel %vm5123, %v5069, 0
        %v5374 = vsel %vm5123, %v5070, 0
        %v5377 = vsel %vm5123, %v5071, 0
        %v5380 = vsel %vm5123, %v5072, 0
        %v5383 = vsel %vm5123, %v5073, 0
        %v5386 = vsel %vm5123, %v5074, 0
        %v5389 = vsel %vm5123, %v5075, 0
        %v5392 = vsel %vm5123, %v5076, 0
        %v5395 = vsel %vm5123, %v5077, 0
        %v5398 = vsel %vm5123, %v5078, 0
        %v5401 = vsel %vm5123, %v5079, 0
        %v5404 = vsel %vm5123, %v5080, 0
        %v5407 = vsel %vm5123, %v5081, 0
        %v5410 = vsel %vm5123, %v5082, 0
        %v5413 = vsel %vm5123, %v5083, 0
        %v5416 = vsel %vm5123, %v5084, 0
        %v5419 = vsel %vm5123, %v5085, 0
        %v5422 = vsel %vm5123, %v5086, 0
        %v5425 = vsel %vm5123, %v5087, 0
        %v5428 = vsel %vm5123, %v5088, 0
        %v5431 = vsel %vm5123, %v5089, 0
        %v5434 = vsel %vm5123, %v5090, 0
        %v5437 = vsel %vm5123, %v5091, 0
        %v5440 = vsel %vm5123, %v5092, 0
        %v5443 = vsel %vm5123, %v5093, 0
        %v5446 = vsel %vm5123, %v5094, 0
        %v5449 = vsel %vm5123, %v5095, 0
        %v5452 = vsel %vm5123, %v5096, 0
        %v5455 = vsel %vm5123, %v5097, 0
        %v5458 = vsel %vm5123, %v5098, 0
        %v5461 = vsel %vm5123, %v5099, 0
        %v5464 = vsel %vm5123, %v5100, 0
        %v5467 = vsel %vm5123, %v5101, 0
        %v5470 = vsel %vm5123, %v5102, 0
        %v5473 = vsel %vm5123, %v5103, 0
        %v5476 = vsel %vm5123, %v5104, 0
        %v5479 = vsel %vm5123, %v5105, 0
        %v5482 = vsel %vm5123, %v5106, 0
        %v5485 = vsel %vm5123, %v5107, 0
        %v5488 = vsel %vm5123, %v5108, 0
        %v5491 = vsel %vm5123, %v5109, 0
        %v5494 = vsel %vm5123, %v5110, 0
        %v5497 = vsel %vm5123, %v5111, 0
        %v5500 = vsel %vm5123, %v5112, 0
        %v5503 = vsel %vm5123, %v5113, 0
        %v5506 = vsel %vm5123, %v5114, 0
        %v5509 = vsel %vm5123, %v5115, 0
        %5511 = vmatprep.subr.mxu0 0.0
        %5512 = vmatpush1.xpose.msra.mxu0 %v5128
        %5513 = vmatprep.subr.mxu0 0.0
        %5514 = vmatpush1.xpose.msra.mxu0 %v5131
        %5515 = vmatprep.subr.mxu0 0.0
        %5516 = vmatpush1.xpose.msra.mxu0 %v5134
        %5517 = vmatprep.subr.mxu0 0.0
        %5518 = vmatpush1.xpose.msra.mxu0 %v5137
        %5519 = vmatprep.subr.mxu0 0.0
        %5520 = vmatpush1.xpose.msra.mxu0 %v5140
        %5521 = vmatprep.subr.mxu0 0.0
        %5522 = vmatpush1.xpose.msra.mxu0 %v5143
        %5523 = vmatprep.subr.mxu0 0.0
        %5524 = vmatpush1.xpose.msra.mxu0 %v5146
        %5525 = vmatprep.subr.mxu0 0.0
        %5526 = vmatpush1.xpose.msra.mxu0 %v5149
        %5527 = vmatprep.subr.mxu0 0.0
        %5528 = vmatpush1.xpose.msra.mxu0 %v5152
        %5529 = vmatprep.subr.mxu0 0.0
        %5530 = vmatpush1.xpose.msra.mxu0 %v5155
        %5531 = vmatprep.subr.mxu0 0.0
        %5532 = vmatpush1.xpose.msra.mxu0 %v5158
        %5533 = vmatprep.subr.mxu0 0.0
        %5534 = vmatpush1.xpose.msra.mxu0 %v5161
        %5535 = vmatprep.subr.mxu0 0.0
        %5536 = vmatpush1.xpose.msra.mxu0 %v5164
        %5537 = vmatprep.subr.mxu0 0.0
        %5538 = vmatpush1.xpose.msra.mxu0 %v5167
        %5539 = vmatprep.subr.mxu0 0.0
        %5540 = vmatpush1.xpose.msra.mxu0 %v5170
        %5541 = vmatprep.subr.mxu0 0.0
        %5542 = vmatpush1.xpose.msra.mxu0 %v5173
        %5543 = vmatprep.subr.mxu0 0.0
        %5544 = vmatpush1.xpose.msra.mxu0 %v5176
        %5545 = vmatprep.subr.mxu0 0.0
        %5546 = vmatpush1.xpose.msra.mxu0 %v5179
        %5547 = vmatprep.subr.mxu0 0.0
        %5548 = vmatpush1.xpose.msra.mxu0 %v5182
        %5549 = vmatprep.subr.mxu0 0.0
        %5550 = vmatpush1.xpose.msra.mxu0 %v5185
        %5551 = vmatprep.subr.mxu0 0.0
        %5552 = vmatpush1.xpose.msra.mxu0 %v5188
        %5553 = vmatprep.subr.mxu0 0.0
        %5554 = vmatpush1.xpose.msra.mxu0 %v5191
        %5555 = vmatprep.subr.mxu0 0.0
        %5556 = vmatpush1.xpose.msra.mxu0 %v5194
        %5557 = vmatprep.subr.mxu0 0.0
        %5558 = vmatpush1.xpose.msra.mxu0 %v5197
        %5559 = vmatprep.subr.mxu0 0.0
        %5560 = vmatpush1.xpose.msra.mxu0 %v5200
        %5561 = vmatprep.subr.mxu0 0.0
        %5562 = vmatpush1.xpose.msra.mxu0 %v5203
        %5563 = vmatprep.subr.mxu0 0.0
        %5564 = vmatpush1.xpose.msra.mxu0 %v5206
        %5565 = vmatprep.subr.mxu0 0.0
        %5566 = vmatpush1.xpose.msra.mxu0 %v5209
        %5567 = vmatprep.subr.mxu0 0.0
        %5568 = vmatpush1.xpose.msra.mxu0 %v5212
        %5569 = vmatprep.subr.mxu0 0.0
        %5570 = vmatpush1.xpose.msra.mxu0 %v5215
        %5571 = vmatprep.subr.mxu0 0.0
        %5572 = vmatpush1.xpose.msra.mxu0 %v5218
        %5573 = vmatprep.subr.mxu0 0.0
        %5574 = vmatpush1.xpose.msra.mxu0 %v5221
        %5575 = vmatprep.mubr.f32.mxu0 0.0
        %5576 = vmatmul.mubr.f32.gmra.mrb[0].mxu0 %v5125
        %v5577 = vpop.f32.mrb[0].mxu0
        %v5578 = vadd.f32 %v5121, %v5577
        %v5579 = vpop.f32.mrb[0].mxu0
        %v5580 = vadd.f32 %v5121, %v5579
        %5581 = vdwg.mxu0
        %5582 = vmatprep.subr.mxu0 0.0
        %5583 = vmatpush1.xpose.msra.mxu0 %v5224
        %5584 = vmatprep.subr.mxu0 0.0
        %5585 = vmatpush1.xpose.msra.mxu0 %v5227
        %5586 = vmatprep.subr.mxu0 0.0
        %5587 = vmatpush1.xpose.msra.mxu0 %v5230
        %5588 = vmatprep.subr.mxu0 0.0
        %5589 = vmatpush1.xpose.msra.mxu0 %v5233
        %5590 = vmatprep.subr.mxu0 0.0
        %5591 = vmatpush1.xpose.msra.mxu0 %v5236
        %5592 = vmatprep.subr.mxu0 0.0
        %5593 = vmatpush1.xpose.msra.mxu0 %v5239
        %5594 = vmatprep.subr.mxu0 0.0
        %5595 = vmatpush1.xpose.msra.mxu0 %v5242
        %5596 = vmatprep.subr.mxu0 0.0
        %5597 = vmatpush1.xpose.msra.mxu0 %v5245
        %5598 = vmatprep.subr.mxu0 0.0
        %5599 = vmatpush1.xpose.msra.mxu0 %v5248
        %5600 = vmatprep.subr.mxu0 0.0
        %5601 = vmatpush1.xpose.msra.mxu0 %v5251
        %5602 = vmatprep.subr.mxu0 0.0
        %5603 = vmatpush1.xpose.msra.mxu0 %v5254
        %5604 = vmatprep.subr.mxu0 0.0
        %5605 = vmatpush1.xpose.msra.mxu0 %v5257
        %5606 = vmatprep.subr.mxu0 0.0
        %5607 = vmatpush1.xpose.msra.mxu0 %v5260
        %5608 = vmatprep.subr.mxu0 0.0
        %5609 = vmatpush1.xpose.msra.mxu0 %v5263
        %5610 = vmatprep.subr.mxu0 0.0
        %5611 = vmatpush1.xpose.msra.mxu0 %v5266
        %5612 = vmatprep.subr.mxu0 0.0
        %5613 = vmatpush1.xpose.msra.mxu0 %v5269
        %5614 = vmatprep.subr.mxu0 0.0
        %5615 = vmatpush1.xpose.msra.mxu0 %v5272
        %5616 = vmatprep.subr.mxu0 0.0
        %5617 = vmatpush1.xpose.msra.mxu0 %v5275
        %5618 = vmatprep.subr.mxu0 0.0
        %5619 = vmatpush1.xpose.msra.mxu0 %v5278
        %5620 = vmatprep.subr.mxu0 0.0
        %5621 = vmatpush1.xpose.msra.mxu0 %v5281
        %5622 = vmatprep.subr.mxu0 0.0
        %5623 = vmatpush1.xpose.msra.mxu0 %v5284
        %5624 = vmatprep.subr.mxu0 0.0
        %5625 = vmatpush1.xpose.msra.mxu0 %v5287
        %5626 = vmatprep.subr.mxu0 0.0
        %5627 = vmatpush1.xpose.msra.mxu0 %v5290
        %5628 = vmatprep.subr.mxu0 0.0
        %5629 = vmatpush1.xpose.msra.mxu0 %v5293
        %5630 = vmatprep.subr.mxu0 0.0
        %5631 = vmatpush1.xpose.msra.mxu0 %v5296
        %5632 = vmatprep.subr.mxu0 0.0
        %5633 = vmatpush1.xpose.msra.mxu0 %v5299
        %5634 = vmatprep.subr.mxu0 0.0
        %5635 = vmatpush1.xpose.msra.mxu0 %v5302
        %5636 = vmatprep.subr.mxu0 0.0
        %5637 = vmatpush1.xpose.msra.mxu0 %v5305
        %5638 = vmatprep.subr.mxu0 0.0
        %5639 = vmatpush1.xpose.msra.mxu0 %v5308
        %5640 = vmatprep.subr.mxu0 0.0
        %5641 = vmatpush1.xpose.msra.mxu0 %v5311
        %5642 = vmatprep.subr.mxu0 0.0
        %5643 = vmatpush1.xpose.msra.mxu0 %v5314
        %5644 = vmatprep.subr.mxu0 0.0
        %5645 = vmatpush1.xpose.msra.mxu0 %v5317
        %5646 = vmatprep.mubr.f32.mxu0 0.0
        %5647 = vmatmul.mubr.f32.gmra.mrb[0].mxu0 %v5125
        %v5648 = vpop.f32.mrb[0].mxu0
        %v5649 = vadd.f32 %v5121, %v5648
        %v5650 = vpop.f32.mrb[0].mxu0
        %v5651 = vadd.f32 %v5121, %v5650
        %5652 = vdwg.mxu0
        %5653 = vmatprep.subr.mxu0 0.0
        %5654 = vmatpush1.xpose.msra.mxu0 %v5320
        %5655 = vmatprep.subr.mxu0 0.0
        %5656 = vmatpush1.xpose.msra.mxu0 %v5323
        %5657 = vmatprep.subr.mxu0 0.0
        %5658 = vmatpush1.xpose.msra.mxu0 %v5326
        %5659 = vmatprep.subr.mxu0 0.0
        %5660 = vmatpush1.xpose.msra.mxu0 %v5329
        %5661 = vmatprep.subr.mxu0 0.0
        %5662 = vmatpush1.xpose.msra.mxu0 %v5332
        %5663 = vmatprep.subr.mxu0 0.0
        %5664 = vmatpush1.xpose.msra.mxu0 %v5335
        %5665 = vmatprep.subr.mxu0 0.0
        %5666 = vmatpush1.xpose.msra.mxu0 %v5338
        %5667 = vmatprep.subr.mxu0 0.0
        %5668 = vmatpush1.xpose.msra.mxu0 %v5341
        %5669 = vmatprep.subr.mxu0 0.0
        %5670 = vmatpush1.xpose.msra.mxu0 %v5344
        %5671 = vmatprep.subr.mxu0 0.0
        %5672 = vmatpush1.xpose.msra.mxu0 %v5347
        %5673 = vmatprep.subr.mxu0 0.0
        %5674 = vmatpush1.xpose.msra.mxu0 %v5350
        %5675 = vmatprep.subr.mxu0 0.0
        %5676 = vmatpush1.xpose.msra.mxu0 %v5353
        %5677 = vmatprep.subr.mxu0 0.0
        %5678 = vmatpush1.xpose.msra.mxu0 %v5356
        %5679 = vmatprep.subr.mxu0 0.0
        %5680 = vmatpush1.xpose.msra.mxu0 %v5359
        %5681 = vmatprep.subr.mxu0 0.0
        %5682 = vmatpush1.xpose.msra.mxu0 %v5362
        %5683 = vmatprep.subr.mxu0 0.0
        %5684 = vmatpush1.xpose.msra.mxu0 %v5365
        %5685 = vmatprep.subr.mxu0 0.0
        %5686 = vmatpush1.xpose.msra.mxu0 %v5368
        %5687 = vmatprep.subr.mxu0 0.0
        %5688 = vmatpush1.xpose.msra.mxu0 %v5371
        %5689 = vmatprep.subr.mxu0 0.0
        %5690 = vmatpush1.xpose.msra.mxu0 %v5374
        %5691 = vmatprep.subr.mxu0 0.0
        %5692 = vmatpush1.xpose.msra.mxu0 %v5377
        %5693 = vmatprep.subr.mxu0 0.0
        %5694 = vmatpush1.xpose.msra.mxu0 %v5380
        %5695 = vmatprep.subr.mxu0 0.0
        %5696 = vmatpush1.xpose.msra.mxu0 %v5383
        %5697 = vmatprep.subr.mxu0 0.0
        %5698 = vmatpush1.xpose.msra.mxu0 %v5386
        %5699 = vmatprep.subr.mxu0 0.0
        %5700 = vmatpush1.xpose.msra.mxu0 %v5389
        %5701 = vmatprep.subr.mxu0 0.0
        %5702 = vmatpush1.xpose.msra.mxu0 %v5392
        %5703 = vmatprep.subr.mxu0 0.0
        %5704 = vmatpush1.xpose.msra.mxu0 %v5395
        %5705 = vmatprep.subr.mxu0 0.0
        %5706 = vmatpush1.xpose.msra.mxu0 %v5398
        %5707 = vmatprep.subr.mxu0 0.0
        %5708 = vmatpush1.xpose.msra.mxu0 %v5401
        %5709 = vmatprep.subr.mxu0 0.0
        %5710 = vmatpush1.xpose.msra.mxu0 %v5404
        %5711 = vmatprep.subr.mxu0 0.0
        %5712 = vmatpush1.xpose.msra.mxu0 %v5407
        %5713 = vmatprep.subr.mxu0 0.0
        %5714 = vmatpush1.xpose.msra.mxu0 %v5410
        %5715 = vmatprep.subr.mxu0 0.0
        %5716 = vmatpush1.xpose.msra.mxu0 %v5413
        %5717 = vmatprep.mubr.f32.mxu0 0.0
        %5718 = vmatmul.mubr.f32.gmra.mrb[0].mxu0 %v5125
        %v5719 = vpop.f32.mrb[0].mxu0
        %v5720 = vadd.f32 %v5121, %v5719
        %v5721 = vpop.f32.mrb[0].mxu0
        %v5722 = vadd.f32 %v5121, %v5721
        %5723 = vdwg.mxu0
        %5724 = vmatprep.subr.mxu0 0.0
        %5725 = vmatpush1.xpose.msra.mxu0 %v5416
        %5726 = vmatprep.subr.mxu0 0.0
        %5727 = vmatpush1.xpose.msra.mxu0 %v5419
        %5728 = vmatprep.subr.mxu0 0.0
        %5729 = vmatpush1.xpose.msra.mxu0 %v5422
        %5730 = vmatprep.subr.mxu0 0.0
        %5731 = vmatpush1.xpose.msra.mxu0 %v5425
        %5732 = vmatprep.subr.mxu0 0.0
        %5733 = vmatpush1.xpose.msra.mxu0 %v5428
        %5734 = vmatprep.subr.mxu0 0.0
        %5735 = vmatpush1.xpose.msra.mxu0 %v5431
        %5736 = vmatprep.subr.mxu0 0.0
        %5737 = vmatpush1.xpose.msra.mxu0 %v5434
        %5738 = vmatprep.subr.mxu0 0.0
        %5739 = vmatpush1.xpose.msra.mxu0 %v5437
        %5740 = vmatprep.subr.mxu0 0.0
        %5741 = vmatpush1.xpose.msra.mxu0 %v5440
        %5742 = vmatprep.subr.mxu0 0.0
        %5743 = vmatpush1.xpose.msra.mxu0 %v5443
        %5744 = vmatprep.subr.mxu0 0.0
        %5745 = vmatpush1.xpose.msra.mxu0 %v5446
        %5746 = vmatprep.subr.mxu0 0.0
        %5747 = vmatpush1.xpose.msra.mxu0 %v5449
        %5748 = vmatprep.subr.mxu0 0.0
        %5749 = vmatpush1.xpose.msra.mxu0 %v5452
        %5750 = vmatprep.subr.mxu0 0.0
        %5751 = vmatpush1.xpose.msra.mxu0 %v5455
        %5752 = vmatprep.subr.mxu0 0.0
        %5753 = vmatpush1.xpose.msra.mxu0 %v5458
        %5754 = vmatprep.subr.mxu0 0.0
        %5755 = vmatpush1.xpose.msra.mxu0 %v5461
        %5756 = vmatprep.subr.mxu0 0.0
        %5757 = vmatpush1.xpose.msra.mxu0 %v5464
        %5758 = vmatprep.subr.mxu0 0.0
        %5759 = vmatpush1.xpose.msra.mxu0 %v5467
        %5760 = vmatprep.subr.mxu0 0.0
        %5761 = vmatpush1.xpose.msra.mxu0 %v5470
        %5762 = vmatprep.subr.mxu0 0.0
        %5763 = vmatpush1.xpose.msra.mxu0 %v5473
        %5764 = vmatprep.subr.mxu0 0.0
        %5765 = vmatpush1.xpose.msra.mxu0 %v5476
        %5766 = vmatprep.subr.mxu0 0.0
        %5767 = vmatpush1.xpose.msra.mxu0 %v5479
        %5768 = vmatprep.subr.mxu0 0.0
        %5769 = vmatpush1.xpose.msra.mxu0 %v5482
        %5770 = vmatprep.subr.mxu0 0.0
        %5771 = vmatpush1.xpose.msra.mxu0 %v5485
        %5772 = vmatprep.subr.mxu0 0.0
        %5773 = vmatpush1.xpose.msra.mxu0 %v5488
        %5774 = vmatprep.subr.mxu0 0.0
        %5775 = vmatpush1.xpose.msra.mxu0 %v5491
        %5776 = vmatprep.subr.mxu0 0.0
        %5777 = vmatpush1.xpose.msra.mxu0 %v5494
        %5778 = vmatprep.subr.mxu0 0.0
        %5779 = vmatpush1.xpose.msra.mxu0 %v5497
        %5780 = vmatprep.subr.mxu0 0.0
        %5781 = vmatpush1.xpose.msra.mxu0 %v5500
        %5782 = vmatprep.subr.mxu0 0.0
        %5783 = vmatpush1.xpose.msra.mxu0 %v5503
        %5784 = vmatprep.subr.mxu0 0.0
        %5785 = vmatpush1.xpose.msra.mxu0 %v5506
        %5786 = vmatprep.subr.mxu0 0.0
        %5787 = vmatpush1.xpose.msra.mxu0 %v5509
        %5788 = vmatprep.mubr.f32.mxu0 0.0
        %5789 = vmatmul.mubr.f32.gmra.mrb[0].mxu0 %v5125
        %v5790 = vpop.f32.mrb[0].mxu0
        %v5791 = vadd.f32 %v5121, %v5790
        %v5792 = vpop.f32.mrb[0].mxu0
        %v5793 = vadd.f32 %v5121, %v5792
        %5794 = vdwg.mxu0
        %v5803 = vcombine.low %v5578, %v5580
        %v5804 = vcombine.low %v5649, %v5651
        %v5806 = vunpack.c.l.s4 1983009808
        %v5807 = vunpack.c.0.s8 %v5806
        %v5808 = vlaneseq
        %v5809 = vshrl.u32 %v5808, 7
        %v5810 = vsub.s32 %v5807, %v5809
        %v5811 = vrot.slane %v5803, %v5810
        %v5813 = vunpack.c.l.s4 1983009808
        %v5814 = vunpack.c.0.s8 %v5813
        %v5815 = vlaneseq
        %v5816 = vshrl.u32 %v5815, 7
        %v5817 = vsub.s32 %v5814, %v5816
        %v5818 = vrot.slane %v5804, %v5817
        %v5819 = vcombine.low %v5811, %v5818
        %v5820 = vcombine.low %v5720, %v5722
        %v5821 = vcombine.low %v5791, %v5793
        %v5823 = vunpack.c.l.s4 1983009808
        %v5824 = vunpack.c.0.s8 %v5823
        %v5825 = vlaneseq
        %v5826 = vshrl.u32 %v5825, 7
        %v5827 = vsub.s32 %v5824, %v5826
        %v5828 = vrot.slane %v5820, %v5827
        %v5830 = vunpack.c.l.s4 1983009808
        %v5831 = vunpack.c.0.s8 %v5830
        %v5832 = vlaneseq
        %v5833 = vshrl.u32 %v5832, 7
        %v5834 = vsub.s32 %v5831, %v5833
        %v5835 = vrot.slane %v5821, %v5834
        %v5836 = vcombine.low %v5828, %v5835
        %5839 = vst [vmem:[%s380] sm:$0xff] %v5819
        %5840 = vst [vmem:[%s380 + $0x8] sm:$0xff] %v5836
        %s5841 = sand.u32 %s269, 1
        %s5842 = scalar_lea.sflag [#allocation3], %s5841
        %s5843 = sand.u32 %s269, 1
        %s5844 = smul.addr %s5843, 16
        %s5845 = scalar_lea.vmem [#allocation2], %s5844
        // Predicated region
        $region65: #{tpu_custom_call.1} parent=63 // pred_check
          %p5846 = pneg %p279
        $region66: #{tpu_custom_call.1} parent=63 // pred_check_branch
          %5848 = sbr.rel (%p5846) target = $region68
        $region67: #{tpu_custom_call.1} parent=63 // pred_region
          %s5849 = smul.u32 8, %s25
          %s5851 = ssub.s32 256, 256
          %5852 = vsyncadd %s5842, %s5851
          %s5853 = smul.addr %s5849, 32
          %s5854 = scalar_lea.hbm %s11, %s5853
          %s5856 = sshll.u32 %s5845, 4
          %s5857 = int_to_ptr.vmem [resolvable:$true] %s5856
          %5859 = dma.vmem_to_hbm [thread:$0]  %s5857, 256, %s5854, %s5842
        $region68: #{tpu_custom_call.1} parent=63 // pred_fallthru
          _
      $region64: #{tpu_custom_call.1} parent=5 // pred_fallthru
        _
      %p5860 = scmp.le.s32.totalorder 2, %s20
      // Predicated region
      $region69: #{tpu_custom_call.1} parent=5 // pred_check
        %p5861 = pneg %p5860
      $region70: #{tpu_custom_call.1} parent=5 // pred_check_branch
        %5863 = sbr.rel (%p5861) target = $region72
      $region71: #{tpu_custom_call.1} parent=5 // pred_region
        %s5864 = ssub.s32 %s20, 2
        // Predicated region
        $region73: #{tpu_custom_call.1} parent=71 // pred_check
          %p5865 = pneg %p285
        $region74: #{tpu_custom_call.1} parent=71 // pred_check_branch
          %5867 = sbr.rel (%p5865) target = $region76
        $region75: #{tpu_custom_call.1} parent=71 // pred_region
          %s5868 = sand.u32 %s270, 1
          %s5869 = scalar_lea.sflag [#allocation3], %s5868
          %s5870 = sand.u32 %s270, 1
          %s5871 = smul.addr %s5870, 16
          %s5872 = scalar_lea.vmem [#allocation2], %s5871
          %5873 = dma.done %s5869, 256
        $region76: #{tpu_custom_call.1} parent=71 // pred_fallthru
          _
      $region72: #{tpu_custom_call.1} parent=5 // pred_fallthru
        _
    $region6: #{tpu_custom_call.1} parent=1 // loop_footer
      %s24 = sadd.s32 1, %s20
    $region7: #{tpu_custom_call.1} parent=1 // loop_footer_branch
      %19 = sbr.rel target = $region3
    $region8: #{tpu_custom_call.1} parent=1 // loop_exit
      _
    %5874 = vsyncpa [#allocation3], 1
    %s5875 = scalar_lea.sflag [#allocation3], 1
    %5876 = vsyncpa %s5875, 1

</llo_original>
